<compile_context>
chip_gen: v6e
topology: v6e:2x2x1
jax: 0.10.0
libtpu: 0.0.40
codegen_flags: <defaults>
</compile_context>

<pallas_src>
import numpy as np
import jax
import jax.numpy as jnp
from jax.experimental import pallas as pl
from jax.experimental.pallas import tpu as pltpu

# ---- constants fixed by the module definition --------------------------------
FV = 15          # x.size(1)  -> BatchNorm1d(15)
L_IN = 245       # x.size(-1) -> LayerNorm(245)
LN_EPS = 1e-5
BN_EPS = 1e-5
OUT_DIM = 32     # final Conv1d(16 -> 32, k=4)

# conv/pool chain: 245 -c(5,3)-> 81 -p(3,2)-> 40 -c(3,2)-> 19 -p(3,2)-> 9
#                  -c(3,1)-> 7 -p(3,1)-> 5 -c(3,1)-> 3 (+energy) -c(4)-> 1


# ------------------------------- Pallas kernel --------------------------------
def _cnn_triplet_kernel(x_ref, ln_g_ref, ln_b_ref, bn_s_ref, bn_o_ref,
                        m1_ref, b1_ref, m2_ref, b2_ref, m3_ref, b3_ref,
                        mf_ref, mfe_ref, bf_ref, out_ref):
    x = x_ref[...]                                           # (TN, 245) f32

    # energy on the RAW input + eval-mode BatchNorm1d(15) as a per-row affine.
    sumsq = jnp.sum(x * x, axis=-1, keepdims=True)           # (TN, 1)
    en = sumsq * bn_s_ref[...] + bn_o_ref[...]               # (TN, 1)  f32

    # LayerNorm(245); variance reuses the sum of squares (one less XLU reduce).
    mu = jnp.mean(x, axis=-1, keepdims=True)
    var = sumsq * (1.0 / L_IN) - mu * mu
    xn = (x - mu) * jax.lax.rsqrt(var + LN_EPS)
    xn = xn * ln_g_ref[...] + ln_b_ref[...]                  # (TN, 245) f32

    def mxu(a_bf16, m):  # bf16 MXU matmul, f32 accumulation
        return jnp.dot(a_bf16, m, preferred_element_type=jnp.float32)

    def conv_pool(h, m_ref, b_ref):
        # fused Conv1d + MaxPool1d(3): max over the 3 pool-shift matrices, then
        # the (per-channel, hence shift-invariant) conv bias.  Cast once.
        hb = h.astype(jnp.bfloat16)
        y = jnp.maximum(jnp.maximum(mxu(hb, m_ref[0]), mxu(hb, m_ref[1])),
                        mxu(hb, m_ref[2]))
        return y + b_ref[...]

    h = conv_pool(xn, m1_ref, b1_ref)                        # (TN, 384)  (320 + pad)
    h = conv_pool(h, m2_ref, b2_ref)                         # (TN, 256)  (144 + pad)
    h = conv_pool(h, m3_ref, b3_ref)                         # (TN, 128)  (80 + pad)
    # TODO(synk): nn.Dropout(p=0.1) is identity in eval mode; training-mode
    #             stochastic masking is intentionally not implemented.
    # conv4 folded into the final Conv1d(16->32, k=4); the energy column is the
    # same scalar for every channel, so its weight is folded into mfe (1, 32).
    out_ref[...] = (mxu(h.astype(jnp.bfloat16), mf_ref[...])
                    + en * mfe_ref[...] + bf_ref[...])


# --------------------------- host-side operand builders -----------------------
def _conv_matrix(w, b, l_in, stride):
    """Dense matrix so that flat_out = flat_in @ M + bias reproduces Conv1d."""
    c_out, c_in, k = w.shape
    l_out = (l_in - k) // stride + 1
    m = np.zeros((c_in * l_in, c_out * l_out), np.float32)
    for co in range(c_out):
        for ci in range(c_in):
            for t in range(l_out):
                s = ci * l_in + stride * t
                m[s:s + k, co * l_out + t] = w[co, ci, :]
    return m, np.repeat(np.asarray(b, np.float32), l_out), l_out


def _pool_select(c, l_in, k, stride):
    """k selection matrices; max over them == MaxPool1d(k, stride)."""
    l_out = (l_in - k) // stride + 1
    sel = np.zeros((k, c * l_in, c * l_out), np.float32)
    for kk in range(k):
        for ci in range(c):
            for t in range(l_out):
                sel[kk, ci * l_in + stride * t + kk, ci * l_out + t] = 1.0
    return sel, l_out


def _fused_conv_pool(w, b, l_in, stride, pool_k, pool_s, in_width, out_pad_to):
    """Conv1d+MaxPool1d folded into pool_k dense (in_width, out_width) matrices
    plus one shift-invariant bias row."""
    c_out, c_in, _ = w.shape
    m, _, l_c = _conv_matrix(w, b, l_in, stride)
    sel, l_p = _pool_select(c_out, l_c, pool_k, pool_s)
    mats = np.stack([m @ sel[j] for j in range(pool_k)], 0)   # (k, c_in*l_in, c_out*l_p)
    bias = np.repeat(np.asarray(b, np.float32), l_p)          # per-channel bias
    # pad input rows up to the (possibly lane-padded) previous-stage width
    mats = np.pad(mats, ((0, 0), (0, in_width - c_in * l_in), (0, 0)))
    # pad output columns to a lane-friendly width (zeros -> padded lanes stay 0)
    out_w = c_out * l_p
    if out_pad_to:
        pad = (-out_w) % out_pad_to
        mats = np.pad(mats, ((0, 0), (0, 0), (0, pad)))
        bias = np.pad(bias, (0, pad))
        out_w += pad
    return mats, bias[None, :], l_p, out_w


def _final_matrices(w4, b4, wf, bf, l_in, in_width):
    """conv4 folded into the final Conv1d; energy weight folded into (1, 32)."""
    m4, bias4, _ = _conv_matrix(w4, b4, l_in, 1)              # (80, 48), (48,)
    c_out, c_in, k = wf.shape                                 # (32, 16, 4)
    mf = np.zeros((c_in * (k - 1), c_out), np.float32)
    for co in range(c_out):
        for ci in range(c_in):
            mf[ci * (k - 1):(ci + 1) * (k - 1), co] = wf[co, ci, :k - 1]
    mfe = wf[:, :, k - 1].sum(axis=1)[None, :]                # (1, 32)
    m_fold = m4 @ mf                                          # (80, 32)
    b_fold = bias4 @ mf + bf                                  # (32,)
    m_fold = np.pad(m_fold, ((0, in_width - m_fold.shape[0]), (0, 0)))
    return m_fold, mfe, b_fold[None, :]


def build_kernel_operands(p):
    f32 = lambda a: np.asarray(a, np.float32)
    m1, b1, l, w1 = _fused_conv_pool(f32(p['w1']), f32(p['b1']), L_IN, 3, 3, 2,
                                     in_width=L_IN, out_pad_to=128)    # 320 -> 384
    m2, b2, l, w2 = _fused_conv_pool(f32(p['w2']), f32(p['b2']), l, 2, 3, 2,
                                     in_width=w1, out_pad_to=128)      # 144 -> 256
    m3, b3, l, w3 = _fused_conv_pool(f32(p['w3']), f32(p['b3']), l, 1, 3, 1,
                                     in_width=w2, out_pad_to=128)      # 80 -> 128
    mf, mfe, bf = _final_matrices(f32(p['w4']), f32(p['b4']),
                                  f32(p['wf']), f32(p['bf']), l, in_width=w3)

    # eval-mode BatchNorm1d(15) on the energy scalar -> per-channel affine.
    scale = f32(p['bn_g']) / np.sqrt(f32(p['bn_rv']) + BN_EPS)
    shift = f32(p['bn_b']) - f32(p['bn_rm']) * scale

    bf16 = lambda a: jnp.asarray(a, jnp.bfloat16)
    jf32 = lambda a: jnp.asarray(a, jnp.float32)
    return dict(
        ln_g=jf32(f32(p['ln_g'])[None, :]), ln_b=jf32(f32(p['ln_b'])[None, :]),
        bn_scale=jf32(scale), bn_shift=jf32(shift),
        m1=bf16(m1), b1=jf32(b1), m2=bf16(m2), b2=jf32(b2),
        m3=bf16(m3), b3=jf32(b3), mf=bf16(mf), mfe=jf32(mfe), bf=jf32(bf))


# ------------------------------ forward factory --------------------------------
def make_cnn_triplet_forward(params, tile_n=256):
    """Build operands once (host), return a jitted forward(x) -> (B, 15, 32)."""
    ops = build_kernel_operands(params)

    @jax.jit
    def _forward(x, ln_g, ln_b, bn_scale, bn_shift,
                 m1, b1, m2, b2, m3, b3, mf, mfe, bf):
        B, F, L = x.shape
        N = B * F
        # Row tile: 256-512 is a good default on v6e/v7x, 128-256 on v5e.
        # Resident weights are < 2 MB bf16 and per-tile live state is ~1.3 MB,
        # so the default scoped VMEM limit is plenty (incl. v7x's 64 MiB VMEM)
        # and no explicit vmem_limit_bytes is needed.
        tn = tile_n if N >= tile_n else ((N + 7) // 8) * 8
        n_pad = ((N + tn - 1) // tn) * tn

        x2d = jnp.pad(x.reshape(N, L).astype(jnp.float32),
                      ((0, n_pad - N), (0, 0)))
        bn_s = jnp.pad(jnp.tile(bn_scale, B)[:, None], ((0, n_pad - N), (0, 0)))
        bn_o = jnp.pad(jnp.tile(bn_shift, B)[:, None], ((0, n_pad - N), (0, 0)))

        def row_spec(width):
            return pl.BlockSpec((tn, width), lambda i: (i, 0))

        def full_spec(a):  # whole array, constant block -> stays VMEM-resident
            nd = a.ndim
            return pl.BlockSpec(a.shape, lambda i: (0,) * nd)

        out = pl.pallas_call(
            _cnn_triplet_kernel,
            out_shape=jax.ShapeDtypeStruct((n_pad, OUT_DIM), jnp.float32),
            grid=(n_pad // tn,),
            in_specs=[row_spec(L_IN),
                      full_spec(ln_g), full_spec(ln_b),
                      row_spec(1), row_spec(1),
                      full_spec(m1), full_spec(b1),
                      full_spec(m2), full_spec(b2),
                      full_spec(m3), full_spec(b3),
                      full_spec(mf), full_spec(mfe), full_spec(bf)],
            out_specs=row_spec(OUT_DIM),
            compiler_params=pltpu.CompilerParams(
                dimension_semantics=("parallel",)),   # megacore sharding
        )(x2d, ln_g, ln_b, bn_s, bn_o, m1, b1, m2, b2, m3, b3, mf, mfe, bf)
        return out[:N].reshape(B, F, OUT_DIM)

    def forward(x):
        return _forward(x, ops['ln_g'], ops['ln_b'], ops['bn_scale'],
                        ops['bn_shift'], ops['m1'], ops['b1'], ops['m2'],
                        ops['b2'], ops['m3'], ops['b3'], ops['mf'],
                        ops['mfe'], ops['bf'])

    return forward


# ---------------------------- deterministic params -----------------------------
def init_params(key):
    def conv_init(k, c_out, c_in, ksz):
        bound = 1.0 / np.sqrt(c_in * ksz)
        kw, kb = jax.random.split(k)
        w = jax.random.uniform(kw, (c_out, c_in, ksz), jnp.float32, -bound, bound)
        b = jax.random.uniform(kb, (c_out,), jnp.float32, -bound, bound)
        return w, b

    keys = jax.random.split(key, 10)
    p = {}
    p['w1'], p['b1'] = conv_init(keys[0], 8, 1, 5)
    p['w2'], p['b2'] = conv_init(keys[1], 16, 8, 3)
    p['w3'], p['b3'] = conv_init(keys[2], 16, 16, 3)
    p['w4'], p['b4'] = conv_init(keys[3], 16, 16, 3)
    p['wf'], p['bf'] = conv_init(keys[4], 32, 16, 4)
    p['ln_g'] = 1.0 + 0.05 * jax.random.normal(keys[5], (L_IN,), jnp.float32)
    p['ln_b'] = 0.05 * jax.random.normal(keys[6], (L_IN,), jnp.float32)
    p['bn_g'] = 1.0 + 0.05 * jax.random.normal(keys[7], (FV,), jnp.float32)
    p['bn_b'] = 0.05 * jax.random.normal(keys[8], (FV,), jnp.float32)
    p['bn_rm'] = 0.1 * jax.random.normal(keys[9], (FV,), jnp.float32)
    p['bn_rv'] = 1.2 * jnp.ones((FV,), jnp.float32)
    return p


# --------------------------- pure-JAX reference check ---------------------------
def _conv1d(x, w, b, stride):
    y = jax.lax.conv_general_dilated(x, w, window_strides=(stride,),
                                     padding='VALID',
                                     dimension_numbers=('NCH', 'OIH', 'NCH'))
    return y + b[None, :, None]


def _maxpool1d(x, k, s):
    return jax.lax.reduce_window(x, -jnp.inf, jax.lax.max,
                                 (1, 1, k), (1, 1, s), 'VALID')


def reference_forward(x, p):
    energy = jnp.sum(x ** 2, axis=-1, keepdims=True)                 # (B,15,1)
    mu = jnp.mean(x, -1, keepdims=True)
    var = jnp.mean((x - mu) ** 2, -1, keepdims=True)
    xn = (x - mu) / jnp.sqrt(var + LN_EPS) * p['ln_g'] + p['ln_b']
    en = ((energy - p['bn_rm'][None, :, None]) /
          jnp.sqrt(p['bn_rv'][None, :, None] + BN_EPS) *
          p['bn_g'][None, :, None] + p['bn_b'][None, :, None])       # (B,15,1)
    outs = []
    for fv in range(x.shape[1]):
        h = xn[:, fv, :][:, None, :]
        h = _conv1d(h, p['w1'], p['b1'], 3); h = _maxpool1d(h, 3, 2)
        h = _conv1d(h, p['w2'], p['b2'], 2); h = _maxpool1d(h, 3, 2)
        h = _conv1d(h, p['w3'], p['b3'], 1); h = _maxpool1d(h, 3, 1)
        h = _conv1d(h, p['w4'], p['b4'], 1)                          # (B,16,3)
        e16 = jnp.tile(en[:, fv, :], (1, 16))[:, :, None]            # (B,16,1)
        h = jnp.concatenate([h, e16], axis=-1)                       # (B,16,4)
        h = _conv1d(h, p['wf'], p['bf'], 1)                          # (B,32,1)
        outs.append(jnp.transpose(h, (0, 2, 1)))                     # (B,1,32)
    return jnp.concatenate(outs, axis=1)                             # (B,15,32)


# ------------------------------------ main --------------------------------------
if __name__ == "__main__":
    key = jax.random.PRNGKey(0)
    kp, kx = jax.random.split(key)
    params = init_params(kp)

    B = 2
    x = jax.random.normal(kx, (B, FV, L_IN), jnp.float32)

    forward = make_cnn_triplet_forward(params)   # operands built once here
    out = forward(x)
    out = jax.block_until_ready(out)
    assert out.shape == (B, FV, OUT_DIM), out.shape

    ref = reference_forward(x, params)
    np.testing.assert_allclose(np.asarray(out), np.asarray(ref),
                               rtol=2e-2, atol=5e-2)
    print("KERNEL_OK")
</pallas_src>

<mosaic_0001>
module attributes {stable_mosaic.version = 11 : i64} {
  func.func @_cnn_triplet_kernel(%arg0: i32, %arg1: memref<32x245xf32, #tpu.memory_space<vmem>>, %arg2: memref<1x245xf32, #tpu.memory_space<vmem>>, %arg3: memref<1x245xf32, #tpu.memory_space<vmem>>, %arg4: memref<32x1xf32, #tpu.memory_space<vmem>>, %arg5: memref<32x1xf32, #tpu.memory_space<vmem>>, %arg6: memref<3x245x384xbf16, #tpu.memory_space<vmem>>, %arg7: memref<1x384xf32, #tpu.memory_space<vmem>>, %arg8: memref<3x384x256xbf16, #tpu.memory_space<vmem>>, %arg9: memref<1x256xf32, #tpu.memory_space<vmem>>, %arg10: memref<3x256x128xbf16, #tpu.memory_space<vmem>>, %arg11: memref<1x128xf32, #tpu.memory_space<vmem>>, %arg12: memref<128x32xbf16, #tpu.memory_space<vmem>>, %arg13: memref<1x32xf32, #tpu.memory_space<vmem>>, %arg14: memref<1x32xf32, #tpu.memory_space<vmem>>, %arg15: memref<32x32xf32, #tpu.memory_space<vmem>>) attributes {dimension_semantics = [#tpu.dimension_semantics<parallel>], iteration_bounds = array<i64: 1>, scalar_prefetch = 0 : i64, scratch_operands = 0 : i64, tpu.core_type = #tpu.core_type<tc>, window_params = [{transform_indices = @transform_0, window_bounds = array<i64: 32, 245>}, {pipeline_mode = #tpu.pipeline_mode<synchronous>, transform_indices = @transform_1, window_bounds = array<i64: 1, 245>}, {pipeline_mode = #tpu.pipeline_mode<synchronous>, transform_indices = @transform_2, window_bounds = array<i64: 1, 245>}, {transform_indices = @transform_3, window_bounds = array<i64: 32, 1>}, {transform_indices = @transform_4, window_bounds = array<i64: 32, 1>}, {pipeline_mode = #tpu.pipeline_mode<synchronous>, transform_indices = @transform_5, window_bounds = array<i64: 3, 245, 384>}, {pipeline_mode = #tpu.pipeline_mode<synchronous>, transform_indices = @transform_6, window_bounds = array<i64: 1, 384>}, {pipeline_mode = #tpu.pipeline_mode<synchronous>, transform_indices = @transform_7, window_bounds = array<i64: 3, 384, 256>}, {pipeline_mode = #tpu.pipeline_mode<synchronous>, transform_indices = @transform_8, window_bounds = array<i64: 1, 256>}, {pipeline_mode = #tpu.pipeline_mode<synchronous>, transform_indices = @transform_9, window_bounds = array<i64: 3, 256, 128>}, {pipeline_mode = #tpu.pipeline_mode<synchronous>, transform_indices = @transform_10, window_bounds = array<i64: 1, 128>}, {pipeline_mode = #tpu.pipeline_mode<synchronous>, transform_indices = @transform_11, window_bounds = array<i64: 128, 32>}, {pipeline_mode = #tpu.pipeline_mode<synchronous>, transform_indices = @transform_12, window_bounds = array<i64: 1, 32>}, {pipeline_mode = #tpu.pipeline_mode<synchronous>, transform_indices = @transform_13, window_bounds = array<i64: 1, 32>}, {transform_indices = @transform_14, window_bounds = array<i64: 32, 32>}]} {
    %c0 = arith.constant 0 : index
    %c0_0 = arith.constant 0 : index
    %0 = vector.load %arg1[%c0, %c0_0] : memref<32x245xf32, #tpu.memory_space<vmem>>, vector<32x245xf32>
    %1 = arith.mulf %0, %0 : vector<32x245xf32>
    %cst = arith.constant dense<0.000000e+00> : vector<32xf32>
    %2 = vector.multi_reduction <add>, %1, %cst [1] : vector<32x245xf32> to vector<32xf32>
    %3 = vector.shape_cast %2 : vector<32xf32> to vector<32x1xf32>
    %c0_1 = arith.constant 0 : index
    %c0_2 = arith.constant 0 : index
    %4 = vector.load %arg4[%c0_1, %c0_2] : memref<32x1xf32, #tpu.memory_space<vmem>>, vector<32x1xf32>
    %5 = arith.mulf %3, %4 : vector<32x1xf32>
    %c0_3 = arith.constant 0 : index
    %c0_4 = arith.constant 0 : index
    %6 = vector.load %arg5[%c0_3, %c0_4] : memref<32x1xf32, #tpu.memory_space<vmem>>, vector<32x1xf32>
    %7 = arith.addf %5, %6 : vector<32x1xf32>
    %cst_5 = arith.constant dense<0.000000e+00> : vector<32xf32>
    %8 = vector.multi_reduction <add>, %0, %cst_5 [1] : vector<32x245xf32> to vector<32xf32>
    %9 = vector.shape_cast %8 : vector<32xf32> to vector<32x1xf32>
    %cst_6 = arith.constant 2.450000e+02 : f32
    %10 = vector.broadcast %cst_6 : f32 to vector<32x1xf32>
    %11 = arith.divf %9, %10 : vector<32x1xf32>
    %cst_7 = arith.constant 0.00408163248 : f32
    %12 = vector.broadcast %cst_7 : f32 to vector<32x1xf32>
    %13 = arith.mulf %3, %12 : vector<32x1xf32>
    %14 = arith.mulf %11, %11 : vector<32x1xf32>
    %15 = arith.subf %13, %14 : vector<32x1xf32>
    %16 = vector.broadcast %11 : vector<32x1xf32> to vector<32x245xf32>
    %17 = arith.subf %0, %16 : vector<32x245xf32>
    %cst_8 = arith.constant 9.99999974E-6 : f32
    %18 = vector.broadcast %cst_8 : f32 to vector<32x1xf32>
    %19 = arith.addf %15, %18 : vector<32x1xf32>
    %20 = math.rsqrt %19 : vector<32x1xf32>
    %21 = vector.broadcast %20 : vector<32x1xf32> to vector<32x245xf32>
    %22 = arith.mulf %17, %21 : vector<32x245xf32>
    %c0_9 = arith.constant 0 : index
    %c0_10 = arith.constant 0 : index
    %23 = vector.load %arg2[%c0_9, %c0_10] : memref<1x245xf32, #tpu.memory_space<vmem>>, vector<1x245xf32>
    %24 = vector.broadcast %23 : vector<1x245xf32> to vector<32x245xf32>
    %25 = arith.mulf %22, %24 : vector<32x245xf32>
    %c0_11 = arith.constant 0 : index
    %c0_12 = arith.constant 0 : index
    %26 = vector.load %arg3[%c0_11, %c0_12] : memref<1x245xf32, #tpu.memory_space<vmem>>, vector<1x245xf32>
    %27 = vector.broadcast %26 : vector<1x245xf32> to vector<32x245xf32>
    %28 = arith.addf %25, %27 : vector<32x245xf32>
    %29 = arith.truncf %28 : vector<32x245xf32> to vector<32x245xbf16>
    %c0_13 = arith.constant 0 : index
    %c0_14 = arith.constant 0 : index
    %c0_15 = arith.constant 0 : index
    %30 = vector.load %arg6[%c0_13, %c0_14, %c0_15] : memref<3x245x384xbf16, #tpu.memory_space<vmem>>, vector<1x245x384xbf16>
    %31 = vector.shape_cast %30 : vector<1x245x384xbf16> to vector<245x384xbf16>
    %cst_16 = arith.constant dense<0.000000e+00> : vector<32x384xf32>
    %32 = tpu.matmul %29, %31, %cst_16 {dimension_numbers = #tpu.dot_dimension_numbers<[1], [0], [0], [1], [0, 0, 1, 1], [], []>} : vector<32x245xbf16>, vector<245x384xbf16>, vector<32x384xf32> -> vector<32x384xf32>
    %c1 = arith.constant 1 : index
    %c0_17 = arith.constant 0 : index
    %c0_18 = arith.constant 0 : index
    %33 = vector.load %arg6[%c1, %c0_17, %c0_18] : memref<3x245x384xbf16, #tpu.memory_space<vmem>>, vector<1x245x384xbf16>
    %34 = vector.shape_cast %33 : vector<1x245x384xbf16> to vector<245x384xbf16>
    %cst_19 = arith.constant dense<0.000000e+00> : vector<32x384xf32>
    %35 = tpu.matmul %29, %34, %cst_19 {dimension_numbers = #tpu.dot_dimension_numbers<[1], [0], [0], [1], [0, 0, 1, 1], [], []>} : vector<32x245xbf16>, vector<245x384xbf16>, vector<32x384xf32> -> vector<32x384xf32>
    %36 = arith.maximumf %32, %35 : vector<32x384xf32>
    %c2 = arith.constant 2 : index
    %c0_20 = arith.constant 0 : index
    %c0_21 = arith.constant 0 : index
    %37 = vector.load %arg6[%c2, %c0_20, %c0_21] : memref<3x245x384xbf16, #tpu.memory_space<vmem>>, vector<1x245x384xbf16>
    %38 = vector.shape_cast %37 : vector<1x245x384xbf16> to vector<245x384xbf16>
    %cst_22 = arith.constant dense<0.000000e+00> : vector<32x384xf32>
    %39 = tpu.matmul %29, %38, %cst_22 {dimension_numbers = #tpu.dot_dimension_numbers<[1], [0], [0], [1], [0, 0, 1, 1], [], []>} : vector<32x245xbf16>, vector<245x384xbf16>, vector<32x384xf32> -> vector<32x384xf32>
    %40 = arith.maximumf %36, %39 : vector<32x384xf32>
    %c0_23 = arith.constant 0 : index
    %c0_24 = arith.constant 0 : index
    %41 = vector.load %arg7[%c0_23, %c0_24] : memref<1x384xf32, #tpu.memory_space<vmem>>, vector<1x384xf32>
    %42 = vector.broadcast %41 : vector<1x384xf32> to vector<32x384xf32>
    %43 = arith.addf %40, %42 : vector<32x384xf32>
    %44 = arith.truncf %43 : vector<32x384xf32> to vector<32x384xbf16>
    %c0_25 = arith.constant 0 : index
    %c0_26 = arith.constant 0 : index
    %c0_27 = arith.constant 0 : index
    %45 = vector.load %arg8[%c0_25, %c0_26, %c0_27] : memref<3x384x256xbf16, #tpu.memory_space<vmem>>, vector<1x384x256xbf16>
    %46 = vector.shape_cast %45 : vector<1x384x256xbf16> to vector<384x256xbf16>
    %cst_28 = arith.constant dense<0.000000e+00> : vector<32x256xf32>
    %47 = tpu.matmul %44, %46, %cst_28 {dimension_numbers = #tpu.dot_dimension_numbers<[1], [0], [0], [1], [0, 0, 1, 1], [], []>} : vector<32x384xbf16>, vector<384x256xbf16>, vector<32x256xf32> -> vector<32x256xf32>
    %c1_29 = arith.constant 1 : index
    %c0_30 = arith.constant 0 : index
    %c0_31 = arith.constant 0 : index
    %48 = vector.load %arg8[%c1_29, %c0_30, %c0_31] : memref<3x384x256xbf16, #tpu.memory_space<vmem>>, vector<1x384x256xbf16>
    %49 = vector.shape_cast %48 : vector<1x384x256xbf16> to vector<384x256xbf16>
    %cst_32 = arith.constant dense<0.000000e+00> : vector<32x256xf32>
    %50 = tpu.matmul %44, %49, %cst_32 {dimension_numbers = #tpu.dot_dimension_numbers<[1], [0], [0], [1], [0, 0, 1, 1], [], []>} : vector<32x384xbf16>, vector<384x256xbf16>, vector<32x256xf32> -> vector<32x256xf32>
    %51 = arith.maximumf %47, %50 : vector<32x256xf32>
    %c2_33 = arith.constant 2 : index
    %c0_34 = arith.constant 0 : index
    %c0_35 = arith.constant 0 : index
    %52 = vector.load %arg8[%c2_33, %c0_34, %c0_35] : memref<3x384x256xbf16, #tpu.memory_space<vmem>>, vector<1x384x256xbf16>
    %53 = vector.shape_cast %52 : vector<1x384x256xbf16> to vector<384x256xbf16>
    %cst_36 = arith.constant dense<0.000000e+00> : vector<32x256xf32>
    %54 = tpu.matmul %44, %53, %cst_36 {dimension_numbers = #tpu.dot_dimension_numbers<[1], [0], [0], [1], [0, 0, 1, 1], [], []>} : vector<32x384xbf16>, vector<384x256xbf16>, vector<32x256xf32> -> vector<32x256xf32>
    %55 = arith.maximumf %51, %54 : vector<32x256xf32>
    %c0_37 = arith.constant 0 : index
    %c0_38 = arith.constant 0 : index
    %56 = vector.load %arg9[%c0_37, %c0_38] : memref<1x256xf32, #tpu.memory_space<vmem>>, vector<1x256xf32>
    %57 = vector.broadcast %56 : vector<1x256xf32> to vector<32x256xf32>
    %58 = arith.addf %55, %57 : vector<32x256xf32>
    %59 = arith.truncf %58 : vector<32x256xf32> to vector<32x256xbf16>
    %c0_39 = arith.constant 0 : index
    %c0_40 = arith.constant 0 : index
    %c0_41 = arith.constant 0 : index
    %60 = vector.load %arg10[%c0_39, %c0_40, %c0_41] : memref<3x256x128xbf16, #tpu.memory_space<vmem>>, vector<1x256x128xbf16>
    %61 = vector.shape_cast %60 : vector<1x256x128xbf16> to vector<256x128xbf16>
    %cst_42 = arith.constant dense<0.000000e+00> : vector<32x128xf32>
    %62 = tpu.matmul %59, %61, %cst_42 {dimension_numbers = #tpu.dot_dimension_numbers<[1], [0], [0], [1], [0, 0, 1, 1], [], []>} : vector<32x256xbf16>, vector<256x128xbf16>, vector<32x128xf32> -> vector<32x128xf32>
    %c1_43 = arith.constant 1 : index
    %c0_44 = arith.constant 0 : index
    %c0_45 = arith.constant 0 : index
    %63 = vector.load %arg10[%c1_43, %c0_44, %c0_45] : memref<3x256x128xbf16, #tpu.memory_space<vmem>>, vector<1x256x128xbf16>
    %64 = vector.shape_cast %63 : vector<1x256x128xbf16> to vector<256x128xbf16>
    %cst_46 = arith.constant dense<0.000000e+00> : vector<32x128xf32>
    %65 = tpu.matmul %59, %64, %cst_46 {dimension_numbers = #tpu.dot_dimension_numbers<[1], [0], [0], [1], [0, 0, 1, 1], [], []>} : vector<32x256xbf16>, vector<256x128xbf16>, vector<32x128xf32> -> vector<32x128xf32>
    %66 = arith.maximumf %62, %65 : vector<32x128xf32>
    %c2_47 = arith.constant 2 : index
    %c0_48 = arith.constant 0 : index
    %c0_49 = arith.constant 0 : index
    %67 = vector.load %arg10[%c2_47, %c0_48, %c0_49] : memref<3x256x128xbf16, #tpu.memory_space<vmem>>, vector<1x256x128xbf16>
    %68 = vector.shape_cast %67 : vector<1x256x128xbf16> to vector<256x128xbf16>
    %cst_50 = arith.constant dense<0.000000e+00> : vector<32x128xf32>
    %69 = tpu.matmul %59, %68, %cst_50 {dimension_numbers = #tpu.dot_dimension_numbers<[1], [0], [0], [1], [0, 0, 1, 1], [], []>} : vector<32x256xbf16>, vector<256x128xbf16>, vector<32x128xf32> -> vector<32x128xf32>
    %70 = arith.maximumf %66, %69 : vector<32x128xf32>
    %c0_51 = arith.constant 0 : index
    %c0_52 = arith.constant 0 : index
    %71 = vector.load %arg11[%c0_51, %c0_52] : memref<1x128xf32, #tpu.memory_space<vmem>>, vector<1x128xf32>
    %72 = vector.broadcast %71 : vector<1x128xf32> to vector<32x128xf32>
    %73 = arith.addf %70, %72 : vector<32x128xf32>
    %74 = arith.truncf %73 : vector<32x128xf32> to vector<32x128xbf16>
    %c0_53 = arith.constant 0 : index
    %c0_54 = arith.constant 0 : index
    %75 = vector.load %arg12[%c0_53, %c0_54] : memref<128x32xbf16, #tpu.memory_space<vmem>>, vector<128x32xbf16>
    %cst_55 = arith.constant dense<0.000000e+00> : vector<32x32xf32>
    %76 = tpu.matmul %74, %75, %cst_55 {dimension_numbers = #tpu.dot_dimension_numbers<[1], [0], [0], [1], [0, 0, 1, 1], [], []>} : vector<32x128xbf16>, vector<128x32xbf16>, vector<32x32xf32> -> vector<32x32xf32>
    %c0_56 = arith.constant 0 : index
    %c0_57 = arith.constant 0 : index
    %77 = vector.load %arg13[%c0_56, %c0_57] : memref<1x32xf32, #tpu.memory_space<vmem>>, vector<1x32xf32>
    %78 = vector.broadcast %7 : vector<32x1xf32> to vector<32x32xf32>
    %79 = vector.broadcast %77 : vector<1x32xf32> to vector<32x32xf32>
    %80 = arith.mulf %78, %79 : vector<32x32xf32>
    %81 = arith.addf %76, %80 : vector<32x32xf32>
    %c0_58 = arith.constant 0 : index
    %c0_59 = arith.constant 0 : index
    %82 = vector.load %arg14[%c0_58, %c0_59] : memref<1x32xf32, #tpu.memory_space<vmem>>, vector<1x32xf32>
    %83 = vector.broadcast %82 : vector<1x32xf32> to vector<32x32xf32>
    %84 = arith.addf %81, %83 : vector<32x32xf32>
    %c0_60 = arith.constant 0 : index
    %c0_61 = arith.constant 0 : index
    %85 = vector.load %arg15[%c0_60, %c0_61] : memref<32x32xf32, #tpu.memory_space<vmem>>, vector<32x32xf32>
    tpu.vector_store %arg15[%c0_60, %c0_61], %84 {strides = array<i32>} : memref<32x32xf32, #tpu.memory_space<vmem>>, vector<32x32xf32>,
    return
  }
  func.func @transform_0(%arg0: i32) -> (i32, i32) {
    %c0_i32 = arith.constant 0 : i32
    %c0_i32_0 = arith.constant 0 : i32
    return %arg0, %c0_i32 : i32, i32
  }
  func.func @transform_1(%arg0: i32) -> (i32, i32) {
    %c0_i32 = arith.constant 0 : i32
    %c0_i32_0 = arith.constant 0 : i32
    %c0_i32_1 = arith.constant 0 : i32
    return %c0_i32, %c0_i32_0 : i32, i32
  }
  func.func @transform_2(%arg0: i32) -> (i32, i32) {
    %c0_i32 = arith.constant 0 : i32
    %c0_i32_0 = arith.constant 0 : i32
    %c0_i32_1 = arith.constant 0 : i32
    return %c0_i32, %c0_i32_0 : i32, i32
  }
  func.func @transform_3(%arg0: i32) -> (i32, i32) {
    %c0_i32 = arith.constant 0 : i32
    %c0_i32_0 = arith.constant 0 : i32
    return %arg0, %c0_i32 : i32, i32
  }
  func.func @transform_4(%arg0: i32) -> (i32, i32) {
    %c0_i32 = arith.constant 0 : i32
    %c0_i32_0 = arith.constant 0 : i32
    return %arg0, %c0_i32 : i32, i32
  }
  func.func @transform_5(%arg0: i32) -> (i32, i32, i32) {
    %c0_i32 = arith.constant 0 : i32
    %c0_i32_0 = arith.constant 0 : i32
    %c0_i32_1 = arith.constant 0 : i32
    %c0_i32_2 = arith.constant 0 : i32
    return %c0_i32, %c0_i32_0, %c0_i32_1 : i32, i32, i32
  }
  func.func @transform_6(%arg0: i32) -> (i32, i32) {
    %c0_i32 = arith.constant 0 : i32
    %c0_i32_0 = arith.constant 0 : i32
    %c0_i32_1 = arith.constant 0 : i32
    return %c0_i32, %c0_i32_0 : i32, i32
  }
  func.func @transform_7(%arg0: i32) -> (i32, i32, i32) {
    %c0_i32 = arith.constant 0 : i32
    %c0_i32_0 = arith.constant 0 : i32
    %c0_i32_1 = arith.constant 0 : i32
    %c0_i32_2 = arith.constant 0 : i32
    return %c0_i32, %c0_i32_0, %c0_i32_1 : i32, i32, i32
  }
  func.func @transform_8(%arg0: i32) -> (i32, i32) {
    %c0_i32 = arith.constant 0 : i32
    %c0_i32_0 = arith.constant 0 : i32
    %c0_i32_1 = arith.constant 0 : i32
    return %c0_i32, %c0_i32_0 : i32, i32
  }
  func.func @transform_9(%arg0: i32) -> (i32, i32, i32) {
    %c0_i32 = arith.constant 0 : i32
    %c0_i32_0 = arith.constant 0 : i32
    %c0_i32_1 = arith.constant 0 : i32
    %c0_i32_2 = arith.constant 0 : i32
    return %c0_i32, %c0_i32_0, %c0_i32_1 : i32, i32, i32
  }
  func.func @transform_10(%arg0: i32) -> (i32, i32) {
    %c0_i32 = arith.constant 0 : i32
    %c0_i32_0 = arith.constant 0 : i32
    %c0_i32_1 = arith.constant 0 : i32
    return %c0_i32, %c0_i32_0 : i32, i32
  }
  func.func @transform_11(%arg0: i32) -> (i32, i32) {
    %c0_i32 = arith.constant 0 : i32
    %c0_i32_0 = arith.constant 0 : i32
    %c0_i32_1 = arith.constant 0 : i32
    return %c0_i32, %c0_i32_0 : i32, i32
  }
  func.func @transform_12(%arg0: i32) -> (i32, i32) {
    %c0_i32 = arith.constant 0 : i32
    %c0_i32_0 = arith.constant 0 : i32
    %c0_i32_1 = arith.constant 0 : i32
    return %c0_i32, %c0_i32_0 : i32, i32
  }
  func.func @transform_13(%arg0: i32) -> (i32, i32) {
    %c0_i32 = arith.constant 0 : i32
    %c0_i32_0 = arith.constant 0 : i32
    %c0_i32_1 = arith.constant 0 : i32
    return %c0_i32, %c0_i32_0 : i32, i32
  }
  func.func @transform_14(%arg0: i32) -> (i32, i32) {
    %c0_i32 = arith.constant 0 : i32
    %c0_i32_0 = arith.constant 0 : i32
    return %arg0, %c0_i32 : i32, i32
  }
}

</mosaic_0001>

<llo_original>
// kernel: tile.1
$region0: #{tile.1}
  %s0 = inlined_call_operand.vmem [shape: f32[2,15], index: 0, kind: input, shape index: {}]
  %s1 = inlined_call_operand.vmem [shape: f32[30,1], index: 1, kind: output, shape index: {}]
  $region1: #{tile.1} parent=0
    #allocation0 [shape = 'u8[4096]{0}', space=vmem, size = 0x1000, scoped, tag = 'scoped mem for input reshape']
    %s3 = sshll.u32 1, 2
    %s4 = ssub.s32 %s3, 1
    %v5 = vld [vmem:[%s0] sm:%s4]
    %6 = vst [vmem:[#allocation0] sm:%s4] %v5
    %v7 = vld [vmem:[#allocation0] sm:$0x3]
    %vm8 = vcmask 7168
    %9 = vst.msk [vmem:[%s1] ss:$15 sm:$0x3] %vm8, %v7
    %v10 = vld [vmem:[#allocation0] sm:$0x3]
    %11 = vrot.lane.b32.xlu0 %v10, 127
    %v12 = vpop.permute.xlu0 %11
    %vm13 = vcmask 7168
    %s14 = scalar_lea.vmem %s1, 1
    %15 = vst.msk [vmem:[%s14] ss:$15 sm:$0x3] %vm13, %v12
    %v16 = vld [vmem:[#allocation0] sm:$0x3]
    %17 = vrot.lane.b32.xlu0 %v16, 126
    %v18 = vpop.permute.xlu0 %17
    %vm19 = vcmask 7168
    %s20 = scalar_lea.vmem %s1, 2
    %21 = vst.msk [vmem:[%s20] ss:$15 sm:$0x3] %vm19, %v18
    %v22 = vld [vmem:[#allocation0] sm:$0x3]
    %23 = vrot.lane.b32.xlu0 %v22, 125
    %v24 = vpop.permute.xlu0 %23
    %vm25 = vcmask 7168
    %s26 = scalar_lea.vmem %s1, 3
    %27 = vst.msk [vmem:[%s26] ss:$15 sm:$0x3] %vm25, %v24
    %v28 = vld [vmem:[#allocation0] sm:$0x3]
    %29 = vrot.lane.b32.xlu0 %v28, 124
    %v30 = vpop.permute.xlu0 %29
    %vm31 = vcmask 7168
    %s32 = scalar_lea.vmem %s1, 4
    %33 = vst.msk [vmem:[%s32] ss:$15 sm:$0x3] %vm31, %v30
    %v34 = vld [vmem:[#allocation0] sm:$0x3]
    %35 = vrot.lane.b32.xlu0 %v34, 123
    %v36 = vpop.permute.xlu0 %35
    %vm37 = vcmask 7168
    %s38 = scalar_lea.vmem %s1, 5
    %39 = vst.msk [vmem:[%s38] ss:$15 sm:$0x3] %vm37, %v36
    %v40 = vld [vmem:[#allocation0] sm:$0x3]
    %41 = vrot.lane.b32.xlu0 %v40, 122
    %v42 = vpop.permute.xlu0 %41
    %vm43 = vcmask 7168
    %s44 = scalar_lea.vmem %s1, 6
    %45 = vst.msk [vmem:[%s44] ss:$15 sm:$0x3] %vm43, %v42
    %v46 = vld [vmem:[#allocation0] sm:$0x3]
    %47 = vrot.lane.b32.xlu0 %v46, 121
    %v48 = vpop.permute.xlu0 %47
    %vm49 = vcmask 7168
    %s50 = scalar_lea.vmem %s1, 7
    %51 = vst.msk [vmem:[%s50] ss:$15 sm:$0x3] %vm49, %v48
    %v52 = vld [vmem:[#allocation0] sm:$0x3]
    %53 = vrot.lane.b32.xlu0 %v52, 120
    %v54 = vpop.permute.xlu0 %53
    %vm55 = vcmask 7168
    %s56 = scalar_lea.vmem %s1, 8
    %57 = vst.msk [vmem:[%s56] ss:$15 sm:$0x3] %vm55, %v54
    %v58 = vld [vmem:[#allocation0] sm:$0x3]
    %59 = vrot.lane.b32.xlu0 %v58, 119
    %v60 = vpop.permute.xlu0 %59
    %vm61 = vcmask 7168
    %s62 = scalar_lea.vmem %s1, 9
    %63 = vst.msk [vmem:[%s62] ss:$15 sm:$0x3] %vm61, %v60
    %v64 = vld [vmem:[#allocation0] sm:$0x3]
    %65 = vrot.lane.b32.xlu0 %v64, 118
    %v66 = vpop.permute.xlu0 %65
    %vm67 = vcmask 7168
    %s68 = scalar_lea.vmem %s1, 10
    %69 = vst.msk [vmem:[%s68] ss:$15 sm:$0x3] %vm67, %v66
    %v70 = vld [vmem:[#allocation0] sm:$0x3]
    %71 = vrot.lane.b32.xlu0 %v70, 117
    %v72 = vpop.permute.xlu0 %71
    %vm73 = vcmask 7168
    %s74 = scalar_lea.vmem %s1, 11
    %75 = vst.msk [vmem:[%s74] ss:$15 sm:$0x3] %vm73, %v72
    %v76 = vld [vmem:[#allocation0] sm:$0x3]
    %77 = vrot.lane.b32.xlu0 %v76, 116
    %v78 = vpop.permute.xlu0 %77
    %vm79 = vcmask 7168
    %s80 = scalar_lea.vmem %s1, 12
    %81 = vst.msk [vmem:[%s80] ss:$15 sm:$0x3] %vm79, %v78
    %v82 = vld [vmem:[#allocation0] sm:$0x3]
    %83 = vrot.lane.b32.xlu0 %v82, 115
    %v84 = vpop.permute.xlu0 %83
    %vm85 = vcmask 7168
    %s86 = scalar_lea.vmem %s1, 13
    %87 = vst.msk [vmem:[%s86] ss:$15 sm:$0x3] %vm85, %v84
    %v88 = vld [vmem:[#allocation0] sm:$0x3]
    %89 = vrot.lane.b32.xlu0 %v88, 114
    %v90 = vpop.permute.xlu0 %89
    %vm91 = vcmask 7168
    %s92 = scalar_lea.vmem %s1, 14
    %93 = vst.msk [vmem:[%s92] ss:$15 sm:$0x3] %vm91, %v90

// kernel: tile.13
$region0: #{tile.13}
  #allocation2 [shape = 's32[1]{0}', space=sflag, size = 0x4, scoped, tag = 'scoped memory for tile.13']
  %s0 = inlined_call_operand.hbm [shape: f32[15], index: 0, kind: input, shape index: {}]
  %s1 = inlined_call_operand.vmem [shape: f32[2,15], index: 1, kind: output, shape index: {}]
  $region1: #{tile.13} parent=0
    #allocation0 [shape = 'u8[512]{0}', space=vmem, size = 0x400, scoped, tag = 'operand span for operand 0']
    #allocation1 [shape = 's32[1]{0}', space=sflag, size = 0x4, scoped, tag = 'scoped memory for tile.13']
    %2 = vsyncpa [#allocation1], 0
    // Predicated region
    $region2: #{tile.13} parent=1 // pred_check
      _
    $region3: #{tile.13} parent=1 // pred_check_branch
      %4 = sbr.rel (0) target = $region5
    $region4: #{tile.13} parent=1 // pred_region
      %s6 = ssub.s32 16, 16
      %7 = vsyncadd [#allocation1], %s6
      %s9 = sshll.u32 [#allocation0], 4
      %s10 = int_to_ptr.vmem [resolvable:$true] %s9
      %12 = dma.hbm_to_vmem [thread:$0]  %s0, 16, %s10, [#allocation1]
    $region5: #{tile.13} parent=1 // pred_fallthru
      _
    // Predicated region
    $region6: #{tile.13} parent=1 // pred_check
      _
    $region7: #{tile.13} parent=1 // pred_check_branch
      %14 = sbr.rel (0) target = $region9
    $region8: #{tile.13} parent=1 // pred_region
      %15 = dma.done [#allocation1], 16
    $region9: #{tile.13} parent=1 // pred_fallthru
      _
    %v16 = vld [vmem:[#allocation0] ss:$0 sm:$0xff]
    %17 = vst [vmem:[%s1] sm:$0x3] %v16
    %18 = vsyncpa [#allocation1], 1

// kernel: _forward.1
$region0: #{_forward.1}
  #allocation0 [shape = 'u32[]', space=smem, size = 0x4, offset = 0x4, fixed_abs, tag = 'smem constant byte address 0x4 - core index']
  #allocation1 [shape = 'u32[144,128]{1,0:T(1,128)}', space=vmem, size = 0x12000, scoped, tag = 'internal scratch']
  %s0 = inlined_call_operand.vmem [shape: f32[32,245], index: 0, kind: input, shape index: {}]
  %s1 = inlined_call_operand.vmem [shape: f32[1,245], index: 1, kind: input, shape index: {}]
  %s2 = inlined_call_operand.vmem [shape: f32[1,245], index: 2, kind: input, shape index: {}]
  %s3 = inlined_call_operand.vmem [shape: f32[32,1], index: 3, kind: input, shape index: {}]
  %s4 = inlined_call_operand.vmem [shape: f32[32,1], index: 4, kind: input, shape index: {}]
  %s5 = inlined_call_operand.hbm [shape: bf16[3,245,384], index: 5, kind: input, shape index: {}]
  %s6 = inlined_call_operand.vmem [shape: f32[1,384], index: 6, kind: input, shape index: {}]
  %s7 = inlined_call_operand.hbm [shape: bf16[3,384,256], index: 7, kind: input, shape index: {}]
  %s8 = inlined_call_operand.vmem [shape: f32[1,256], index: 8, kind: input, shape index: {}]
  %s9 = inlined_call_operand.vmem [shape: bf16[3,256,128], index: 9, kind: input, shape index: {}]
  %s10 = inlined_call_operand.vmem [shape: f32[1,128], index: 10, kind: input, shape index: {}]
  %s11 = inlined_call_operand.vmem [shape: bf16[128,32], index: 11, kind: input, shape index: {}]
  %s12 = inlined_call_operand.vmem [shape: f32[1,32], index: 12, kind: input, shape index: {}]
  %s13 = inlined_call_operand.vmem [shape: f32[1,32], index: 13, kind: input, shape index: {}]
  %s14 = inlined_call_operand.vmem [shape: f32[32,32], index: 14, kind: output, shape index: {}]
  %s15 = sld [smem:[#allocation0]]
  $region74: #{_forward.1} parent=0
    _
  %s17 = ssub.s32 1, %s15
  %s18 = scalar_select 0, %s17, %s15
  $region1: #{_forward.1} parent=0
    #allocation2 [shape = 'u8[571392]{0}', space=vmem, size = 0x8b800, scoped, tag = 'input window, operand 5, single buffered']
    #allocation3 [shape = 's32[1]{0}', space=sflag, size = 0x4, scoped, tag = 'scoped memory for _forward.1']
    #allocation4 [shape = 'u8[589824]{0}', space=vmem, size = 0x90000, scoped, tag = 'input window, operand 7, single buffered']
    #allocation5 [shape = 's32[1]{0}', space=sflag, size = 0x4, scoped, tag = 'scoped memory for _forward.1']
    %19 = vsyncpa [#allocation3], 0
    %20 = vsyncpa [#allocation5], 0
    // Predicated region
    $region2: #{_forward.1} parent=1 // pred_check
      _
    $region3: #{_forward.1} parent=1 // pred_check_branch
      %22 = sbr.rel (0) target = $region5
    $region4: #{_forward.1} parent=1 // pred_region
      _
    $region5: #{_forward.1} parent=1 // pred_fallthru
      _
    // Predicated region
    $region6: #{_forward.1} parent=1 // pred_check
      _
    $region7: #{_forward.1} parent=1 // pred_check_branch
      %24 = sbr.rel (0) target = $region9
    $region8: #{_forward.1} parent=1 // pred_region
      _
    $region9: #{_forward.1} parent=1 // pred_fallthru
      _
    // Predicated region
    $region10: #{_forward.1} parent=1 // pred_check
      _
    $region11: #{_forward.1} parent=1 // pred_check_branch
      %26 = sbr.rel (0) target = $region13
    $region12: #{_forward.1} parent=1 // pred_region
      _
    $region13: #{_forward.1} parent=1 // pred_fallthru
      _
    // Predicated region
    $region14: #{_forward.1} parent=1 // pred_check
      _
    $region15: #{_forward.1} parent=1 // pred_check_branch
      %28 = sbr.rel (0) target = $region17
    $region16: #{_forward.1} parent=1 // pred_region
      _
    $region17: #{_forward.1} parent=1 // pred_fallthru
      _
    // Predicated region
    $region18: #{_forward.1} parent=1 // pred_check
      _
    $region19: #{_forward.1} parent=1 // pred_check_branch
      %30 = sbr.rel (0) target = $region21
    $region20: #{_forward.1} parent=1 // pred_region
      _
    $region21: #{_forward.1} parent=1 // pred_fallthru
      _
    // Predicated region
    $region22: #{_forward.1} parent=1 // pred_check
      _
    $region23: #{_forward.1} parent=1 // pred_check_branch
      %32 = sbr.rel (0) target = $region25
    $region24: #{_forward.1} parent=1 // pred_region
      %s34 = ssub.s32 17856, 17856
      %35 = vsyncadd [#allocation3], %s34
      %s36 = sshll.u32 [#allocation2], 4
      %s37 = int_to_ptr.vmem [resolvable:$true] %s36
      %42 = dma.hbm_to_vmem [thread:$0]  %s5, 17856, %s37, [#allocation3], 192, 192, 12
    $region25: #{_forward.1} parent=1 // pred_fallthru
      _
    // Predicated region
    $region26: #{_forward.1} parent=1 // pred_check
      _
    $region27: #{_forward.1} parent=1 // pred_check_branch
      %44 = sbr.rel (0) target = $region29
    $region28: #{_forward.1} parent=1 // pred_region
      _
    $region29: #{_forward.1} parent=1 // pred_fallthru
      _
    // Predicated region
    $region30: #{_forward.1} parent=1 // pred_check
      _
    $region31: #{_forward.1} parent=1 // pred_check_branch
      %46 = sbr.rel (0) target = $region33
    $region32: #{_forward.1} parent=1 // pred_region
      %s48 = ssub.s32 18432, 18432
      %49 = vsyncadd [#allocation5], %s48
      %s50 = sshll.u32 [#allocation4], 4
      %s51 = int_to_ptr.vmem [resolvable:$true] %s50
      %56 = dma.hbm_to_vmem [thread:$0]  %s7, 18432, %s51, [#allocation5], 128, 128, 8
    $region33: #{_forward.1} parent=1 // pred_fallthru
      _
    // Predicated region
    $region34: #{_forward.1} parent=1 // pred_check
      _
    $region35: #{_forward.1} parent=1 // pred_check_branch
      %58 = sbr.rel (0) target = $region37
    $region36: #{_forward.1} parent=1 // pred_region
      _
    $region37: #{_forward.1} parent=1 // pred_fallthru
      _
    // Predicated region
    $region38: #{_forward.1} parent=1 // pred_check
      _
    $region39: #{_forward.1} parent=1 // pred_check_branch
      %60 = sbr.rel (0) target = $region41
    $region40: #{_forward.1} parent=1 // pred_region
      _
    $region41: #{_forward.1} parent=1 // pred_fallthru
      _
    // Predicated region
    $region42: #{_forward.1} parent=1 // pred_check
      _
    $region43: #{_forward.1} parent=1 // pred_check_branch
      %62 = sbr.rel (0) target = $region45
    $region44: #{_forward.1} parent=1 // pred_region
      _
    $region45: #{_forward.1} parent=1 // pred_fallthru
      _
    // Predicated region
    $region46: #{_forward.1} parent=1 // pred_check
      _
    $region47: #{_forward.1} parent=1 // pred_check_branch
      %64 = sbr.rel (0) target = $region49
    $region48: #{_forward.1} parent=1 // pred_region
      _
    $region49: #{_forward.1} parent=1 // pred_fallthru
      _
    // Predicated region
    $region50: #{_forward.1} parent=1 // pred_check
      _
    $region51: #{_forward.1} parent=1 // pred_check_branch
      %66 = sbr.rel (0) target = $region53
    $region52: #{_forward.1} parent=1 // pred_region
      _
    $region53: #{_forward.1} parent=1 // pred_fallthru
      _
    // Predicated region
    $region54: #{_forward.1} parent=1 // pred_check
      _
    $region55: #{_forward.1} parent=1 // pred_check_branch
      %68 = sbr.rel (0) target = $region57
    $region56: #{_forward.1} parent=1 // pred_region
      _
    $region57: #{_forward.1} parent=1 // pred_fallthru
      _
    // Predicated region
    $region58: #{_forward.1} parent=1 // pred_check
      _
    $region59: #{_forward.1} parent=1 // pred_check_branch
      %70 = sbr.rel (0) target = $region61
    $region60: #{_forward.1} parent=1 // pred_region
      %71 = dma.done [#allocation3], 17856
    $region61: #{_forward.1} parent=1 // pred_fallthru
      _
    // Predicated region
    $region62: #{_forward.1} parent=1 // pred_check
      _
    $region63: #{_forward.1} parent=1 // pred_check_branch
      %73 = sbr.rel (0) target = $region65
    $region64: #{_forward.1} parent=1 // pred_region
      %74 = dma.done [#allocation5], 18432
    $region65: #{_forward.1} parent=1 // pred_fallthru
      _
    %v76 = vld [vmem:[%s0] sm:$0xff]
    %v77 = vld [vmem:[%s0 + $0x8] sm:$0xff]
    %v78 = vld [vmem:[%s0 + $0x10] sm:$0xff]
    %v79 = vld [vmem:[%s0 + $0x18] sm:$0xff]
    %v80 = vld [vmem:[%s0 + $0x20] sm:$0xff]
    %v81 = vld [vmem:[%s0 + $0x28] sm:$0xff]
    %v82 = vld [vmem:[%s0 + $0x30] sm:$0xff]
    %v83 = vld [vmem:[%s0 + $0x38] sm:$0xff]
    %v84 = vmul.f32 %v76, %v76
    %v85 = vmul.f32 %v77, %v77
    %v86 = vmul.f32 %v78, %v78
    %v87 = vmul.f32 %v79, %v79
    %v88 = vmul.f32 %v80, %v80
    %v89 = vmul.f32 %v81, %v81
    %v90 = vmul.f32 %v82, %v82
    %v91 = vmul.f32 %v83, %v83
    %vm92 = vcmask 957440
    %v93 = vsel %vm92, %v85, 0.0
    %v94 = vadd.f32 %v84, %v93
    %95 = vadd.xlane.f32.xlu0 %v94
    %v96 = vpop.xlane.xlu0 %95
    %v97 = vsel %vm92, %v87, 0.0
    %v98 = vadd.f32 %v86, %v97
    %99 = vadd.xlane.f32.xlu0 %v98
    %v100 = vpop.xlane.xlu0 %99
    %v101 = vsel %vm92, %v89, 0.0
    %v102 = vadd.f32 %v88, %v101
    %103 = vadd.xlane.f32.xlu0 %v102
    %v104 = vpop.xlane.xlu0 %103
    %v105 = vsel %vm92, %v91, 0.0
    %v106 = vadd.f32 %v90, %v105
    %107 = vadd.xlane.f32.xlu0 %v106
    %v108 = vpop.xlane.xlu0 %107
    %v109 = vld [vmem:[%s3] sm:$0xff]
    %v110 = vld [vmem:[%s3 + $0x8] sm:$0xff]
    %v111 = vld [vmem:[%s3 + $0x10] sm:$0xff]
    %v112 = vld [vmem:[%s3 + $0x18] sm:$0xff]
    %v113 = vmul.f32 %v96, %v109
    %v114 = vmul.f32 %v100, %v110
    %v115 = vmul.f32 %v104, %v111
    %v116 = vmul.f32 %v108, %v112
    %v117 = vld [vmem:[%s4] sm:$0xff]
    %v118 = vld [vmem:[%s4 + $0x8] sm:$0xff]
    %v119 = vld [vmem:[%s4 + $0x10] sm:$0xff]
    %v120 = vld [vmem:[%s4 + $0x18] sm:$0xff]
    %v121 = vadd.f32 %v113, %v117
    %v122 = vadd.f32 %v114, %v118
    %v123 = vadd.f32 %v115, %v119
    %v124 = vadd.f32 %v116, %v120
    %v125 = vsel %vm92, %v77, 0.0
    %v126 = vadd.f32 %v76, %v125
    %127 = vadd.xlane.f32.xlu0 %v126
    %v128 = vpop.xlane.xlu0 %127
    %v129 = vsel %vm92, %v79, 0.0
    %v130 = vadd.f32 %v78, %v129
    %131 = vadd.xlane.f32.xlu0 %v130
    %v132 = vpop.xlane.xlu0 %131
    %v133 = vsel %vm92, %v81, 0.0
    %v134 = vadd.f32 %v80, %v133
    %135 = vadd.xlane.f32.xlu0 %v134
    %v136 = vpop.xlane.xlu0 %135
    %v137 = vsel %vm92, %v83, 0.0
    %v138 = vadd.f32 %v82, %v137
    %139 = vadd.xlane.f32.xlu0 %v138
    %v140 = vpop.xlane.xlu0 %139
    %v141 = vrcp.pop 245.0
    %v142 = vmul.f32 %v128, %v141
    %v143 = vmul.f32 %v132, %v141
    %v144 = vmul.f32 %v136, %v141
    %v145 = vmul.f32 %v140, %v141
    %v146 = vmul.f32 %v96, 0.0040816325
    %v147 = vmul.f32 %v100, 0.0040816325
    %v148 = vmul.f32 %v104, 0.0040816325
    %v149 = vmul.f32 %v108, 0.0040816325
    %v150 = vmul.f32 %v142, %v142
    %v151 = vmul.f32 %v143, %v143
    %v152 = vmul.f32 %v144, %v144
    %v153 = vmul.f32 %v145, %v145
    %v154 = vsub.f32 %v146, %v150
    %v155 = vsub.f32 %v147, %v151
    %v156 = vsub.f32 %v148, %v152
    %v157 = vsub.f32 %v149, %v153
    %v158 = vsub.f32 %v76, %v142
    %v159 = vsub.f32 %v77, %v142
    %v160 = vsub.f32 %v78, %v143
    %v161 = vsub.f32 %v79, %v143
    %v162 = vsub.f32 %v80, %v144
    %v163 = vsub.f32 %v81, %v144
    %v164 = vsub.f32 %v82, %v145
    %v165 = vsub.f32 %v83, %v145
    %v166 = vadd.f32 %v154, 1e-05
    %v167 = vadd.f32 %v155, 1e-05
    %v168 = vadd.f32 %v156, 1e-05
    %v169 = vadd.f32 %v157, 1e-05
    %v170 = vrsqrt.pop %v166
    %v171 = vrsqrt.pop %v167
    %v172 = vrsqrt.pop %v168
    %v173 = vrsqrt.pop %v169
    %v174 = vmul.f32 %v158, %v170
    %v175 = vmul.f32 %v159, %v170
    %v176 = vmul.f32 %v160, %v171
    %v177 = vmul.f32 %v161, %v171
    %v178 = vmul.f32 %v162, %v172
    %v179 = vmul.f32 %v163, %v172
    %v180 = vmul.f32 %v164, %v173
    %v181 = vmul.f32 %v165, %v173
    %v182 = vld [vmem:[%s1] sm:$0x3]
    %v184 = vlaneseq
    %v185 = vshrl.u32 %v184, 7
    %v186 = vsub.s32 0, %v185
    %v187 = vrot.slane %v182, %v186
    %v188 = vlaneseq
    %v189 = vshrl.u32 %v188, 7
    %v190 = vsub.s32 1, %v189
    %v191 = vrot.slane %v182, %v190
    %v194 = vmul.f32 %v174, %v187
    %v195 = vmul.f32 %v175, %v191
    %v196 = vmul.f32 %v176, %v187
    %v197 = vmul.f32 %v177, %v191
    %v198 = vmul.f32 %v178, %v187
    %v199 = vmul.f32 %v179, %v191
    %v200 = vmul.f32 %v180, %v187
    %v201 = vmul.f32 %v181, %v191
    %v202 = vld [vmem:[%s2] sm:$0x3]
    %v204 = vlaneseq
    %v205 = vshrl.u32 %v204, 7
    %v206 = vsub.s32 0, %v205
    %v207 = vrot.slane %v202, %v206
    %v208 = vlaneseq
    %v209 = vshrl.u32 %v208, 7
    %v210 = vsub.s32 1, %v209
    %v211 = vrot.slane %v202, %v210
    %v214 = vadd.f32 %v194, %v207
    %v215 = vadd.f32 %v195, %v211
    %v216 = vadd.f32 %v196, %v207
    %v217 = vadd.f32 %v197, %v211
    %v218 = vadd.f32 %v198, %v207
    %v219 = vadd.f32 %v199, %v211
    %v220 = vadd.f32 %v200, %v207
    %v221 = vadd.f32 %v201, %v211
    %v222 = vpack.c.bf16 %v216, %v214
    %v223 = vpack.c.bf16 %v217, %v215
    %v224 = vpack.c.bf16 %v220, %v218
    %v225 = vpack.c.bf16 %v221, %v219
    %v226 = vld [vmem:[#allocation2] sm:$0xff]
    %v227 = vld [vmem:[#allocation2 + $0x8] sm:$0xf]
    %v228 = vld [vmem:[#allocation2 + $0xc] sm:$0xff]
    %v229 = vld [vmem:[#allocation2 + $0x14] sm:$0xf]
    %v230 = vld [vmem:[#allocation2 + $0x18] sm:$0xff]
    %v231 = vld [vmem:[#allocation2 + $0x20] sm:$0xf]
    %v232 = vld [vmem:[#allocation2 + $0x24] sm:$0xff]
    %v233 = vld [vmem:[#allocation2 + $0x2c] sm:$0xf]
    %v234 = vld [vmem:[#allocation2 + $0x30] sm:$0xff]
    %v235 = vld [vmem:[#allocation2 + $0x38] sm:$0xf]
    %v236 = vld [vmem:[#allocation2 + $0x3c] sm:$0xff]
    %v237 = vld [vmem:[#allocation2 + $0x44] sm:$0xf]
    %v238 = vld [vmem:[#allocation2 + $0x48] sm:$0xff]
    %v239 = vld [vmem:[#allocation2 + $0x50] sm:$0xf]
    %v240 = vld [vmem:[#allocation2 + $0x54] sm:$0xff]
    %v241 = vld [vmem:[#allocation2 + $0x5c] sm:$0xf]
    %v242 = vld [vmem:[#allocation2 + $0x60] sm:$0xff]
    %v243 = vld [vmem:[#allocation2 + $0x68] sm:$0xf]
    %v244 = vld [vmem:[#allocation2 + $0x6c] sm:$0xff]
    %v245 = vld [vmem:[#allocation2 + $0x74] sm:$0xf]
    %v246 = vld [vmem:[#allocation2 + $0x78] sm:$0xff]
    %v247 = vld [vmem:[#allocation2 + $0x80] sm:$0xf]
    %v248 = vld [vmem:[#allocation2 + $0x84] sm:$0xff]
    %v249 = vld [vmem:[#allocation2 + $0x8c] sm:$0xf]
    %v250 = vld [vmem:[#allocation2 + $0x90] sm:$0xff]
    %v251 = vld [vmem:[#allocation2 + $0x98] sm:$0xf]
    %v252 = vld [vmem:[#allocation2 + $0x9c] sm:$0xff]
    %v253 = vld [vmem:[#allocation2 + $0xa4] sm:$0xf]
    %v254 = vld [vmem:[#allocation2 + $0xa8] sm:$0xff]
    %v255 = vld [vmem:[#allocation2 + $0xb0] sm:$0xf]
    %v256 = vld [vmem:[#allocation2 + $0xb4] sm:$0xff]
    %v257 = vld [vmem:[#allocation2 + $0xbc] sm:$0xf]
    %v258 = vld [vmem:[#allocation2 + $0xc0] sm:$0xff]
    %v259 = vld [vmem:[#allocation2 + $0xc8] sm:$0xf]
    %v260 = vld [vmem:[#allocation2 + $0xcc] sm:$0xff]
    %v261 = vld [vmem:[#allocation2 + $0xd4] sm:$0xf]
    %v262 = vld [vmem:[#allocation2 + $0xd8] sm:$0xff]
    %v263 = vld [vmem:[#allocation2 + $0xe0] sm:$0xf]
    %v264 = vld [vmem:[#allocation2 + $0xe4] sm:$0xff]
    %v265 = vld [vmem:[#allocation2 + $0xec] sm:$0xf]
    %v266 = vld [vmem:[#allocation2 + $0xf0] sm:$0xff]
    %v267 = vld [vmem:[#allocation2 + $0xf8] sm:$0xf]
    %v268 = vld [vmem:[#allocation2 + $0xfc] sm:$0xff]
    %v269 = vld [vmem:[#allocation2 + $0x104] sm:$0xf]
    %v270 = vld [vmem:[#allocation2 + $0x108] sm:$0xff]
    %v271 = vld [vmem:[#allocation2 + $0x110] sm:$0xf]
    %v272 = vld [vmem:[#allocation2 + $0x114] sm:$0xff]
    %v273 = vld [vmem:[#allocation2 + $0x11c] sm:$0xf]
    %v274 = vld [vmem:[#allocation2 + $0x120] sm:$0xff]
    %v275 = vld [vmem:[#allocation2 + $0x128] sm:$0xf]
    %v276 = vld [vmem:[#allocation2 + $0x12c] sm:$0xff]
    %v277 = vld [vmem:[#allocation2 + $0x134] sm:$0xf]
    %v278 = vld [vmem:[#allocation2 + $0x138] sm:$0xff]
    %v279 = vld [vmem:[#allocation2 + $0x140] sm:$0xf]
    %v280 = vld [vmem:[#allocation2 + $0x144] sm:$0xff]
    %v281 = vld [vmem:[#allocation2 + $0x14c] sm:$0xf]
    %v282 = vld [vmem:[#allocation2 + $0x150] sm:$0xff]
    %v283 = vld [vmem:[#allocation2 + $0x158] sm:$0xf]
    %v284 = vld [vmem:[#allocation2 + $0x15c] sm:$0xff]
    %v285 = vld [vmem:[#allocation2 + $0x164] sm:$0xf]
    %v286 = vld [vmem:[#allocation2 + $0x168] sm:$0x77]
    %v287 = vld [vmem:[#allocation2 + $0x170] sm:$0x7]
    %v350 = vunpack.c.l.b16 %v226
    %v351 = vunpack.c.h.b16 %v226
    %v352 = vunpack.c.l.b16 %v227
    %v353 = vunpack.c.l.b16 %v228
    %v354 = vunpack.c.h.b16 %v228
    %v355 = vunpack.c.l.b16 %v229
    %v356 = vunpack.c.l.b16 %v230
    %v357 = vunpack.c.h.b16 %v230
    %v358 = vunpack.c.l.b16 %v231
    %v359 = vunpack.c.l.b16 %v232
    %v360 = vunpack.c.h.b16 %v232
    %v361 = vunpack.c.l.b16 %v233
    %v362 = vunpack.c.l.b16 %v234
    %v363 = vunpack.c.h.b16 %v234
    %v364 = vunpack.c.l.b16 %v235
    %v365 = vunpack.c.l.b16 %v236
    %v366 = vunpack.c.h.b16 %v236
    %v367 = vunpack.c.l.b16 %v237
    %v368 = vunpack.c.l.b16 %v238
    %v369 = vunpack.c.h.b16 %v238
    %v370 = vunpack.c.l.b16 %v239
    %v371 = vunpack.c.l.b16 %v240
    %v372 = vunpack.c.h.b16 %v240
    %v373 = vunpack.c.l.b16 %v241
    %v374 = vunpack.c.l.b16 %v242
    %v375 = vunpack.c.h.b16 %v242
    %v376 = vunpack.c.l.b16 %v243
    %v377 = vunpack.c.l.b16 %v244
    %v378 = vunpack.c.h.b16 %v244
    %v379 = vunpack.c.l.b16 %v245
    %v380 = vunpack.c.l.b16 %v246
    %v381 = vunpack.c.h.b16 %v246
    %v382 = vunpack.c.l.b16 %v247
    %v383 = vunpack.c.l.b16 %v248
    %v384 = vunpack.c.h.b16 %v248
    %v385 = vunpack.c.l.b16 %v249
    %v386 = vunpack.c.l.b16 %v250
    %v387 = vunpack.c.h.b16 %v250
    %v388 = vunpack.c.l.b16 %v251
    %v389 = vunpack.c.l.b16 %v252
    %v390 = vunpack.c.h.b16 %v252
    %v391 = vunpack.c.l.b16 %v253
    %v392 = vunpack.c.l.b16 %v254
    %v393 = vunpack.c.h.b16 %v254
    %v394 = vunpack.c.l.b16 %v255
    %v395 = vunpack.c.l.b16 %v256
    %v396 = vunpack.c.h.b16 %v256
    %v397 = vunpack.c.l.b16 %v257
    %v398 = vunpack.c.l.b16 %v258
    %v399 = vunpack.c.h.b16 %v258
    %v400 = vunpack.c.l.b16 %v259
    %v401 = vunpack.c.l.b16 %v260
    %v402 = vunpack.c.h.b16 %v260
    %v403 = vunpack.c.l.b16 %v261
    %v404 = vunpack.c.l.b16 %v262
    %v405 = vunpack.c.h.b16 %v262
    %v406 = vunpack.c.l.b16 %v263
    %v407 = vunpack.c.l.b16 %v264
    %v408 = vunpack.c.h.b16 %v264
    %v409 = vunpack.c.l.b16 %v265
    %v410 = vunpack.c.l.b16 %v266
    %v411 = vunpack.c.h.b16 %v266
    %v412 = vunpack.c.l.b16 %v267
    %v413 = vunpack.c.l.b16 %v268
    %v414 = vunpack.c.h.b16 %v268
    %v415 = vunpack.c.l.b16 %v269
    %v416 = vunpack.c.l.b16 %v270
    %v417 = vunpack.c.h.b16 %v270
    %v418 = vunpack.c.l.b16 %v271
    %v419 = vunpack.c.l.b16 %v272
    %v420 = vunpack.c.h.b16 %v272
    %v421 = vunpack.c.l.b16 %v273
    %v422 = vunpack.c.l.b16 %v274
    %v423 = vunpack.c.h.b16 %v274
    %v424 = vunpack.c.l.b16 %v275
    %v425 = vunpack.c.l.b16 %v276
    %v426 = vunpack.c.h.b16 %v276
    %v427 = vunpack.c.l.b16 %v277
    %v428 = vunpack.c.l.b16 %v278
    %v429 = vunpack.c.h.b16 %v278
    %v430 = vunpack.c.l.b16 %v279
    %v431 = vunpack.c.l.b16 %v280
    %v432 = vunpack.c.h.b16 %v280
    %v433 = vunpack.c.l.b16 %v281
    %v434 = vunpack.c.l.b16 %v282
    %v435 = vunpack.c.h.b16 %v282
    %v436 = vunpack.c.l.b16 %v283
    %v437 = vunpack.c.l.b16 %v284
    %v438 = vunpack.c.h.b16 %v284
    %v439 = vunpack.c.l.b16 %v285
    %v440 = vunpack.c.l.b16 %v286
    %v441 = vunpack.c.h.b16 %v286
    %v442 = vunpack.c.l.b16 %v287
    %v443 = vpack.c.b16 %v353, %v350
    %v444 = vpack.c.b16 %v354, %v351
    %v445 = vpack.c.b16 %v355, %v352
    %v446 = vpack.c.b16 %v359, %v356
    %v447 = vpack.c.b16 %v360, %v357
    %v448 = vpack.c.b16 %v361, %v358
    %v449 = vpack.c.b16 %v365, %v362
    %v450 = vpack.c.b16 %v366, %v363
    %v451 = vpack.c.b16 %v367, %v364
    %v452 = vpack.c.b16 %v371, %v368
    %v453 = vpack.c.b16 %v372, %v369
    %v454 = vpack.c.b16 %v373, %v370
    %v455 = vpack.c.b16 %v377, %v374
    %v456 = vpack.c.b16 %v378, %v375
    %v457 = vpack.c.b16 %v379, %v376
    %v458 = vpack.c.b16 %v383, %v380
    %v459 = vpack.c.b16 %v384, %v381
    %v460 = vpack.c.b16 %v385, %v382
    %v461 = vpack.c.b16 %v389, %v386
    %v462 = vpack.c.b16 %v390, %v387
    %v463 = vpack.c.b16 %v391, %v388
    %v464 = vpack.c.b16 %v395, %v392
    %v465 = vpack.c.b16 %v396, %v393
    %v466 = vpack.c.b16 %v397, %v394
    %v467 = vpack.c.b16 %v401, %v398
    %v468 = vpack.c.b16 %v402, %v399
    %v469 = vpack.c.b16 %v403, %v400
    %v470 = vpack.c.b16 %v407, %v404
    %v471 = vpack.c.b16 %v408, %v405
    %v472 = vpack.c.b16 %v409, %v406
    %v473 = vpack.c.b16 %v413, %v410
    %v474 = vpack.c.b16 %v414, %v411
    %v475 = vpack.c.b16 %v415, %v412
    %v476 = vpack.c.b16 %v419, %v416
    %v477 = vpack.c.b16 %v420, %v417
    %v478 = vpack.c.b16 %v421, %v418
    %v479 = vpack.c.b16 %v425, %v422
    %v480 = vpack.c.b16 %v426, %v423
    %v481 = vpack.c.b16 %v427, %v424
    %v482 = vpack.c.b16 %v431, %v428
    %v483 = vpack.c.b16 %v432, %v429
    %v484 = vpack.c.b16 %v433, %v430
    %v485 = vpack.c.b16 %v437, %v434
    %v486 = vpack.c.b16 %v438, %v435
    %v487 = vpack.c.b16 %v439, %v436
    %v488 = vpack.c.b16 %v440, %v440
    %v489 = vpack.c.b16 %v441, %v441
    %v490 = vpack.c.b16 %v442, %v442
    %v537 = vsel %vm92, %v223, 0
    %v540 = vsel %vm92, %v225, 0
    %vm542 = vcmask 1041408
    %vm543 = vcmask 1042432
    %v544 = vsel %vm542, 4294967295, 65535
    %v545 = vsel %vm543, %v544, 0
    %v547 = vand.u32 %v488, %v545
    %v550 = vand.u32 %v489, %v545
    %v553 = vand.u32 %v490, %v545
    %555 = vmatprep.subr.bf16.mxu0 %v465
    %556 = vmatpush1.bf16.msra.mxu0 %v464
    %557 = vmatprep.subr.bf16.mxu0 %v462
    %558 = vmatpush1.bf16.msra.mxu0 %v461
    %559 = vmatprep.subr.bf16.mxu0 %v459
    %560 = vmatpush1.bf16.msra.mxu0 %v458
    %561 = vmatprep.subr.bf16.mxu0 %v456
    %562 = vmatpush1.bf16.msra.mxu0 %v455
    %563 = vmatprep.subr.bf16.mxu0 %v453
    %564 = vmatpush1.bf16.msra.mxu0 %v452
    %565 = vmatprep.subr.bf16.mxu0 %v450
    %566 = vmatpush1.bf16.msra.mxu0 %v449
    %567 = vmatprep.subr.bf16.mxu0 %v447
    %568 = vmatpush1.bf16.msra.mxu0 %v446
    %569 = vmatprep.subr.bf16.mxu0 %v444
    %570 = vmatpush1.bf16.msra.mxu0 %v443
    %571 = vmatprep.subr.bf16.mxu0 %v550
    %572 = vmatpush2.bf16.msra.mxu0 %v547
    %573 = vmatprep.subr.bf16.mxu0 %v486
    %574 = vmatpush2.bf16.msra.mxu0 %v485
    %575 = vmatprep.subr.bf16.mxu0 %v483
    %576 = vmatpush2.bf16.msra.mxu0 %v482
    %577 = vmatprep.subr.bf16.mxu0 %v480
    %578 = vmatpush2.bf16.msra.mxu0 %v479
    %579 = vmatprep.subr.bf16.mxu0 %v477
    %580 = vmatpush2.bf16.msra.mxu0 %v476
    %581 = vmatprep.subr.bf16.mxu0 %v474
    %582 = vmatpush2.bf16.msra.mxu0 %v473
    %583 = vmatprep.subr.bf16.mxu0 %v471
    %584 = vmatpush2.bf16.msra.mxu0 %v470
    %585 = vmatprep.subr.bf16.mxu0 %v468
    %586 = vmatpush2.bf16.msra.mxu0 %v467
    %587 = vmatprep.mubr.bf16.mxu0 %v537
    %588 = vmatmul.mubr.bf16.gmra.mxu0 %v222
    %v589 = vpop.f32.mrf.mxu0
    %v590 = vadd.f32 0.0, %v589
    %v591 = vpop.f32.mrf.mxu0
    %v592 = vadd.f32 0.0, %v591
    %v593 = vpop.f32.mrf.mxu0
    %v594 = vadd.f32 0.0, %v593
    %v595 = vpop.f32.mrf.mxu0
    %v596 = vadd.f32 0.0, %v595
    %597 = vmatprep.mubr.bf16.mxu0 %v540
    %598 = vmatmul.mubr.bf16.gmra.mxu0 %v224
    %v599 = vpop.f32.mrf.mxu0
    %v600 = vadd.f32 0.0, %v599
    %v601 = vpop.f32.mrf.mxu0
    %v602 = vadd.f32 0.0, %v601
    %v603 = vpop.f32.mrf.mxu0
    %v604 = vadd.f32 0.0, %v603
    %v605 = vpop.f32.mrf.mxu0
    %v606 = vadd.f32 0.0, %v605
    %607 = vdwg.mxu0
    %608 = vmatprep.subr.bf16.mxu0 0
    %609 = vmatpush1.bf16.msra.mxu0 %v466
    %610 = vmatprep.subr.bf16.mxu0 0
    %611 = vmatpush1.bf16.msra.mxu0 %v463
    %612 = vmatprep.subr.bf16.mxu0 0
    %613 = vmatpush1.bf16.msra.mxu0 %v460
    %614 = vmatprep.subr.bf16.mxu0 0
    %615 = vmatpush1.bf16.msra.mxu0 %v457
    %616 = vmatprep.subr.bf16.mxu0 0
    %617 = vmatpush1.bf16.msra.mxu0 %v454
    %618 = vmatprep.subr.bf16.mxu0 0
    %619 = vmatpush1.bf16.msra.mxu0 %v451
    %620 = vmatprep.subr.bf16.mxu0 0
    %621 = vmatpush1.bf16.msra.mxu0 %v448
    %622 = vmatprep.subr.bf16.mxu0 0
    %623 = vmatpush1.bf16.msra.mxu0 %v445
    %624 = vmatprep.subr.bf16.mxu0 0
    %625 = vmatpush2.bf16.msra.mxu0 %v553
    %626 = vmatprep.subr.bf16.mxu0 0
    %627 = vmatpush2.bf16.msra.mxu0 %v487
    %628 = vmatprep.subr.bf16.mxu0 0
    %629 = vmatpush2.bf16.msra.mxu0 %v484
    %630 = vmatprep.subr.bf16.mxu0 0
    %631 = vmatpush2.bf16.msra.mxu0 %v481
    %632 = vmatprep.subr.bf16.mxu0 0
    %633 = vmatpush2.bf16.msra.mxu0 %v478
    %634 = vmatprep.subr.bf16.mxu0 0
    %635 = vmatpush2.bf16.msra.mxu0 %v475
    %636 = vmatprep.subr.bf16.mxu0 0
    %637 = vmatpush2.bf16.msra.mxu0 %v472
    %638 = vmatprep.subr.bf16.mxu0 0
    %639 = vmatpush2.bf16.msra.mxu0 %v469
    %640 = vmatprep.mubr.bf16.mxu0 %v537
    %641 = vmatmul.mubr.bf16.gmra.mxu0 %v222
    %v642 = vpop.f32.mrf.mxu0
    %v643 = vadd.f32 0.0, %v642
    %v644 = vpop.f32.mrf.mxu0
    %v645 = vpop.f32.mrf.mxu0
    %v646 = vadd.f32 0.0, %v645
    %v647 = vpop.f32.mrf.mxu0
    %648 = vmatprep.mubr.bf16.mxu0 %v540
    %649 = vmatmul.mubr.bf16.gmra.mxu0 %v224
    %v650 = vpop.f32.mrf.mxu0
    %v651 = vadd.f32 0.0, %v650
    %v652 = vpop.f32.mrf.mxu0
    %v653 = vpop.f32.mrf.mxu0
    %v654 = vadd.f32 0.0, %v653
    %v655 = vpop.f32.mrf.mxu0
    %656 = vdwg.mxu0
    %s657 = scalar_lea.vmem [#allocation2], 372
    %v658 = vld [vmem:[%s657] sm:$0xff]
    %v659 = vld [vmem:[%s657 + $0x8] sm:$0xf]
    %v660 = vld [vmem:[%s657 + $0xc] sm:$0xff]
    %v661 = vld [vmem:[%s657 + $0x14] sm:$0xf]
    %v662 = vld [vmem:[%s657 + $0x18] sm:$0xff]
    %v663 = vld [vmem:[%s657 + $0x20] sm:$0xf]
    %v664 = vld [vmem:[%s657 + $0x24] sm:$0xff]
    %v665 = vld [vmem:[%s657 + $0x2c] sm:$0xf]
    %v666 = vld [vmem:[%s657 + $0x30] sm:$0xff]
    %v667 = vld [vmem:[%s657 + $0x38] sm:$0xf]
    %v668 = vld [vmem:[%s657 + $0x3c] sm:$0xff]
    %v669 = vld [vmem:[%s657 + $0x44] sm:$0xf]
    %v670 = vld [vmem:[%s657 + $0x48] sm:$0xff]
    %v671 = vld [vmem:[%s657 + $0x50] sm:$0xf]
    %v672 = vld [vmem:[%s657 + $0x54] sm:$0xff]
    %v673 = vld [vmem:[%s657 + $0x5c] sm:$0xf]
    %v674 = vld [vmem:[%s657 + $0x60] sm:$0xff]
    %v675 = vld [vmem:[%s657 + $0x68] sm:$0xf]
    %v676 = vld [vmem:[%s657 + $0x6c] sm:$0xff]
    %v677 = vld [vmem:[%s657 + $0x74] sm:$0xf]
    %v678 = vld [vmem:[%s657 + $0x78] sm:$0xff]
    %v679 = vld [vmem:[%s657 + $0x80] sm:$0xf]
    %v680 = vld [vmem:[%s657 + $0x84] sm:$0xff]
    %v681 = vld [vmem:[%s657 + $0x8c] sm:$0xf]
    %v682 = vld [vmem:[%s657 + $0x90] sm:$0xff]
    %v683 = vld [vmem:[%s657 + $0x98] sm:$0xf]
    %v684 = vld [vmem:[%s657 + $0x9c] sm:$0xff]
    %v685 = vld [vmem:[%s657 + $0xa4] sm:$0xf]
    %v686 = vld [vmem:[%s657 + $0xa8] sm:$0xff]
    %v687 = vld [vmem:[%s657 + $0xb0] sm:$0xf]
    %v688 = vld [vmem:[%s657 + $0xb4] sm:$0xff]
    %v689 = vld [vmem:[%s657 + $0xbc] sm:$0xf]
    %v690 = vld [vmem:[%s657 + $0xc0] sm:$0xff]
    %v691 = vld [vmem:[%s657 + $0xc8] sm:$0xf]
    %v692 = vld [vmem:[%s657 + $0xcc] sm:$0xff]
    %v693 = vld [vmem:[%s657 + $0xd4] sm:$0xf]
    %v694 = vld [vmem:[%s657 + $0xd8] sm:$0xff]
    %v695 = vld [vmem:[%s657 + $0xe0] sm:$0xf]
    %v696 = vld [vmem:[%s657 + $0xe4] sm:$0xff]
    %v697 = vld [vmem:[%s657 + $0xec] sm:$0xf]
    %v698 = vld [vmem:[%s657 + $0xf0] sm:$0xff]
    %v699 = vld [vmem:[%s657 + $0xf8] sm:$0xf]
    %v700 = vld [vmem:[%s657 + $0xfc] sm:$0xff]
    %v701 = vld [vmem:[%s657 + $0x104] sm:$0xf]
    %v702 = vld [vmem:[%s657 + $0x108] sm:$0xff]
    %v703 = vld [vmem:[%s657 + $0x110] sm:$0xf]
    %v704 = vld [vmem:[%s657 + $0x114] sm:$0xff]
    %v705 = vld [vmem:[%s657 + $0x11c] sm:$0xf]
    %v706 = vld [vmem:[%s657 + $0x120] sm:$0xff]
    %v707 = vld [vmem:[%s657 + $0x128] sm:$0xf]
    %v708 = vld [vmem:[%s657 + $0x12c] sm:$0xff]
    %v709 = vld [vmem:[%s657 + $0x134] sm:$0xf]
    %v710 = vld [vmem:[%s657 + $0x138] sm:$0xff]
    %v711 = vld [vmem:[%s657 + $0x140] sm:$0xf]
    %v712 = vld [vmem:[%s657 + $0x144] sm:$0xff]
    %v713 = vld [vmem:[%s657 + $0x14c] sm:$0xf]
    %v714 = vld [vmem:[%s657 + $0x150] sm:$0xff]
    %v715 = vld [vmem:[%s657 + $0x158] sm:$0xf]
    %v716 = vld [vmem:[%s657 + $0x15c] sm:$0xff]
    %v717 = vld [vmem:[%s657 + $0x164] sm:$0xf]
    %v718 = vld [vmem:[%s657 + $0x168] sm:$0x77]
    %v719 = vld [vmem:[%s657 + $0x170] sm:$0x7]
    %v782 = vunpack.c.l.b16 %v658
    %v783 = vunpack.c.h.b16 %v658
    %v784 = vunpack.c.l.b16 %v659
    %v785 = vunpack.c.l.b16 %v660
    %v786 = vunpack.c.h.b16 %v660
    %v787 = vunpack.c.l.b16 %v661
    %v788 = vunpack.c.l.b16 %v662
    %v789 = vunpack.c.h.b16 %v662
    %v790 = vunpack.c.l.b16 %v663
    %v791 = vunpack.c.l.b16 %v664
    %v792 = vunpack.c.h.b16 %v664
    %v793 = vunpack.c.l.b16 %v665
    %v794 = vunpack.c.l.b16 %v666
    %v795 = vunpack.c.h.b16 %v666
    %v796 = vunpack.c.l.b16 %v667
    %v797 = vunpack.c.l.b16 %v668
    %v798 = vunpack.c.h.b16 %v668
    %v799 = vunpack.c.l.b16 %v669
    %v800 = vunpack.c.l.b16 %v670
    %v801 = vunpack.c.h.b16 %v670
    %v802 = vunpack.c.l.b16 %v671
    %v803 = vunpack.c.l.b16 %v672
    %v804 = vunpack.c.h.b16 %v672
    %v805 = vunpack.c.l.b16 %v673
    %v806 = vunpack.c.l.b16 %v674
    %v807 = vunpack.c.h.b16 %v674
    %v808 = vunpack.c.l.b16 %v675
    %v809 = vunpack.c.l.b16 %v676
    %v810 = vunpack.c.h.b16 %v676
    %v811 = vunpack.c.l.b16 %v677
    %v812 = vunpack.c.l.b16 %v678
    %v813 = vunpack.c.h.b16 %v678
    %v814 = vunpack.c.l.b16 %v679
    %v815 = vunpack.c.l.b16 %v680
    %v816 = vunpack.c.h.b16 %v680
    %v817 = vunpack.c.l.b16 %v681
    %v818 = vunpack.c.l.b16 %v682
    %v819 = vunpack.c.h.b16 %v682
    %v820 = vunpack.c.l.b16 %v683
    %v821 = vunpack.c.l.b16 %v684
    %v822 = vunpack.c.h.b16 %v684
    %v823 = vunpack.c.l.b16 %v685
    %v824 = vunpack.c.l.b16 %v686
    %v825 = vunpack.c.h.b16 %v686
    %v826 = vunpack.c.l.b16 %v687
    %v827 = vunpack.c.l.b16 %v688
    %v828 = vunpack.c.h.b16 %v688
    %v829 = vunpack.c.l.b16 %v689
    %v830 = vunpack.c.l.b16 %v690
    %v831 = vunpack.c.h.b16 %v690
    %v832 = vunpack.c.l.b16 %v691
    %v833 = vunpack.c.l.b16 %v692
    %v834 = vunpack.c.h.b16 %v692
    %v835 = vunpack.c.l.b16 %v693
    %v836 = vunpack.c.l.b16 %v694
    %v837 = vunpack.c.h.b16 %v694
    %v838 = vunpack.c.l.b16 %v695
    %v839 = vunpack.c.l.b16 %v696
    %v840 = vunpack.c.h.b16 %v696
    %v841 = vunpack.c.l.b16 %v697
    %v842 = vunpack.c.l.b16 %v698
    %v843 = vunpack.c.h.b16 %v698
    %v844 = vunpack.c.l.b16 %v699
    %v845 = vunpack.c.l.b16 %v700
    %v846 = vunpack.c.h.b16 %v700
    %v847 = vunpack.c.l.b16 %v701
    %v848 = vunpack.c.l.b16 %v702
    %v849 = vunpack.c.h.b16 %v702
    %v850 = vunpack.c.l.b16 %v703
    %v851 = vunpack.c.l.b16 %v704
    %v852 = vunpack.c.h.b16 %v704
    %v853 = vunpack.c.l.b16 %v705
    %v854 = vunpack.c.l.b16 %v706
    %v855 = vunpack.c.h.b16 %v706
    %v856 = vunpack.c.l.b16 %v707
    %v857 = vunpack.c.l.b16 %v708
    %v858 = vunpack.c.h.b16 %v708
    %v859 = vunpack.c.l.b16 %v709
    %v860 = vunpack.c.l.b16 %v710
    %v861 = vunpack.c.h.b16 %v710
    %v862 = vunpack.c.l.b16 %v711
    %v863 = vunpack.c.l.b16 %v712
    %v864 = vunpack.c.h.b16 %v712
    %v865 = vunpack.c.l.b16 %v713
    %v866 = vunpack.c.l.b16 %v714
    %v867 = vunpack.c.h.b16 %v714
    %v868 = vunpack.c.l.b16 %v715
    %v869 = vunpack.c.l.b16 %v716
    %v870 = vunpack.c.h.b16 %v716
    %v871 = vunpack.c.l.b16 %v717
    %v872 = vunpack.c.l.b16 %v718
    %v873 = vunpack.c.h.b16 %v718
    %v874 = vunpack.c.l.b16 %v719
    %v875 = vpack.c.b16 %v785, %v782
    %v876 = vpack.c.b16 %v786, %v783
    %v877 = vpack.c.b16 %v787, %v784
    %v878 = vpack.c.b16 %v791, %v788
    %v879 = vpack.c.b16 %v792, %v789
    %v880 = vpack.c.b16 %v793, %v790
    %v881 = vpack.c.b16 %v797, %v794
    %v882 = vpack.c.b16 %v798, %v795
    %v883 = vpack.c.b16 %v799, %v796
    %v884 = vpack.c.b16 %v803, %v800
    %v885 = vpack.c.b16 %v804, %v801
    %v886 = vpack.c.b16 %v805, %v802
    %v887 = vpack.c.b16 %v809, %v806
    %v888 = vpack.c.b16 %v810, %v807
    %v889 = vpack.c.b16 %v811, %v808
    %v890 = vpack.c.b16 %v815, %v812
    %v891 = vpack.c.b16 %v816, %v813
    %v892 = vpack.c.b16 %v817, %v814
    %v893 = vpack.c.b16 %v821, %v818
    %v894 = vpack.c.b16 %v822, %v819
    %v895 = vpack.c.b16 %v823, %v820
    %v896 = vpack.c.b16 %v827, %v824
    %v897 = vpack.c.b16 %v828, %v825
    %v898 = vpack.c.b16 %v829, %v826
    %v899 = vpack.c.b16 %v833, %v830
    %v900 = vpack.c.b16 %v834, %v831
    %v901 = vpack.c.b16 %v835, %v832
    %v902 = vpack.c.b16 %v839, %v836
    %v903 = vpack.c.b16 %v840, %v837
    %v904 = vpack.c.b16 %v841, %v838
    %v905 = vpack.c.b16 %v845, %v842
    %v906 = vpack.c.b16 %v846, %v843
    %v907 = vpack.c.b16 %v847, %v844
    %v908 = vpack.c.b16 %v851, %v848
    %v909 = vpack.c.b16 %v852, %v849
    %v910 = vpack.c.b16 %v853, %v850
    %v911 = vpack.c.b16 %v857, %v854
    %v912 = vpack.c.b16 %v858, %v855
    %v913 = vpack.c.b16 %v859, %v856
    %v914 = vpack.c.b16 %v863, %v860
    %v915 = vpack.c.b16 %v864, %v861
    %v916 = vpack.c.b16 %v865, %v862
    %v917 = vpack.c.b16 %v869, %v866
    %v918 = vpack.c.b16 %v870, %v867
    %v919 = vpack.c.b16 %v871, %v868
    %v920 = vpack.c.b16 %v872, %v872
    %v921 = vpack.c.b16 %v873, %v873
    %v922 = vpack.c.b16 %v874, %v874
    %v969 = vand.u32 %v920, %v545
    %v972 = vand.u32 %v921, %v545
    %v975 = vand.u32 %v922, %v545
    %977 = vmatprep.subr.bf16.mxu0 %v897
    %978 = vmatpush1.bf16.msra.mxu0 %v896
    %979 = vmatprep.subr.bf16.mxu0 %v894
    %980 = vmatpush1.bf16.msra.mxu0 %v893
    %981 = vmatprep.subr.bf16.mxu0 %v891
    %982 = vmatpush1.bf16.msra.mxu0 %v890
    %983 = vmatprep.subr.bf16.mxu0 %v888
    %984 = vmatpush1.bf16.msra.mxu0 %v887
    %985 = vmatprep.subr.bf16.mxu0 %v885
    %986 = vmatpush1.bf16.msra.mxu0 %v884
    %987 = vmatprep.subr.bf16.mxu0 %v882
    %988 = vmatpush1.bf16.msra.mxu0 %v881
    %989 = vmatprep.subr.bf16.mxu0 %v879
    %990 = vmatpush1.bf16.msra.mxu0 %v878
    %991 = vmatprep.subr.bf16.mxu0 %v876
    %992 = vmatpush1.bf16.msra.mxu0 %v875
    %993 = vmatprep.subr.bf16.mxu0 %v972
    %994 = vmatpush2.bf16.msra.mxu0 %v969
    %995 = vmatprep.subr.bf16.mxu0 %v918
    %996 = vmatpush2.bf16.msra.mxu0 %v917
    %997 = vmatprep.subr.bf16.mxu0 %v915
    %998 = vmatpush2.bf16.msra.mxu0 %v914
    %999 = vmatprep.subr.bf16.mxu0 %v912
    %1000 = vmatpush2.bf16.msra.mxu0 %v911
    %1001 = vmatprep.subr.bf16.mxu0 %v909
    %1002 = vmatpush2.bf16.msra.mxu0 %v908
    %1003 = vmatprep.subr.bf16.mxu0 %v906
    %1004 = vmatpush2.bf16.msra.mxu0 %v905
    %1005 = vmatprep.subr.bf16.mxu0 %v903
    %1006 = vmatpush2.bf16.msra.mxu0 %v902
    %1007 = vmatprep.subr.bf16.mxu0 %v900
    %1008 = vmatpush2.bf16.msra.mxu0 %v899
    %1009 = vmatprep.mubr.bf16.mxu0 %v537
    %1010 = vmatmul.mubr.bf16.gmra.mxu0 %v222
    %v1011 = vpop.f32.mrf.mxu0
    %v1012 = vadd.f32 0.0, %v1011
    %v1013 = vpop.f32.mrf.mxu0
    %v1014 = vadd.f32 0.0, %v1013
    %v1015 = vpop.f32.mrf.mxu0
    %v1016 = vadd.f32 0.0, %v1015
    %v1017 = vpop.f32.mrf.mxu0
    %v1018 = vadd.f32 0.0, %v1017
    %1019 = vmatprep.mubr.bf16.mxu0 %v540
    %1020 = vmatmul.mubr.bf16.gmra.mxu0 %v224
    %v1021 = vpop.f32.mrf.mxu0
    %v1022 = vadd.f32 0.0, %v1021
    %v1023 = vpop.f32.mrf.mxu0
    %v1024 = vadd.f32 0.0, %v1023
    %v1025 = vpop.f32.mrf.mxu0
    %v1026 = vadd.f32 0.0, %v1025
    %v1027 = vpop.f32.mrf.mxu0
    %v1028 = vadd.f32 0.0, %v1027
    %1029 = vdwg.mxu0
    %1030 = vmatprep.subr.bf16.mxu0 0
    %1031 = vmatpush1.bf16.msra.mxu0 %v898
    %1032 = vmatprep.subr.bf16.mxu0 0
    %1033 = vmatpush1.bf16.msra.mxu0 %v895
    %1034 = vmatprep.subr.bf16.mxu0 0
    %1035 = vmatpush1.bf16.msra.mxu0 %v892
    %1036 = vmatprep.subr.bf16.mxu0 0
    %1037 = vmatpush1.bf16.msra.mxu0 %v889
    %1038 = vmatprep.subr.bf16.mxu0 0
    %1039 = vmatpush1.bf16.msra.mxu0 %v886
    %1040 = vmatprep.subr.bf16.mxu0 0
    %1041 = vmatpush1.bf16.msra.mxu0 %v883
    %1042 = vmatprep.subr.bf16.mxu0 0
    %1043 = vmatpush1.bf16.msra.mxu0 %v880
    %1044 = vmatprep.subr.bf16.mxu0 0
    %1045 = vmatpush1.bf16.msra.mxu0 %v877
    %1046 = vmatprep.subr.bf16.mxu0 0
    %1047 = vmatpush2.bf16.msra.mxu0 %v975
    %1048 = vmatprep.subr.bf16.mxu0 0
    %1049 = vmatpush2.bf16.msra.mxu0 %v919
    %1050 = vmatprep.subr.bf16.mxu0 0
    %1051 = vmatpush2.bf16.msra.mxu0 %v916
    %1052 = vmatprep.subr.bf16.mxu0 0
    %1053 = vmatpush2.bf16.msra.mxu0 %v913
    %1054 = vmatprep.subr.bf16.mxu0 0
    %1055 = vmatpush2.bf16.msra.mxu0 %v910
    %1056 = vmatprep.subr.bf16.mxu0 0
    %1057 = vmatpush2.bf16.msra.mxu0 %v907
    %1058 = vmatprep.subr.bf16.mxu0 0
    %1059 = vmatpush2.bf16.msra.mxu0 %v904
    %1060 = vmatprep.subr.bf16.mxu0 0
    %1061 = vmatpush2.bf16.msra.mxu0 %v901
    %1062 = vmatprep.mubr.bf16.mxu0 %v537
    %1063 = vmatmul.mubr.bf16.gmra.mxu0 %v222
    %v1064 = vpop.f32.mrf.mxu0
    %v1065 = vadd.f32 0.0, %v1064
    %v1066 = vpop.f32.mrf.mxu0
    %v1067 = vpop.f32.mrf.mxu0
    %v1068 = vadd.f32 0.0, %v1067
    %v1069 = vpop.f32.mrf.mxu0
    %1070 = vmatprep.mubr.bf16.mxu0 %v540
    %1071 = vmatmul.mubr.bf16.gmra.mxu0 %v224
    %v1072 = vpop.f32.mrf.mxu0
    %v1073 = vadd.f32 0.0, %v1072
    %v1074 = vpop.f32.mrf.mxu0
    %v1075 = vpop.f32.mrf.mxu0
    %v1076 = vadd.f32 0.0, %v1075
    %v1077 = vpop.f32.mrf.mxu0
    %1078 = vdwg.mxu0
    %v1079 = vmax.f32 %v590, %v1012
    %v1080 = vmax.f32 %v592, %v1014
    %v1081 = vmax.f32 %v643, %v1065
    %v1082 = vmax.f32 %v594, %v1016
    %v1083 = vmax.f32 %v596, %v1018
    %v1084 = vmax.f32 %v646, %v1068
    %v1085 = vmax.f32 %v600, %v1022
    %v1086 = vmax.f32 %v602, %v1024
    %v1087 = vmax.f32 %v651, %v1073
    %v1088 = vmax.f32 %v604, %v1026
    %v1089 = vmax.f32 %v606, %v1028
    %v1090 = vmax.f32 %v654, %v1076
    %s1091 = scalar_lea.vmem [#allocation2], 744
    %v1092 = vld [vmem:[%s1091] sm:$0xff]
    %v1093 = vld [vmem:[%s1091 + $0x8] sm:$0xf]
    %v1094 = vld [vmem:[%s1091 + $0xc] sm:$0xff]
    %v1095 = vld [vmem:[%s1091 + $0x14] sm:$0xf]
    %v1096 = vld [vmem:[%s1091 + $0x18] sm:$0xff]
    %v1097 = vld [vmem:[%s1091 + $0x20] sm:$0xf]
    %v1098 = vld [vmem:[%s1091 + $0x24] sm:$0xff]
    %v1099 = vld [vmem:[%s1091 + $0x2c] sm:$0xf]
    %v1100 = vld [vmem:[%s1091 + $0x30] sm:$0xff]
    %v1101 = vld [vmem:[%s1091 + $0x38] sm:$0xf]
    %v1102 = vld [vmem:[%s1091 + $0x3c] sm:$0xff]
    %v1103 = vld [vmem:[%s1091 + $0x44] sm:$0xf]
    %v1104 = vld [vmem:[%s1091 + $0x48] sm:$0xff]
    %v1105 = vld [vmem:[%s1091 + $0x50] sm:$0xf]
    %v1106 = vld [vmem:[%s1091 + $0x54] sm:$0xff]
    %v1107 = vld [vmem:[%s1091 + $0x5c] sm:$0xf]
    %v1108 = vld [vmem:[%s1091 + $0x60] sm:$0xff]
    %v1109 = vld [vmem:[%s1091 + $0x68] sm:$0xf]
    %v1110 = vld [vmem:[%s1091 + $0x6c] sm:$0xff]
    %v1111 = vld [vmem:[%s1091 + $0x74] sm:$0xf]
    %v1112 = vld [vmem:[%s1091 + $0x78] sm:$0xff]
    %v1113 = vld [vmem:[%s1091 + $0x80] sm:$0xf]
    %v1114 = vld [vmem:[%s1091 + $0x84] sm:$0xff]
    %v1115 = vld [vmem:[%s1091 + $0x8c] sm:$0xf]
    %v1116 = vld [vmem:[%s1091 + $0x90] sm:$0xff]
    %v1117 = vld [vmem:[%s1091 + $0x98] sm:$0xf]
    %v1118 = vld [vmem:[%s1091 + $0x9c] sm:$0xff]
    %v1119 = vld [vmem:[%s1091 + $0xa4] sm:$0xf]
    %v1120 = vld [vmem:[%s1091 + $0xa8] sm:$0xff]
    %v1121 = vld [vmem:[%s1091 + $0xb0] sm:$0xf]
    %v1122 = vld [vmem:[%s1091 + $0xb4] sm:$0xff]
    %v1123 = vld [vmem:[%s1091 + $0xbc] sm:$0xf]
    %v1124 = vld [vmem:[%s1091 + $0xc0] sm:$0xff]
    %v1125 = vld [vmem:[%s1091 + $0xc8] sm:$0xf]
    %v1126 = vld [vmem:[%s1091 + $0xcc] sm:$0xff]
    %v1127 = vld [vmem:[%s1091 + $0xd4] sm:$0xf]
    %v1128 = vld [vmem:[%s1091 + $0xd8] sm:$0xff]
    %v1129 = vld [vmem:[%s1091 + $0xe0] sm:$0xf]
    %v1130 = vld [vmem:[%s1091 + $0xe4] sm:$0xff]
    %v1131 = vld [vmem:[%s1091 + $0xec] sm:$0xf]
    %v1132 = vld [vmem:[%s1091 + $0xf0] sm:$0xff]
    %v1133 = vld [vmem:[%s1091 + $0xf8] sm:$0xf]
    %v1134 = vld [vmem:[%s1091 + $0xfc] sm:$0xff]
    %v1135 = vld [vmem:[%s1091 + $0x104] sm:$0xf]
    %v1136 = vld [vmem:[%s1091 + $0x108] sm:$0xff]
    %v1137 = vld [vmem:[%s1091 + $0x110] sm:$0xf]
    %v1138 = vld [vmem:[%s1091 + $0x114] sm:$0xff]
    %v1139 = vld [vmem:[%s1091 + $0x11c] sm:$0xf]
    %v1140 = vld [vmem:[%s1091 + $0x120] sm:$0xff]
    %v1141 = vld [vmem:[%s1091 + $0x128] sm:$0xf]
    %v1142 = vld [vmem:[%s1091 + $0x12c] sm:$0xff]
    %v1143 = vld [vmem:[%s1091 + $0x134] sm:$0xf]
    %v1144 = vld [vmem:[%s1091 + $0x138] sm:$0xff]
    %v1145 = vld [vmem:[%s1091 + $0x140] sm:$0xf]
    %v1146 = vld [vmem:[%s1091 + $0x144] sm:$0xff]
    %v1147 = vld [vmem:[%s1091 + $0x14c] sm:$0xf]
    %v1148 = vld [vmem:[%s1091 + $0x150] sm:$0xff]
    %v1149 = vld [vmem:[%s1091 + $0x158] sm:$0xf]
    %v1150 = vld [vmem:[%s1091 + $0x15c] sm:$0xff]
    %v1151 = vld [vmem:[%s1091 + $0x164] sm:$0xf]
    %v1152 = vld [vmem:[%s1091 + $0x168] sm:$0x77]
    %v1153 = vld [vmem:[%s1091 + $0x170] sm:$0x7]
    %v1216 = vunpack.c.l.b16 %v1092
    %v1217 = vunpack.c.h.b16 %v1092
    %v1218 = vunpack.c.l.b16 %v1093
    %v1219 = vunpack.c.l.b16 %v1094
    %v1220 = vunpack.c.h.b16 %v1094
    %v1221 = vunpack.c.l.b16 %v1095
    %v1222 = vunpack.c.l.b16 %v1096
    %v1223 = vunpack.c.h.b16 %v1096
    %v1224 = vunpack.c.l.b16 %v1097
    %v1225 = vunpack.c.l.b16 %v1098
    %v1226 = vunpack.c.h.b16 %v1098
    %v1227 = vunpack.c.l.b16 %v1099
    %v1228 = vunpack.c.l.b16 %v1100
    %v1229 = vunpack.c.h.b16 %v1100
    %v1230 = vunpack.c.l.b16 %v1101
    %v1231 = vunpack.c.l.b16 %v1102
    %v1232 = vunpack.c.h.b16 %v1102
    %v1233 = vunpack.c.l.b16 %v1103
    %v1234 = vunpack.c.l.b16 %v1104
    %v1235 = vunpack.c.h.b16 %v1104
    %v1236 = vunpack.c.l.b16 %v1105
    %v1237 = vunpack.c.l.b16 %v1106
    %v1238 = vunpack.c.h.b16 %v1106
    %v1239 = vunpack.c.l.b16 %v1107
    %v1240 = vunpack.c.l.b16 %v1108
    %v1241 = vunpack.c.h.b16 %v1108
    %v1242 = vunpack.c.l.b16 %v1109
    %v1243 = vunpack.c.l.b16 %v1110
    %v1244 = vunpack.c.h.b16 %v1110
    %v1245 = vunpack.c.l.b16 %v1111
    %v1246 = vunpack.c.l.b16 %v1112
    %v1247 = vunpack.c.h.b16 %v1112
    %v1248 = vunpack.c.l.b16 %v1113
    %v1249 = vunpack.c.l.b16 %v1114
    %v1250 = vunpack.c.h.b16 %v1114
    %v1251 = vunpack.c.l.b16 %v1115
    %v1252 = vunpack.c.l.b16 %v1116
    %v1253 = vunpack.c.h.b16 %v1116
    %v1254 = vunpack.c.l.b16 %v1117
    %v1255 = vunpack.c.l.b16 %v1118
    %v1256 = vunpack.c.h.b16 %v1118
    %v1257 = vunpack.c.l.b16 %v1119
    %v1258 = vunpack.c.l.b16 %v1120
    %v1259 = vunpack.c.h.b16 %v1120
    %v1260 = vunpack.c.l.b16 %v1121
    %v1261 = vunpack.c.l.b16 %v1122
    %v1262 = vunpack.c.h.b16 %v1122
    %v1263 = vunpack.c.l.b16 %v1123
    %v1264 = vunpack.c.l.b16 %v1124
    %v1265 = vunpack.c.h.b16 %v1124
    %v1266 = vunpack.c.l.b16 %v1125
    %v1267 = vunpack.c.l.b16 %v1126
    %v1268 = vunpack.c.h.b16 %v1126
    %v1269 = vunpack.c.l.b16 %v1127
    %v1270 = vunpack.c.l.b16 %v1128
    %v1271 = vunpack.c.h.b16 %v1128
    %v1272 = vunpack.c.l.b16 %v1129
    %v1273 = vunpack.c.l.b16 %v1130
    %v1274 = vunpack.c.h.b16 %v1130
    %v1275 = vunpack.c.l.b16 %v1131
    %v1276 = vunpack.c.l.b16 %v1132
    %v1277 = vunpack.c.h.b16 %v1132
    %v1278 = vunpack.c.l.b16 %v1133
    %v1279 = vunpack.c.l.b16 %v1134
    %v1280 = vunpack.c.h.b16 %v1134
    %v1281 = vunpack.c.l.b16 %v1135
    %v1282 = vunpack.c.l.b16 %v1136
    %v1283 = vunpack.c.h.b16 %v1136
    %v1284 = vunpack.c.l.b16 %v1137
    %v1285 = vunpack.c.l.b16 %v1138
    %v1286 = vunpack.c.h.b16 %v1138
    %v1287 = vunpack.c.l.b16 %v1139
    %v1288 = vunpack.c.l.b16 %v1140
    %v1289 = vunpack.c.h.b16 %v1140
    %v1290 = vunpack.c.l.b16 %v1141
    %v1291 = vunpack.c.l.b16 %v1142
    %v1292 = vunpack.c.h.b16 %v1142
    %v1293 = vunpack.c.l.b16 %v1143
    %v1294 = vunpack.c.l.b16 %v1144
    %v1295 = vunpack.c.h.b16 %v1144
    %v1296 = vunpack.c.l.b16 %v1145
    %v1297 = vunpack.c.l.b16 %v1146
    %v1298 = vunpack.c.h.b16 %v1146
    %v1299 = vunpack.c.l.b16 %v1147
    %v1300 = vunpack.c.l.b16 %v1148
    %v1301 = vunpack.c.h.b16 %v1148
    %v1302 = vunpack.c.l.b16 %v1149
    %v1303 = vunpack.c.l.b16 %v1150
    %v1304 = vunpack.c.h.b16 %v1150
    %v1305 = vunpack.c.l.b16 %v1151
    %v1306 = vunpack.c.l.b16 %v1152
    %v1307 = vunpack.c.h.b16 %v1152
    %v1308 = vunpack.c.l.b16 %v1153
    %v1309 = vpack.c.b16 %v1219, %v1216
    %v1310 = vpack.c.b16 %v1220, %v1217
    %v1311 = vpack.c.b16 %v1221, %v1218
    %v1312 = vpack.c.b16 %v1225, %v1222
    %v1313 = vpack.c.b16 %v1226, %v1223
    %v1314 = vpack.c.b16 %v1227, %v1224
    %v1315 = vpack.c.b16 %v1231, %v1228
    %v1316 = vpack.c.b16 %v1232, %v1229
    %v1317 = vpack.c.b16 %v1233, %v1230
    %v1318 = vpack.c.b16 %v1237, %v1234
    %v1319 = vpack.c.b16 %v1238, %v1235
    %v1320 = vpack.c.b16 %v1239, %v1236
    %v1321 = vpack.c.b16 %v1243, %v1240
    %v1322 = vpack.c.b16 %v1244, %v1241
    %v1323 = vpack.c.b16 %v1245, %v1242
    %v1324 = vpack.c.b16 %v1249, %v1246
    %v1325 = vpack.c.b16 %v1250, %v1247
    %v1326 = vpack.c.b16 %v1251, %v1248
    %v1327 = vpack.c.b16 %v1255, %v1252
    %v1328 = vpack.c.b16 %v1256, %v1253
    %v1329 = vpack.c.b16 %v1257, %v1254
    %v1330 = vpack.c.b16 %v1261, %v1258
    %v1331 = vpack.c.b16 %v1262, %v1259
    %v1332 = vpack.c.b16 %v1263, %v1260
    %v1333 = vpack.c.b16 %v1267, %v1264
    %v1334 = vpack.c.b16 %v1268, %v1265
    %v1335 = vpack.c.b16 %v1269, %v1266
    %v1336 = vpack.c.b16 %v1273, %v1270
    %v1337 = vpack.c.b16 %v1274, %v1271
    %v1338 = vpack.c.b16 %v1275, %v1272
    %v1339 = vpack.c.b16 %v1279, %v1276
    %v1340 = vpack.c.b16 %v1280, %v1277
    %v1341 = vpack.c.b16 %v1281, %v1278
    %v1342 = vpack.c.b16 %v1285, %v1282
    %v1343 = vpack.c.b16 %v1286, %v1283
    %v1344 = vpack.c.b16 %v1287, %v1284
    %v1345 = vpack.c.b16 %v1291, %v1288
    %v1346 = vpack.c.b16 %v1292, %v1289
    %v1347 = vpack.c.b16 %v1293, %v1290
    %v1348 = vpack.c.b16 %v1297, %v1294
    %v1349 = vpack.c.b16 %v1298, %v1295
    %v1350 = vpack.c.b16 %v1299, %v1296
    %v1351 = vpack.c.b16 %v1303, %v1300
    %v1352 = vpack.c.b16 %v1304, %v1301
    %v1353 = vpack.c.b16 %v1305, %v1302
    %v1354 = vpack.c.b16 %v1306, %v1306
    %v1355 = vpack.c.b16 %v1307, %v1307
    %v1356 = vpack.c.b16 %v1308, %v1308
    %v1403 = vand.u32 %v1354, %v545
    %v1406 = vand.u32 %v1355, %v545
    %v1409 = vand.u32 %v1356, %v545
    %1411 = vmatprep.subr.bf16.mxu0 %v1331
    %1412 = vmatpush1.bf16.msra.mxu0 %v1330
    %1413 = vmatprep.subr.bf16.mxu0 %v1328
    %1414 = vmatpush1.bf16.msra.mxu0 %v1327
    %1415 = vmatprep.subr.bf16.mxu0 %v1325
    %1416 = vmatpush1.bf16.msra.mxu0 %v1324
    %1417 = vmatprep.subr.bf16.mxu0 %v1322
    %1418 = vmatpush1.bf16.msra.mxu0 %v1321
    %1419 = vmatprep.subr.bf16.mxu0 %v1319
    %1420 = vmatpush1.bf16.msra.mxu0 %v1318
    %1421 = vmatprep.subr.bf16.mxu0 %v1316
    %1422 = vmatpush1.bf16.msra.mxu0 %v1315
    %1423 = vmatprep.subr.bf16.mxu0 %v1313
    %1424 = vmatpush1.bf16.msra.mxu0 %v1312
    %1425 = vmatprep.subr.bf16.mxu0 %v1310
    %1426 = vmatpush1.bf16.msra.mxu0 %v1309
    %1427 = vmatprep.subr.bf16.mxu0 %v1406
    %1428 = vmatpush2.bf16.msra.mxu0 %v1403
    %1429 = vmatprep.subr.bf16.mxu0 %v1352
    %1430 = vmatpush2.bf16.msra.mxu0 %v1351
    %1431 = vmatprep.subr.bf16.mxu0 %v1349
    %1432 = vmatpush2.bf16.msra.mxu0 %v1348
    %1433 = vmatprep.subr.bf16.mxu0 %v1346
    %1434 = vmatpush2.bf16.msra.mxu0 %v1345
    %1435 = vmatprep.subr.bf16.mxu0 %v1343
    %1436 = vmatpush2.bf16.msra.mxu0 %v1342
    %1437 = vmatprep.subr.bf16.mxu0 %v1340
    %1438 = vmatpush2.bf16.msra.mxu0 %v1339
    %1439 = vmatprep.subr.bf16.mxu0 %v1337
    %1440 = vmatpush2.bf16.msra.mxu0 %v1336
    %1441 = vmatprep.subr.bf16.mxu0 %v1334
    %1442 = vmatpush2.bf16.msra.mxu0 %v1333
    %1443 = vmatprep.mubr.bf16.mxu0 %v537
    %1444 = vmatmul.mubr.bf16.gmra.mxu0 %v222
    %v1445 = vpop.f32.mrf.mxu0
    %v1446 = vadd.f32 0.0, %v1445
    %v1447 = vpop.f32.mrf.mxu0
    %v1448 = vadd.f32 0.0, %v1447
    %v1449 = vpop.f32.mrf.mxu0
    %v1450 = vadd.f32 0.0, %v1449
    %v1451 = vpop.f32.mrf.mxu0
    %v1452 = vadd.f32 0.0, %v1451
    %1453 = vmatprep.mubr.bf16.mxu0 %v540
    %1454 = vmatmul.mubr.bf16.gmra.mxu0 %v224
    %v1455 = vpop.f32.mrf.mxu0
    %v1456 = vadd.f32 0.0, %v1455
    %v1457 = vpop.f32.mrf.mxu0
    %v1458 = vadd.f32 0.0, %v1457
    %v1459 = vpop.f32.mrf.mxu0
    %v1460 = vadd.f32 0.0, %v1459
    %v1461 = vpop.f32.mrf.mxu0
    %v1462 = vadd.f32 0.0, %v1461
    %1463 = vdwg.mxu0
    %1464 = vmatprep.subr.bf16.mxu0 0
    %1465 = vmatpush1.bf16.msra.mxu0 %v1332
    %1466 = vmatprep.subr.bf16.mxu0 0
    %1467 = vmatpush1.bf16.msra.mxu0 %v1329
    %1468 = vmatprep.subr.bf16.mxu0 0
    %1469 = vmatpush1.bf16.msra.mxu0 %v1326
    %1470 = vmatprep.subr.bf16.mxu0 0
    %1471 = vmatpush1.bf16.msra.mxu0 %v1323
    %1472 = vmatprep.subr.bf16.mxu0 0
    %1473 = vmatpush1.bf16.msra.mxu0 %v1320
    %1474 = vmatprep.subr.bf16.mxu0 0
    %1475 = vmatpush1.bf16.msra.mxu0 %v1317
    %1476 = vmatprep.subr.bf16.mxu0 0
    %1477 = vmatpush1.bf16.msra.mxu0 %v1314
    %1478 = vmatprep.subr.bf16.mxu0 0
    %1479 = vmatpush1.bf16.msra.mxu0 %v1311
    %1480 = vmatprep.subr.bf16.mxu0 0
    %1481 = vmatpush2.bf16.msra.mxu0 %v1409
    %1482 = vmatprep.subr.bf16.mxu0 0
    %1483 = vmatpush2.bf16.msra.mxu0 %v1353
    %1484 = vmatprep.subr.bf16.mxu0 0
    %1485 = vmatpush2.bf16.msra.mxu0 %v1350
    %1486 = vmatprep.subr.bf16.mxu0 0
    %1487 = vmatpush2.bf16.msra.mxu0 %v1347
    %1488 = vmatprep.subr.bf16.mxu0 0
    %1489 = vmatpush2.bf16.msra.mxu0 %v1344
    %1490 = vmatprep.subr.bf16.mxu0 0
    %1491 = vmatpush2.bf16.msra.mxu0 %v1341
    %1492 = vmatprep.subr.bf16.mxu0 0
    %1493 = vmatpush2.bf16.msra.mxu0 %v1338
    %1494 = vmatprep.subr.bf16.mxu0 0
    %1495 = vmatpush2.bf16.msra.mxu0 %v1335
    %1496 = vmatprep.mubr.bf16.mxu0 %v537
    %1497 = vmatmul.mubr.bf16.gmra.mxu0 %v222
    %v1498 = vpop.f32.mrf.mxu0
    %v1499 = vadd.f32 0.0, %v1498
    %v1500 = vpop.f32.mrf.mxu0
    %v1501 = vpop.f32.mrf.mxu0
    %v1502 = vadd.f32 0.0, %v1501
    %v1503 = vpop.f32.mrf.mxu0
    %1504 = vmatprep.mubr.bf16.mxu0 %v540
    %1505 = vmatmul.mubr.bf16.gmra.mxu0 %v224
    %v1506 = vpop.f32.mrf.mxu0
    %v1507 = vadd.f32 0.0, %v1506
    %v1508 = vpop.f32.mrf.mxu0
    %v1509 = vpop.f32.mrf.mxu0
    %v1510 = vadd.f32 0.0, %v1509
    %v1511 = vpop.f32.mrf.mxu0
    %1512 = vdwg.mxu0
    %v1513 = vmax.f32 %v1079, %v1446
    %v1514 = vmax.f32 %v1080, %v1448
    %v1515 = vmax.f32 %v1081, %v1499
    %v1516 = vmax.f32 %v1082, %v1450
    %v1517 = vmax.f32 %v1083, %v1452
    %v1518 = vmax.f32 %v1084, %v1502
    %v1519 = vmax.f32 %v1085, %v1456
    %v1520 = vmax.f32 %v1086, %v1458
    %v1521 = vmax.f32 %v1087, %v1507
    %v1522 = vmax.f32 %v1088, %v1460
    %v1523 = vmax.f32 %v1089, %v1462
    %v1524 = vmax.f32 %v1090, %v1510
    %v1525 = vld [vmem:[%s6] sm:$0x7]
    %v1527 = vlaneseq
    %v1528 = vshrl.u32 %v1527, 7
    %v1529 = vsub.s32 0, %v1528
    %v1530 = vrot.slane %v1525, %v1529
    %v1531 = vlaneseq
    %v1532 = vshrl.u32 %v1531, 7
    %v1533 = vsub.s32 1, %v1532
    %v1534 = vrot.slane %v1525, %v1533
    %v1535 = vlaneseq
    %v1536 = vshrl.u32 %v1535, 7
    %v1537 = vsub.s32 2, %v1536
    %v1538 = vrot.slane %v1525, %v1537
    %v1542 = vadd.f32 %v1513, %v1530
    %v1543 = vadd.f32 %v1514, %v1534
    %v1544 = vadd.f32 %v1515, %v1538
    %v1545 = vadd.f32 %v1516, %v1530
    %v1546 = vadd.f32 %v1517, %v1534
    %v1547 = vadd.f32 %v1518, %v1538
    %v1548 = vadd.f32 %v1519, %v1530
    %v1549 = vadd.f32 %v1520, %v1534
    %v1550 = vadd.f32 %v1521, %v1538
    %v1551 = vadd.f32 %v1522, %v1530
    %v1552 = vadd.f32 %v1523, %v1534
    %v1553 = vadd.f32 %v1524, %v1538
    %v1554 = vpack.c.bf16 %v1545, %v1542
    %v1555 = vpack.c.bf16 %v1546, %v1543
    %v1556 = vpack.c.bf16 %v1547, %v1544
    %v1557 = vpack.c.bf16 %v1551, %v1548
    %v1558 = vpack.c.bf16 %v1552, %v1549
    %v1559 = vpack.c.bf16 %v1553, %v1550
    %v1560 = vld [vmem:[#allocation4] sm:$0xff]
    %v1561 = vld [vmem:[#allocation4 + $0x8] sm:$0xff]
    %v1562 = vld [vmem:[#allocation4 + $0x10] sm:$0xff]
    %v1563 = vld [vmem:[#allocation4 + $0x18] sm:$0xff]
    %v1564 = vld [vmem:[#allocation4 + $0x20] sm:$0xff]
    %v1565 = vld [vmem:[#allocation4 + $0x28] sm:$0xff]
    %v1566 = vld [vmem:[#allocation4 + $0x30] sm:$0xff]
    %v1567 = vld [vmem:[#allocation4 + $0x38] sm:$0xff]
    %v1568 = vld [vmem:[#allocation4 + $0x40] sm:$0xff]
    %v1569 = vld [vmem:[#allocation4 + $0x48] sm:$0xff]
    %v1570 = vld [vmem:[#allocation4 + $0x50] sm:$0xff]
    %v1571 = vld [vmem:[#allocation4 + $0x58] sm:$0xff]
    %v1572 = vld [vmem:[#allocation4 + $0x60] sm:$0xff]
    %v1573 = vld [vmem:[#allocation4 + $0x68] sm:$0xff]
    %v1574 = vld [vmem:[#allocation4 + $0x70] sm:$0xff]
    %v1575 = vld [vmem:[#allocation4 + $0x78] sm:$0xff]
    %v1576 = vld [vmem:[#allocation4 + $0x80] sm:$0xff]
    %v1577 = vld [vmem:[#allocation4 + $0x88] sm:$0xff]
    %v1578 = vld [vmem:[#allocation4 + $0x90] sm:$0xff]
    %v1579 = vld [vmem:[#allocation4 + $0x98] sm:$0xff]
    %v1580 = vld [vmem:[#allocation4 + $0xa0] sm:$0xff]
    %v1581 = vld [vmem:[#allocation4 + $0xa8] sm:$0xff]
    %v1582 = vld [vmem:[#allocation4 + $0xb0] sm:$0xff]
    %v1583 = vld [vmem:[#allocation4 + $0xb8] sm:$0xff]
    %v1584 = vld [vmem:[#allocation4 + $0xc0] sm:$0xff]
    %v1585 = vld [vmem:[#allocation4 + $0xc8] sm:$0xff]
    %v1586 = vld [vmem:[#allocation4 + $0xd0] sm:$0xff]
    %v1587 = vld [vmem:[#allocation4 + $0xd8] sm:$0xff]
    %v1588 = vld [vmem:[#allocation4 + $0xe0] sm:$0xff]
    %v1589 = vld [vmem:[#allocation4 + $0xe8] sm:$0xff]
    %v1590 = vld [vmem:[#allocation4 + $0xf0] sm:$0xff]
    %v1591 = vld [vmem:[#allocation4 + $0xf8] sm:$0xff]
    %v1592 = vld [vmem:[#allocation4 + $0x100] sm:$0xff]
    %v1593 = vld [vmem:[#allocation4 + $0x108] sm:$0xff]
    %v1594 = vld [vmem:[#allocation4 + $0x110] sm:$0xff]
    %v1595 = vld [vmem:[#allocation4 + $0x118] sm:$0xff]
    %v1596 = vld [vmem:[#allocation4 + $0x120] sm:$0xff]
    %v1597 = vld [vmem:[#allocation4 + $0x128] sm:$0xff]
    %v1598 = vld [vmem:[#allocation4 + $0x130] sm:$0xff]
    %v1599 = vld [vmem:[#allocation4 + $0x138] sm:$0xff]
    %v1600 = vld [vmem:[#allocation4 + $0x140] sm:$0xff]
    %v1601 = vld [vmem:[#allocation4 + $0x148] sm:$0xff]
    %v1602 = vld [vmem:[#allocation4 + $0x150] sm:$0xff]
    %v1603 = vld [vmem:[#allocation4 + $0x158] sm:$0xff]
    %v1604 = vld [vmem:[#allocation4 + $0x160] sm:$0xff]
    %v1605 = vld [vmem:[#allocation4 + $0x168] sm:$0xff]
    %v1606 = vld [vmem:[#allocation4 + $0x170] sm:$0xff]
    %v1607 = vld [vmem:[#allocation4 + $0x178] sm:$0xff]
    %v1656 = vunpack.c.l.b16 %v1560
    %v1657 = vunpack.c.h.b16 %v1560
    %v1658 = vunpack.c.l.b16 %v1561
    %v1659 = vunpack.c.h.b16 %v1561
    %v1660 = vunpack.c.l.b16 %v1562
    %v1661 = vunpack.c.h.b16 %v1562
    %v1662 = vunpack.c.l.b16 %v1563
    %v1663 = vunpack.c.h.b16 %v1563
    %v1664 = vunpack.c.l.b16 %v1564
    %v1665 = vunpack.c.h.b16 %v1564
    %v1666 = vunpack.c.l.b16 %v1565
    %v1667 = vunpack.c.h.b16 %v1565
    %v1668 = vunpack.c.l.b16 %v1566
    %v1669 = vunpack.c.h.b16 %v1566
    %v1670 = vunpack.c.l.b16 %v1567
    %v1671 = vunpack.c.h.b16 %v1567
    %v1672 = vunpack.c.l.b16 %v1568
    %v1673 = vunpack.c.h.b16 %v1568
    %v1674 = vunpack.c.l.b16 %v1569
    %v1675 = vunpack.c.h.b16 %v1569
    %v1676 = vunpack.c.l.b16 %v1570
    %v1677 = vunpack.c.h.b16 %v1570
    %v1678 = vunpack.c.l.b16 %v1571
    %v1679 = vunpack.c.h.b16 %v1571
    %v1680 = vunpack.c.l.b16 %v1572
    %v1681 = vunpack.c.h.b16 %v1572
    %v1682 = vunpack.c.l.b16 %v1573
    %v1683 = vunpack.c.h.b16 %v1573
    %v1684 = vunpack.c.l.b16 %v1574
    %v1685 = vunpack.c.h.b16 %v1574
    %v1686 = vunpack.c.l.b16 %v1575
    %v1687 = vunpack.c.h.b16 %v1575
    %v1688 = vunpack.c.l.b16 %v1576
    %v1689 = vunpack.c.h.b16 %v1576
    %v1690 = vunpack.c.l.b16 %v1577
    %v1691 = vunpack.c.h.b16 %v1577
    %v1692 = vunpack.c.l.b16 %v1578
    %v1693 = vunpack.c.h.b16 %v1578
    %v1694 = vunpack.c.l.b16 %v1579
    %v1695 = vunpack.c.h.b16 %v1579
    %v1696 = vunpack.c.l.b16 %v1580
    %v1697 = vunpack.c.h.b16 %v1580
    %v1698 = vunpack.c.l.b16 %v1581
    %v1699 = vunpack.c.h.b16 %v1581
    %v1700 = vunpack.c.l.b16 %v1582
    %v1701 = vunpack.c.h.b16 %v1582
    %v1702 = vunpack.c.l.b16 %v1583
    %v1703 = vunpack.c.h.b16 %v1583
    %v1704 = vunpack.c.l.b16 %v1584
    %v1705 = vunpack.c.h.b16 %v1584
    %v1706 = vunpack.c.l.b16 %v1585
    %v1707 = vunpack.c.h.b16 %v1585
    %v1708 = vunpack.c.l.b16 %v1586
    %v1709 = vunpack.c.h.b16 %v1586
    %v1710 = vunpack.c.l.b16 %v1587
    %v1711 = vunpack.c.h.b16 %v1587
    %v1712 = vunpack.c.l.b16 %v1588
    %v1713 = vunpack.c.h.b16 %v1588
    %v1714 = vunpack.c.l.b16 %v1589
    %v1715 = vunpack.c.h.b16 %v1589
    %v1716 = vunpack.c.l.b16 %v1590
    %v1717 = vunpack.c.h.b16 %v1590
    %v1718 = vunpack.c.l.b16 %v1591
    %v1719 = vunpack.c.h.b16 %v1591
    %v1720 = vunpack.c.l.b16 %v1592
    %v1721 = vunpack.c.h.b16 %v1592
    %v1722 = vunpack.c.l.b16 %v1593
    %v1723 = vunpack.c.h.b16 %v1593
    %v1724 = vunpack.c.l.b16 %v1594
    %v1725 = vunpack.c.h.b16 %v1594
    %v1726 = vunpack.c.l.b16 %v1595
    %v1727 = vunpack.c.h.b16 %v1595
    %v1728 = vunpack.c.l.b16 %v1596
    %v1729 = vunpack.c.h.b16 %v1596
    %v1730 = vunpack.c.l.b16 %v1597
    %v1731 = vunpack.c.h.b16 %v1597
    %v1732 = vunpack.c.l.b16 %v1598
    %v1733 = vunpack.c.h.b16 %v1598
    %v1734 = vunpack.c.l.b16 %v1599
    %v1735 = vunpack.c.h.b16 %v1599
    %v1736 = vunpack.c.l.b16 %v1600
    %v1737 = vunpack.c.h.b16 %v1600
    %v1738 = vunpack.c.l.b16 %v1601
    %v1739 = vunpack.c.h.b16 %v1601
    %v1740 = vunpack.c.l.b16 %v1602
    %v1741 = vunpack.c.h.b16 %v1602
    %v1742 = vunpack.c.l.b16 %v1603
    %v1743 = vunpack.c.h.b16 %v1603
    %v1744 = vunpack.c.l.b16 %v1604
    %v1745 = vunpack.c.h.b16 %v1604
    %v1746 = vunpack.c.l.b16 %v1605
    %v1747 = vunpack.c.h.b16 %v1605
    %v1748 = vunpack.c.l.b16 %v1606
    %v1749 = vunpack.c.h.b16 %v1606
    %v1750 = vunpack.c.l.b16 %v1607
    %v1751 = vunpack.c.h.b16 %v1607
    %v1752 = vpack.c.b16 %v1658, %v1656
    %v1753 = vpack.c.b16 %v1659, %v1657
    %v1754 = vpack.c.b16 %v1662, %v1660
    %v1755 = vpack.c.b16 %v1663, %v1661
    %v1756 = vpack.c.b16 %v1666, %v1664
    %v1757 = vpack.c.b16 %v1667, %v1665
    %v1758 = vpack.c.b16 %v1670, %v1668
    %v1759 = vpack.c.b16 %v1671, %v1669
    %v1760 = vpack.c.b16 %v1674, %v1672
    %v1761 = vpack.c.b16 %v1675, %v1673
    %v1762 = vpack.c.b16 %v1678, %v1676
    %v1763 = vpack.c.b16 %v1679, %v1677
    %v1764 = vpack.c.b16 %v1682, %v1680
    %v1765 = vpack.c.b16 %v1683, %v1681
    %v1766 = vpack.c.b16 %v1686, %v1684
    %v1767 = vpack.c.b16 %v1687, %v1685
    %v1768 = vpack.c.b16 %v1690, %v1688
    %v1769 = vpack.c.b16 %v1691, %v1689
    %v1770 = vpack.c.b16 %v1694, %v1692
    %v1771 = vpack.c.b16 %v1695, %v1693
    %v1772 = vpack.c.b16 %v1698, %v1696
    %v1773 = vpack.c.b16 %v1699, %v1697
    %v1774 = vpack.c.b16 %v1702, %v1700
    %v1775 = vpack.c.b16 %v1703, %v1701
    %v1776 = vpack.c.b16 %v1706, %v1704
    %v1777 = vpack.c.b16 %v1707, %v1705
    %v1778 = vpack.c.b16 %v1710, %v1708
    %v1779 = vpack.c.b16 %v1711, %v1709
    %v1780 = vpack.c.b16 %v1714, %v1712
    %v1781 = vpack.c.b16 %v1715, %v1713
    %v1782 = vpack.c.b16 %v1718, %v1716
    %v1783 = vpack.c.b16 %v1719, %v1717
    %v1784 = vpack.c.b16 %v1722, %v1720
    %v1785 = vpack.c.b16 %v1723, %v1721
    %v1786 = vpack.c.b16 %v1726, %v1724
    %v1787 = vpack.c.b16 %v1727, %v1725
    %v1788 = vpack.c.b16 %v1730, %v1728
    %v1789 = vpack.c.b16 %v1731, %v1729
    %v1790 = vpack.c.b16 %v1734, %v1732
    %v1791 = vpack.c.b16 %v1735, %v1733
    %v1792 = vpack.c.b16 %v1738, %v1736
    %v1793 = vpack.c.b16 %v1739, %v1737
    %v1794 = vpack.c.b16 %v1742, %v1740
    %v1795 = vpack.c.b16 %v1743, %v1741
    %v1796 = vpack.c.b16 %v1746, %v1744
    %v1797 = vpack.c.b16 %v1747, %v1745
    %v1798 = vpack.c.b16 %v1750, %v1748
    %v1799 = vpack.c.b16 %v1751, %v1749
    %1848 = vmatprep.subr.bf16.mxu0 %v1767
    %1849 = vmatpush1.bf16.msra.mxu0 %v1766
    %1850 = vmatprep.subr.bf16.mxu0 %v1765
    %1851 = vmatpush1.bf16.msra.mxu0 %v1764
    %1852 = vmatprep.subr.bf16.mxu0 %v1763
    %1853 = vmatpush1.bf16.msra.mxu0 %v1762
    %1854 = vmatprep.subr.bf16.mxu0 %v1761
    %1855 = vmatpush1.bf16.msra.mxu0 %v1760
    %1856 = vmatprep.subr.bf16.mxu0 %v1759
    %1857 = vmatpush1.bf16.msra.mxu0 %v1758
    %1858 = vmatprep.subr.bf16.mxu0 %v1757
    %1859 = vmatpush1.bf16.msra.mxu0 %v1756
    %1860 = vmatprep.subr.bf16.mxu0 %v1755
    %1861 = vmatpush1.bf16.msra.mxu0 %v1754
    %1862 = vmatprep.subr.bf16.mxu0 %v1753
    %1863 = vmatpush1.bf16.msra.mxu0 %v1752
    %1864 = vmatprep.subr.bf16.mxu0 %v1783
    %1865 = vmatpush2.bf16.msra.mxu0 %v1782
    %1866 = vmatprep.subr.bf16.mxu0 %v1781
    %1867 = vmatpush2.bf16.msra.mxu0 %v1780
    %1868 = vmatprep.subr.bf16.mxu0 %v1779
    %1869 = vmatpush2.bf16.msra.mxu0 %v1778
    %1870 = vmatprep.subr.bf16.mxu0 %v1777
    %1871 = vmatpush2.bf16.msra.mxu0 %v1776
    %1872 = vmatprep.subr.bf16.mxu0 %v1775
    %1873 = vmatpush2.bf16.msra.mxu0 %v1774
    %1874 = vmatprep.subr.bf16.mxu0 %v1773
    %1875 = vmatpush2.bf16.msra.mxu0 %v1772
    %1876 = vmatprep.subr.bf16.mxu0 %v1771
    %1877 = vmatpush2.bf16.msra.mxu0 %v1770
    %1878 = vmatprep.subr.bf16.mxu0 %v1769
    %1879 = vmatpush2.bf16.msra.mxu0 %v1768
    %1880 = vmatprep.mubr.bf16.mxu0 %v1555
    %1881 = vmatmul.mubr.bf16.gmra.mxu0 %v1554
    %v1882 = vpop.f32.mrf.mxu0
    %v1883 = vadd.f32 0.0, %v1882
    %v1884 = vpop.f32.mrf.mxu0
    %v1885 = vadd.f32 0.0, %v1884
    %v1886 = vpop.f32.mrf.mxu0
    %v1887 = vadd.f32 0.0, %v1886
    %v1888 = vpop.f32.mrf.mxu0
    %v1889 = vadd.f32 0.0, %v1888
    %1890 = vmatprep.mubr.bf16.mxu0 %v1558
    %1891 = vmatmul.mubr.bf16.gmra.mxu0 %v1557
    %v1892 = vpop.f32.mrf.mxu0
    %v1893 = vadd.f32 0.0, %v1892
    %v1894 = vpop.f32.mrf.mxu0
    %v1895 = vadd.f32 0.0, %v1894
    %v1896 = vpop.f32.mrf.mxu0
    %v1897 = vadd.f32 0.0, %v1896
    %v1898 = vpop.f32.mrf.mxu0
    %v1899 = vadd.f32 0.0, %v1898
    %1900 = vdwg.mxu0
    %1901 = vmatprep.subr.bf16.mxu0 %v1799
    %1902 = vmatpush1.bf16.msra.mxu0 %v1798
    %1903 = vmatprep.subr.bf16.mxu0 %v1797
    %1904 = vmatpush1.bf16.msra.mxu0 %v1796
    %1905 = vmatprep.subr.bf16.mxu0 %v1795
    %1906 = vmatpush1.bf16.msra.mxu0 %v1794
    %1907 = vmatprep.subr.bf16.mxu0 %v1793
    %1908 = vmatpush1.bf16.msra.mxu0 %v1792
    %1909 = vmatprep.subr.bf16.mxu0 %v1791
    %1910 = vmatpush1.bf16.msra.mxu0 %v1790
    %1911 = vmatprep.subr.bf16.mxu0 %v1789
    %1912 = vmatpush1.bf16.msra.mxu0 %v1788
    %1913 = vmatprep.subr.bf16.mxu0 %v1787
    %1914 = vmatpush1.bf16.msra.mxu0 %v1786
    %1915 = vmatprep.subr.bf16.mxu0 %v1785
    %1916 = vmatpush1.bf16.msra.mxu0 %v1784
    %1917 = vmatprep.subr.bf16.mxu0 0
    %1918 = vmatpush2.bf16.msra.mxu0 0
    %1919 = vmatprep.subr.bf16.mxu0 0
    %1920 = vmatpush2.bf16.msra.mxu0 0
    %1921 = vmatprep.subr.bf16.mxu0 0
    %1922 = vmatpush2.bf16.msra.mxu0 0
    %1923 = vmatprep.subr.bf16.mxu0 0
    %1924 = vmatpush2.bf16.msra.mxu0 0
    %1925 = vmatprep.subr.bf16.mxu0 0
    %1926 = vmatpush2.bf16.msra.mxu0 0
    %1927 = vmatprep.subr.bf16.mxu0 0
    %1928 = vmatpush2.bf16.msra.mxu0 0
    %1929 = vmatprep.subr.bf16.mxu0 0
    %1930 = vmatpush2.bf16.msra.mxu0 0
    %1931 = vmatprep.subr.bf16.mxu0 0
    %1932 = vmatpush2.bf16.msra.mxu0 0
    %1933 = vmatprep.mubr.bf16.mxu0 0
    %1934 = vmatmul.mubr.bf16.gmra.mxu0 %v1556
    %v1935 = vpop.f32.mrf.mxu0
    %v1936 = vadd.f32 %v1883, %v1935
    %v1937 = vpop.f32.mrf.mxu0
    %v1938 = vadd.f32 %v1885, %v1937
    %v1939 = vpop.f32.mrf.mxu0
    %v1940 = vadd.f32 %v1887, %v1939
    %v1941 = vpop.f32.mrf.mxu0
    %v1942 = vadd.f32 %v1889, %v1941
    %1943 = vmatprep.mubr.bf16.mxu0 0
    %1944 = vmatmul.mubr.bf16.gmra.mxu0 %v1559
    %v1945 = vpop.f32.mrf.mxu0
    %v1946 = vadd.f32 %v1893, %v1945
    %v1947 = vpop.f32.mrf.mxu0
    %v1948 = vadd.f32 %v1895, %v1947
    %v1949 = vpop.f32.mrf.mxu0
    %v1950 = vadd.f32 %v1897, %v1949
    %v1951 = vpop.f32.mrf.mxu0
    %v1952 = vadd.f32 %v1899, %v1951
    %1953 = vdwg.mxu0
    %s1954 = scalar_lea.vmem [#allocation4], 384
    %v1955 = vld [vmem:[%s1954] sm:$0xff]
    %v1956 = vld [vmem:[%s1954 + $0x8] sm:$0xff]
    %v1957 = vld [vmem:[%s1954 + $0x10] sm:$0xff]
    %v1958 = vld [vmem:[%s1954 + $0x18] sm:$0xff]
    %v1959 = vld [vmem:[%s1954 + $0x20] sm:$0xff]
    %v1960 = vld [vmem:[%s1954 + $0x28] sm:$0xff]
    %v1961 = vld [vmem:[%s1954 + $0x30] sm:$0xff]
    %v1962 = vld [vmem:[%s1954 + $0x38] sm:$0xff]
    %v1963 = vld [vmem:[%s1954 + $0x40] sm:$0xff]
    %v1964 = vld [vmem:[%s1954 + $0x48] sm:$0xff]
    %v1965 = vld [vmem:[%s1954 + $0x50] sm:$0xff]
    %v1966 = vld [vmem:[%s1954 + $0x58] sm:$0xff]
    %v1967 = vld [vmem:[%s1954 + $0x60] sm:$0xff]
    %v1968 = vld [vmem:[%s1954 + $0x68] sm:$0xff]
    %v1969 = vld [vmem:[%s1954 + $0x70] sm:$0xff]
    %v1970 = vld [vmem:[%s1954 + $0x78] sm:$0xff]
    %v1971 = vld [vmem:[%s1954 + $0x80] sm:$0xff]
    %v1972 = vld [vmem:[%s1954 + $0x88] sm:$0xff]
    %v1973 = vld [vmem:[%s1954 + $0x90] sm:$0xff]
    %v1974 = vld [vmem:[%s1954 + $0x98] sm:$0xff]
    %v1975 = vld [vmem:[%s1954 + $0xa0] sm:$0xff]
    %v1976 = vld [vmem:[%s1954 + $0xa8] sm:$0xff]
    %v1977 = vld [vmem:[%s1954 + $0xb0] sm:$0xff]
    %v1978 = vld [vmem:[%s1954 + $0xb8] sm:$0xff]
    %v1979 = vld [vmem:[%s1954 + $0xc0] sm:$0xff]
    %v1980 = vld [vmem:[%s1954 + $0xc8] sm:$0xff]
    %v1981 = vld [vmem:[%s1954 + $0xd0] sm:$0xff]
    %v1982 = vld [vmem:[%s1954 + $0xd8] sm:$0xff]
    %v1983 = vld [vmem:[%s1954 + $0xe0] sm:$0xff]
    %v1984 = vld [vmem:[%s1954 + $0xe8] sm:$0xff]
    %v1985 = vld [vmem:[%s1954 + $0xf0] sm:$0xff]
    %v1986 = vld [vmem:[%s1954 + $0xf8] sm:$0xff]
    %v1987 = vld [vmem:[%s1954 + $0x100] sm:$0xff]
    %v1988 = vld [vmem:[%s1954 + $0x108] sm:$0xff]
    %v1989 = vld [vmem:[%s1954 + $0x110] sm:$0xff]
    %v1990 = vld [vmem:[%s1954 + $0x118] sm:$0xff]
    %v1991 = vld [vmem:[%s1954 + $0x120] sm:$0xff]
    %v1992 = vld [vmem:[%s1954 + $0x128] sm:$0xff]
    %v1993 = vld [vmem:[%s1954 + $0x130] sm:$0xff]
    %v1994 = vld [vmem:[%s1954 + $0x138] sm:$0xff]
    %v1995 = vld [vmem:[%s1954 + $0x140] sm:$0xff]
    %v1996 = vld [vmem:[%s1954 + $0x148] sm:$0xff]
    %v1997 = vld [vmem:[%s1954 + $0x150] sm:$0xff]
    %v1998 = vld [vmem:[%s1954 + $0x158] sm:$0xff]
    %v1999 = vld [vmem:[%s1954 + $0x160] sm:$0xff]
    %v2000 = vld [vmem:[%s1954 + $0x168] sm:$0xff]
    %v2001 = vld [vmem:[%s1954 + $0x170] sm:$0xff]
    %v2002 = vld [vmem:[%s1954 + $0x178] sm:$0xff]
    %v2051 = vunpack.c.l.b16 %v1955
    %v2052 = vunpack.c.h.b16 %v1955
    %v2053 = vunpack.c.l.b16 %v1956
    %v2054 = vunpack.c.h.b16 %v1956
    %v2055 = vunpack.c.l.b16 %v1957
    %v2056 = vunpack.c.h.b16 %v1957
    %v2057 = vunpack.c.l.b16 %v1958
    %v2058 = vunpack.c.h.b16 %v1958
    %v2059 = vunpack.c.l.b16 %v1959
    %v2060 = vunpack.c.h.b16 %v1959
    %v2061 = vunpack.c.l.b16 %v1960
    %v2062 = vunpack.c.h.b16 %v1960
    %v2063 = vunpack.c.l.b16 %v1961
    %v2064 = vunpack.c.h.b16 %v1961
    %v2065 = vunpack.c.l.b16 %v1962
    %v2066 = vunpack.c.h.b16 %v1962
    %v2067 = vunpack.c.l.b16 %v1963
    %v2068 = vunpack.c.h.b16 %v1963
    %v2069 = vunpack.c.l.b16 %v1964
    %v2070 = vunpack.c.h.b16 %v1964
    %v2071 = vunpack.c.l.b16 %v1965
    %v2072 = vunpack.c.h.b16 %v1965
    %v2073 = vunpack.c.l.b16 %v1966
    %v2074 = vunpack.c.h.b16 %v1966
    %v2075 = vunpack.c.l.b16 %v1967
    %v2076 = vunpack.c.h.b16 %v1967
    %v2077 = vunpack.c.l.b16 %v1968
    %v2078 = vunpack.c.h.b16 %v1968
    %v2079 = vunpack.c.l.b16 %v1969
    %v2080 = vunpack.c.h.b16 %v1969
    %v2081 = vunpack.c.l.b16 %v1970
    %v2082 = vunpack.c.h.b16 %v1970
    %v2083 = vunpack.c.l.b16 %v1971
    %v2084 = vunpack.c.h.b16 %v1971
    %v2085 = vunpack.c.l.b16 %v1972
    %v2086 = vunpack.c.h.b16 %v1972
    %v2087 = vunpack.c.l.b16 %v1973
    %v2088 = vunpack.c.h.b16 %v1973
    %v2089 = vunpack.c.l.b16 %v1974
    %v2090 = vunpack.c.h.b16 %v1974
    %v2091 = vunpack.c.l.b16 %v1975
    %v2092 = vunpack.c.h.b16 %v1975
    %v2093 = vunpack.c.l.b16 %v1976
    %v2094 = vunpack.c.h.b16 %v1976
    %v2095 = vunpack.c.l.b16 %v1977
    %v2096 = vunpack.c.h.b16 %v1977
    %v2097 = vunpack.c.l.b16 %v1978
    %v2098 = vunpack.c.h.b16 %v1978
    %v2099 = vunpack.c.l.b16 %v1979
    %v2100 = vunpack.c.h.b16 %v1979
    %v2101 = vunpack.c.l.b16 %v1980
    %v2102 = vunpack.c.h.b16 %v1980
    %v2103 = vunpack.c.l.b16 %v1981
    %v2104 = vunpack.c.h.b16 %v1981
    %v2105 = vunpack.c.l.b16 %v1982
    %v2106 = vunpack.c.h.b16 %v1982
    %v2107 = vunpack.c.l.b16 %v1983
    %v2108 = vunpack.c.h.b16 %v1983
    %v2109 = vunpack.c.l.b16 %v1984
    %v2110 = vunpack.c.h.b16 %v1984
    %v2111 = vunpack.c.l.b16 %v1985
    %v2112 = vunpack.c.h.b16 %v1985
    %v2113 = vunpack.c.l.b16 %v1986
    %v2114 = vunpack.c.h.b16 %v1986
    %v2115 = vunpack.c.l.b16 %v1987
    %v2116 = vunpack.c.h.b16 %v1987
    %v2117 = vunpack.c.l.b16 %v1988
    %v2118 = vunpack.c.h.b16 %v1988
    %v2119 = vunpack.c.l.b16 %v1989
    %v2120 = vunpack.c.h.b16 %v1989
    %v2121 = vunpack.c.l.b16 %v1990
    %v2122 = vunpack.c.h.b16 %v1990
    %v2123 = vunpack.c.l.b16 %v1991
    %v2124 = vunpack.c.h.b16 %v1991
    %v2125 = vunpack.c.l.b16 %v1992
    %v2126 = vunpack.c.h.b16 %v1992
    %v2127 = vunpack.c.l.b16 %v1993
    %v2128 = vunpack.c.h.b16 %v1993
    %v2129 = vunpack.c.l.b16 %v1994
    %v2130 = vunpack.c.h.b16 %v1994
    %v2131 = vunpack.c.l.b16 %v1995
    %v2132 = vunpack.c.h.b16 %v1995
    %v2133 = vunpack.c.l.b16 %v1996
    %v2134 = vunpack.c.h.b16 %v1996
    %v2135 = vunpack.c.l.b16 %v1997
    %v2136 = vunpack.c.h.b16 %v1997
    %v2137 = vunpack.c.l.b16 %v1998
    %v2138 = vunpack.c.h.b16 %v1998
    %v2139 = vunpack.c.l.b16 %v1999
    %v2140 = vunpack.c.h.b16 %v1999
    %v2141 = vunpack.c.l.b16 %v2000
    %v2142 = vunpack.c.h.b16 %v2000
    %v2143 = vunpack.c.l.b16 %v2001
    %v2144 = vunpack.c.h.b16 %v2001
    %v2145 = vunpack.c.l.b16 %v2002
    %v2146 = vunpack.c.h.b16 %v2002
    %v2147 = vpack.c.b16 %v2053, %v2051
    %v2148 = vpack.c.b16 %v2054, %v2052
    %v2149 = vpack.c.b16 %v2057, %v2055
    %v2150 = vpack.c.b16 %v2058, %v2056
    %v2151 = vpack.c.b16 %v2061, %v2059
    %v2152 = vpack.c.b16 %v2062, %v2060
    %v2153 = vpack.c.b16 %v2065, %v2063
    %v2154 = vpack.c.b16 %v2066, %v2064
    %v2155 = vpack.c.b16 %v2069, %v2067
    %v2156 = vpack.c.b16 %v2070, %v2068
    %v2157 = vpack.c.b16 %v2073, %v2071
    %v2158 = vpack.c.b16 %v2074, %v2072
    %v2159 = vpack.c.b16 %v2077, %v2075
    %v2160 = vpack.c.b16 %v2078, %v2076
    %v2161 = vpack.c.b16 %v2081, %v2079
    %v2162 = vpack.c.b16 %v2082, %v2080
    %v2163 = vpack.c.b16 %v2085, %v2083
    %v2164 = vpack.c.b16 %v2086, %v2084
    %v2165 = vpack.c.b16 %v2089, %v2087
    %v2166 = vpack.c.b16 %v2090, %v2088
    %v2167 = vpack.c.b16 %v2093, %v2091
    %v2168 = vpack.c.b16 %v2094, %v2092
    %v2169 = vpack.c.b16 %v2097, %v2095
    %v2170 = vpack.c.b16 %v2098, %v2096
    %v2171 = vpack.c.b16 %v2101, %v2099
    %v2172 = vpack.c.b16 %v2102, %v2100
    %v2173 = vpack.c.b16 %v2105, %v2103
    %v2174 = vpack.c.b16 %v2106, %v2104
    %v2175 = vpack.c.b16 %v2109, %v2107
    %v2176 = vpack.c.b16 %v2110, %v2108
    %v2177 = vpack.c.b16 %v2113, %v2111
    %v2178 = vpack.c.b16 %v2114, %v2112
    %v2179 = vpack.c.b16 %v2117, %v2115
    %v2180 = vpack.c.b16 %v2118, %v2116
    %v2181 = vpack.c.b16 %v2121, %v2119
    %v2182 = vpack.c.b16 %v2122, %v2120
    %v2183 = vpack.c.b16 %v2125, %v2123
    %v2184 = vpack.c.b16 %v2126, %v2124
    %v2185 = vpack.c.b16 %v2129, %v2127
    %v2186 = vpack.c.b16 %v2130, %v2128
    %v2187 = vpack.c.b16 %v2133, %v2131
    %v2188 = vpack.c.b16 %v2134, %v2132
    %v2189 = vpack.c.b16 %v2137, %v2135
    %v2190 = vpack.c.b16 %v2138, %v2136
    %v2191 = vpack.c.b16 %v2141, %v2139
    %v2192 = vpack.c.b16 %v2142, %v2140
    %v2193 = vpack.c.b16 %v2145, %v2143
    %v2194 = vpack.c.b16 %v2146, %v2144
    %2243 = vmatprep.subr.bf16.mxu0 %v2162
    %2244 = vmatpush1.bf16.msra.mxu0 %v2161
    %2245 = vmatprep.subr.bf16.mxu0 %v2160
    %2246 = vmatpush1.bf16.msra.mxu0 %v2159
    %2247 = vmatprep.subr.bf16.mxu0 %v2158
    %2248 = vmatpush1.bf16.msra.mxu0 %v2157
    %2249 = vmatprep.subr.bf16.mxu0 %v2156
    %2250 = vmatpush1.bf16.msra.mxu0 %v2155
    %2251 = vmatprep.subr.bf16.mxu0 %v2154
    %2252 = vmatpush1.bf16.msra.mxu0 %v2153
    %2253 = vmatprep.subr.bf16.mxu0 %v2152
    %2254 = vmatpush1.bf16.msra.mxu0 %v2151
    %2255 = vmatprep.subr.bf16.mxu0 %v2150
    %2256 = vmatpush1.bf16.msra.mxu0 %v2149
    %2257 = vmatprep.subr.bf16.mxu0 %v2148
    %2258 = vmatpush1.bf16.msra.mxu0 %v2147
    %2259 = vmatprep.subr.bf16.mxu0 %v2178
    %2260 = vmatpush2.bf16.msra.mxu0 %v2177
    %2261 = vmatprep.subr.bf16.mxu0 %v2176
    %2262 = vmatpush2.bf16.msra.mxu0 %v2175
    %2263 = vmatprep.subr.bf16.mxu0 %v2174
    %2264 = vmatpush2.bf16.msra.mxu0 %v2173
    %2265 = vmatprep.subr.bf16.mxu0 %v2172
    %2266 = vmatpush2.bf16.msra.mxu0 %v2171
    %2267 = vmatprep.subr.bf16.mxu0 %v2170
    %2268 = vmatpush2.bf16.msra.mxu0 %v2169
    %2269 = vmatprep.subr.bf16.mxu0 %v2168
    %2270 = vmatpush2.bf16.msra.mxu0 %v2167
    %2271 = vmatprep.subr.bf16.mxu0 %v2166
    %2272 = vmatpush2.bf16.msra.mxu0 %v2165
    %2273 = vmatprep.subr.bf16.mxu0 %v2164
    %2274 = vmatpush2.bf16.msra.mxu0 %v2163
    %2275 = vmatprep.mubr.bf16.mxu0 %v1555
    %2276 = vmatmul.mubr.bf16.gmra.mxu0 %v1554
    %v2277 = vpop.f32.mrf.mxu0
    %v2278 = vadd.f32 0.0, %v2277
    %v2279 = vpop.f32.mrf.mxu0
    %v2280 = vadd.f32 0.0, %v2279
    %v2281 = vpop.f32.mrf.mxu0
    %v2282 = vadd.f32 0.0, %v2281
    %v2283 = vpop.f32.mrf.mxu0
    %v2284 = vadd.f32 0.0, %v2283
    %2285 = vmatprep.mubr.bf16.mxu0 %v1558
    %2286 = vmatmul.mubr.bf16.gmra.mxu0 %v1557
    %v2287 = vpop.f32.mrf.mxu0
    %v2288 = vadd.f32 0.0, %v2287
    %v2289 = vpop.f32.mrf.mxu0
    %v2290 = vadd.f32 0.0, %v2289
    %v2291 = vpop.f32.mrf.mxu0
    %v2292 = vadd.f32 0.0, %v2291
    %v2293 = vpop.f32.mrf.mxu0
    %v2294 = vadd.f32 0.0, %v2293
    %2295 = vdwg.mxu0
    %2296 = vmatprep.subr.bf16.mxu0 %v2194
    %2297 = vmatpush1.bf16.msra.mxu0 %v2193
    %2298 = vmatprep.subr.bf16.mxu0 %v2192
    %2299 = vmatpush1.bf16.msra.mxu0 %v2191
    %2300 = vmatprep.subr.bf16.mxu0 %v2190
    %2301 = vmatpush1.bf16.msra.mxu0 %v2189
    %2302 = vmatprep.subr.bf16.mxu0 %v2188
    %2303 = vmatpush1.bf16.msra.mxu0 %v2187
    %2304 = vmatprep.subr.bf16.mxu0 %v2186
    %2305 = vmatpush1.bf16.msra.mxu0 %v2185
    %2306 = vmatprep.subr.bf16.mxu0 %v2184
    %2307 = vmatpush1.bf16.msra.mxu0 %v2183
    %2308 = vmatprep.subr.bf16.mxu0 %v2182
    %2309 = vmatpush1.bf16.msra.mxu0 %v2181
    %2310 = vmatprep.subr.bf16.mxu0 %v2180
    %2311 = vmatpush1.bf16.msra.mxu0 %v2179
    %2312 = vmatprep.subr.bf16.mxu0 0
    %2313 = vmatpush2.bf16.msra.mxu0 0
    %2314 = vmatprep.subr.bf16.mxu0 0
    %2315 = vmatpush2.bf16.msra.mxu0 0
    %2316 = vmatprep.subr.bf16.mxu0 0
    %2317 = vmatpush2.bf16.msra.mxu0 0
    %2318 = vmatprep.subr.bf16.mxu0 0
    %2319 = vmatpush2.bf16.msra.mxu0 0
    %2320 = vmatprep.subr.bf16.mxu0 0
    %2321 = vmatpush2.bf16.msra.mxu0 0
    %2322 = vmatprep.subr.bf16.mxu0 0
    %2323 = vmatpush2.bf16.msra.mxu0 0
    %2324 = vmatprep.subr.bf16.mxu0 0
    %2325 = vmatpush2.bf16.msra.mxu0 0
    %2326 = vmatprep.subr.bf16.mxu0 0
    %2327 = vmatpush2.bf16.msra.mxu0 0
    %2328 = vmatprep.mubr.bf16.mxu0 0
    %2329 = vmatmul.mubr.bf16.gmra.mxu0 %v1556
    %v2330 = vpop.f32.mrf.mxu0
    %v2331 = vadd.f32 %v2278, %v2330
    %v2332 = vpop.f32.mrf.mxu0
    %v2333 = vadd.f32 %v2280, %v2332
    %v2334 = vpop.f32.mrf.mxu0
    %v2335 = vadd.f32 %v2282, %v2334
    %v2336 = vpop.f32.mrf.mxu0
    %v2337 = vadd.f32 %v2284, %v2336
    %2338 = vmatprep.mubr.bf16.mxu0 0
    %2339 = vmatmul.mubr.bf16.gmra.mxu0 %v1559
    %v2340 = vpop.f32.mrf.mxu0
    %v2341 = vadd.f32 %v2288, %v2340
    %v2342 = vpop.f32.mrf.mxu0
    %v2343 = vadd.f32 %v2290, %v2342
    %v2344 = vpop.f32.mrf.mxu0
    %v2345 = vadd.f32 %v2292, %v2344
    %v2346 = vpop.f32.mrf.mxu0
    %v2347 = vadd.f32 %v2294, %v2346
    %2348 = vdwg.mxu0
    %v2349 = vmax.f32 %v1936, %v2331
    %v2350 = vmax.f32 %v1938, %v2333
    %v2351 = vmax.f32 %v1940, %v2335
    %v2352 = vmax.f32 %v1942, %v2337
    %v2353 = vmax.f32 %v1946, %v2341
    %v2354 = vmax.f32 %v1948, %v2343
    %v2355 = vmax.f32 %v1950, %v2345
    %v2356 = vmax.f32 %v1952, %v2347
    %s2357 = scalar_lea.vmem [#allocation4], 768
    %v2358 = vld [vmem:[%s2357] sm:$0xff]
    %v2359 = vld [vmem:[%s2357 + $0x8] sm:$0xff]
    %v2360 = vld [vmem:[%s2357 + $0x10] sm:$0xff]
    %v2361 = vld [vmem:[%s2357 + $0x18] sm:$0xff]
    %v2362 = vld [vmem:[%s2357 + $0x20] sm:$0xff]
    %v2363 = vld [vmem:[%s2357 + $0x28] sm:$0xff]
    %v2364 = vld [vmem:[%s2357 + $0x30] sm:$0xff]
    %v2365 = vld [vmem:[%s2357 + $0x38] sm:$0xff]
    %v2366 = vld [vmem:[%s2357 + $0x40] sm:$0xff]
    %v2367 = vld [vmem:[%s2357 + $0x48] sm:$0xff]
    %v2368 = vld [vmem:[%s2357 + $0x50] sm:$0xff]
    %v2369 = vld [vmem:[%s2357 + $0x58] sm:$0xff]
    %v2370 = vld [vmem:[%s2357 + $0x60] sm:$0xff]
    %v2371 = vld [vmem:[%s2357 + $0x68] sm:$0xff]
    %v2372 = vld [vmem:[%s2357 + $0x70] sm:$0xff]
    %v2373 = vld [vmem:[%s2357 + $0x78] sm:$0xff]
    %v2374 = vld [vmem:[%s2357 + $0x80] sm:$0xff]
    %v2375 = vld [vmem:[%s2357 + $0x88] sm:$0xff]
    %v2376 = vld [vmem:[%s2357 + $0x90] sm:$0xff]
    %v2377 = vld [vmem:[%s2357 + $0x98] sm:$0xff]
    %v2378 = vld [vmem:[%s2357 + $0xa0] sm:$0xff]
    %v2379 = vld [vmem:[%s2357 + $0xa8] sm:$0xff]
    %v2380 = vld [vmem:[%s2357 + $0xb0] sm:$0xff]
    %v2381 = vld [vmem:[%s2357 + $0xb8] sm:$0xff]
    %v2382 = vld [vmem:[%s2357 + $0xc0] sm:$0xff]
    %v2383 = vld [vmem:[%s2357 + $0xc8] sm:$0xff]
    %v2384 = vld [vmem:[%s2357 + $0xd0] sm:$0xff]
    %v2385 = vld [vmem:[%s2357 + $0xd8] sm:$0xff]
    %v2386 = vld [vmem:[%s2357 + $0xe0] sm:$0xff]
    %v2387 = vld [vmem:[%s2357 + $0xe8] sm:$0xff]
    %v2388 = vld [vmem:[%s2357 + $0xf0] sm:$0xff]
    %v2389 = vld [vmem:[%s2357 + $0xf8] sm:$0xff]
    %v2390 = vld [vmem:[%s2357 + $0x100] sm:$0xff]
    %v2391 = vld [vmem:[%s2357 + $0x108] sm:$0xff]
    %v2392 = vld [vmem:[%s2357 + $0x110] sm:$0xff]
    %v2393 = vld [vmem:[%s2357 + $0x118] sm:$0xff]
    %v2394 = vld [vmem:[%s2357 + $0x120] sm:$0xff]
    %v2395 = vld [vmem:[%s2357 + $0x128] sm:$0xff]
    %v2396 = vld [vmem:[%s2357 + $0x130] sm:$0xff]
    %v2397 = vld [vmem:[%s2357 + $0x138] sm:$0xff]
    %v2398 = vld [vmem:[%s2357 + $0x140] sm:$0xff]
    %v2399 = vld [vmem:[%s2357 + $0x148] sm:$0xff]
    %v2400 = vld [vmem:[%s2357 + $0x150] sm:$0xff]
    %v2401 = vld [vmem:[%s2357 + $0x158] sm:$0xff]
    %v2402 = vld [vmem:[%s2357 + $0x160] sm:$0xff]
    %v2403 = vld [vmem:[%s2357 + $0x168] sm:$0xff]
    %v2404 = vld [vmem:[%s2357 + $0x170] sm:$0xff]
    %v2405 = vld [vmem:[%s2357 + $0x178] sm:$0xff]
    %v2454 = vunpack.c.l.b16 %v2358
    %v2455 = vunpack.c.h.b16 %v2358
    %v2456 = vunpack.c.l.b16 %v2359
    %v2457 = vunpack.c.h.b16 %v2359
    %v2458 = vunpack.c.l.b16 %v2360
    %v2459 = vunpack.c.h.b16 %v2360
    %v2460 = vunpack.c.l.b16 %v2361
    %v2461 = vunpack.c.h.b16 %v2361
    %v2462 = vunpack.c.l.b16 %v2362
    %v2463 = vunpack.c.h.b16 %v2362
    %v2464 = vunpack.c.l.b16 %v2363
    %v2465 = vunpack.c.h.b16 %v2363
    %v2466 = vunpack.c.l.b16 %v2364
    %v2467 = vunpack.c.h.b16 %v2364
    %v2468 = vunpack.c.l.b16 %v2365
    %v2469 = vunpack.c.h.b16 %v2365
    %v2470 = vunpack.c.l.b16 %v2366
    %v2471 = vunpack.c.h.b16 %v2366
    %v2472 = vunpack.c.l.b16 %v2367
    %v2473 = vunpack.c.h.b16 %v2367
    %v2474 = vunpack.c.l.b16 %v2368
    %v2475 = vunpack.c.h.b16 %v2368
    %v2476 = vunpack.c.l.b16 %v2369
    %v2477 = vunpack.c.h.b16 %v2369
    %v2478 = vunpack.c.l.b16 %v2370
    %v2479 = vunpack.c.h.b16 %v2370
    %v2480 = vunpack.c.l.b16 %v2371
    %v2481 = vunpack.c.h.b16 %v2371
    %v2482 = vunpack.c.l.b16 %v2372
    %v2483 = vunpack.c.h.b16 %v2372
    %v2484 = vunpack.c.l.b16 %v2373
    %v2485 = vunpack.c.h.b16 %v2373
    %v2486 = vunpack.c.l.b16 %v2374
    %v2487 = vunpack.c.h.b16 %v2374
    %v2488 = vunpack.c.l.b16 %v2375
    %v2489 = vunpack.c.h.b16 %v2375
    %v2490 = vunpack.c.l.b16 %v2376
    %v2491 = vunpack.c.h.b16 %v2376
    %v2492 = vunpack.c.l.b16 %v2377
    %v2493 = vunpack.c.h.b16 %v2377
    %v2494 = vunpack.c.l.b16 %v2378
    %v2495 = vunpack.c.h.b16 %v2378
    %v2496 = vunpack.c.l.b16 %v2379
    %v2497 = vunpack.c.h.b16 %v2379
    %v2498 = vunpack.c.l.b16 %v2380
    %v2499 = vunpack.c.h.b16 %v2380
    %v2500 = vunpack.c.l.b16 %v2381
    %v2501 = vunpack.c.h.b16 %v2381
    %v2502 = vunpack.c.l.b16 %v2382
    %v2503 = vunpack.c.h.b16 %v2382
    %v2504 = vunpack.c.l.b16 %v2383
    %v2505 = vunpack.c.h.b16 %v2383
    %v2506 = vunpack.c.l.b16 %v2384
    %v2507 = vunpack.c.h.b16 %v2384
    %v2508 = vunpack.c.l.b16 %v2385
    %v2509 = vunpack.c.h.b16 %v2385
    %v2510 = vunpack.c.l.b16 %v2386
    %v2511 = vunpack.c.h.b16 %v2386
    %v2512 = vunpack.c.l.b16 %v2387
    %v2513 = vunpack.c.h.b16 %v2387
    %v2514 = vunpack.c.l.b16 %v2388
    %v2515 = vunpack.c.h.b16 %v2388
    %v2516 = vunpack.c.l.b16 %v2389
    %v2517 = vunpack.c.h.b16 %v2389
    %v2518 = vunpack.c.l.b16 %v2390
    %v2519 = vunpack.c.h.b16 %v2390
    %v2520 = vunpack.c.l.b16 %v2391
    %v2521 = vunpack.c.h.b16 %v2391
    %v2522 = vunpack.c.l.b16 %v2392
    %v2523 = vunpack.c.h.b16 %v2392
    %v2524 = vunpack.c.l.b16 %v2393
    %v2525 = vunpack.c.h.b16 %v2393
    %v2526 = vunpack.c.l.b16 %v2394
    %v2527 = vunpack.c.h.b16 %v2394
    %v2528 = vunpack.c.l.b16 %v2395
    %v2529 = vunpack.c.h.b16 %v2395
    %v2530 = vunpack.c.l.b16 %v2396
    %v2531 = vunpack.c.h.b16 %v2396
    %v2532 = vunpack.c.l.b16 %v2397
    %v2533 = vunpack.c.h.b16 %v2397
    %v2534 = vunpack.c.l.b16 %v2398
    %v2535 = vunpack.c.h.b16 %v2398
    %v2536 = vunpack.c.l.b16 %v2399
    %v2537 = vunpack.c.h.b16 %v2399
    %v2538 = vunpack.c.l.b16 %v2400
    %v2539 = vunpack.c.h.b16 %v2400
    %v2540 = vunpack.c.l.b16 %v2401
    %v2541 = vunpack.c.h.b16 %v2401
    %v2542 = vunpack.c.l.b16 %v2402
    %v2543 = vunpack.c.h.b16 %v2402
    %v2544 = vunpack.c.l.b16 %v2403
    %v2545 = vunpack.c.h.b16 %v2403
    %v2546 = vunpack.c.l.b16 %v2404
    %v2547 = vunpack.c.h.b16 %v2404
    %v2548 = vunpack.c.l.b16 %v2405
    %v2549 = vunpack.c.h.b16 %v2405
    %v2550 = vpack.c.b16 %v2456, %v2454
    %v2551 = vpack.c.b16 %v2457, %v2455
    %v2552 = vpack.c.b16 %v2460, %v2458
    %v2553 = vpack.c.b16 %v2461, %v2459
    %v2554 = vpack.c.b16 %v2464, %v2462
    %v2555 = vpack.c.b16 %v2465, %v2463
    %v2556 = vpack.c.b16 %v2468, %v2466
    %v2557 = vpack.c.b16 %v2469, %v2467
    %v2558 = vpack.c.b16 %v2472, %v2470
    %v2559 = vpack.c.b16 %v2473, %v2471
    %v2560 = vpack.c.b16 %v2476, %v2474
    %v2561 = vpack.c.b16 %v2477, %v2475
    %v2562 = vpack.c.b16 %v2480, %v2478
    %v2563 = vpack.c.b16 %v2481, %v2479
    %v2564 = vpack.c.b16 %v2484, %v2482
    %v2565 = vpack.c.b16 %v2485, %v2483
    %v2566 = vpack.c.b16 %v2488, %v2486
    %v2567 = vpack.c.b16 %v2489, %v2487
    %v2568 = vpack.c.b16 %v2492, %v2490
    %v2569 = vpack.c.b16 %v2493, %v2491
    %v2570 = vpack.c.b16 %v2496, %v2494
    %v2571 = vpack.c.b16 %v2497, %v2495
    %v2572 = vpack.c.b16 %v2500, %v2498
    %v2573 = vpack.c.b16 %v2501, %v2499
    %v2574 = vpack.c.b16 %v2504, %v2502
    %v2575 = vpack.c.b16 %v2505, %v2503
    %v2576 = vpack.c.b16 %v2508, %v2506
    %v2577 = vpack.c.b16 %v2509, %v2507
    %v2578 = vpack.c.b16 %v2512, %v2510
    %v2579 = vpack.c.b16 %v2513, %v2511
    %v2580 = vpack.c.b16 %v2516, %v2514
    %v2581 = vpack.c.b16 %v2517, %v2515
    %v2582 = vpack.c.b16 %v2520, %v2518
    %v2583 = vpack.c.b16 %v2521, %v2519
    %v2584 = vpack.c.b16 %v2524, %v2522
    %v2585 = vpack.c.b16 %v2525, %v2523
    %v2586 = vpack.c.b16 %v2528, %v2526
    %v2587 = vpack.c.b16 %v2529, %v2527
    %v2588 = vpack.c.b16 %v2532, %v2530
    %v2589 = vpack.c.b16 %v2533, %v2531
    %v2590 = vpack.c.b16 %v2536, %v2534
    %v2591 = vpack.c.b16 %v2537, %v2535
    %v2592 = vpack.c.b16 %v2540, %v2538
    %v2593 = vpack.c.b16 %v2541, %v2539
    %v2594 = vpack.c.b16 %v2544, %v2542
    %v2595 = vpack.c.b16 %v2545, %v2543
    %v2596 = vpack.c.b16 %v2548, %v2546
    %v2597 = vpack.c.b16 %v2549, %v2547
    %2646 = vmatprep.subr.bf16.mxu0 %v2565
    %2647 = vmatpush1.bf16.msra.mxu0 %v2564
    %2648 = vmatprep.subr.bf16.mxu0 %v2563
    %2649 = vmatpush1.bf16.msra.mxu0 %v2562
    %2650 = vmatprep.subr.bf16.mxu0 %v2561
    %2651 = vmatpush1.bf16.msra.mxu0 %v2560
    %2652 = vmatprep.subr.bf16.mxu0 %v2559
    %2653 = vmatpush1.bf16.msra.mxu0 %v2558
    %2654 = vmatprep.subr.bf16.mxu0 %v2557
    %2655 = vmatpush1.bf16.msra.mxu0 %v2556
    %2656 = vmatprep.subr.bf16.mxu0 %v2555
    %2657 = vmatpush1.bf16.msra.mxu0 %v2554
    %2658 = vmatprep.subr.bf16.mxu0 %v2553
    %2659 = vmatpush1.bf16.msra.mxu0 %v2552
    %2660 = vmatprep.subr.bf16.mxu0 %v2551
    %2661 = vmatpush1.bf16.msra.mxu0 %v2550
    %2662 = vmatprep.subr.bf16.mxu0 %v2581
    %2663 = vmatpush2.bf16.msra.mxu0 %v2580
    %2664 = vmatprep.subr.bf16.mxu0 %v2579
    %2665 = vmatpush2.bf16.msra.mxu0 %v2578
    %2666 = vmatprep.subr.bf16.mxu0 %v2577
    %2667 = vmatpush2.bf16.msra.mxu0 %v2576
    %2668 = vmatprep.subr.bf16.mxu0 %v2575
    %2669 = vmatpush2.bf16.msra.mxu0 %v2574
    %2670 = vmatprep.subr.bf16.mxu0 %v2573
    %2671 = vmatpush2.bf16.msra.mxu0 %v2572
    %2672 = vmatprep.subr.bf16.mxu0 %v2571
    %2673 = vmatpush2.bf16.msra.mxu0 %v2570
    %2674 = vmatprep.subr.bf16.mxu0 %v2569
    %2675 = vmatpush2.bf16.msra.mxu0 %v2568
    %2676 = vmatprep.subr.bf16.mxu0 %v2567
    %2677 = vmatpush2.bf16.msra.mxu0 %v2566
    %2678 = vmatprep.mubr.bf16.mxu0 %v1555
    %2679 = vmatmul.mubr.bf16.gmra.mxu0 %v1554
    %v2680 = vpop.f32.mrf.mxu0
    %v2681 = vadd.f32 0.0, %v2680
    %v2682 = vpop.f32.mrf.mxu0
    %v2683 = vadd.f32 0.0, %v2682
    %v2684 = vpop.f32.mrf.mxu0
    %v2685 = vadd.f32 0.0, %v2684
    %v2686 = vpop.f32.mrf.mxu0
    %v2687 = vadd.f32 0.0, %v2686
    %2688 = vmatprep.mubr.bf16.mxu0 %v1558
    %2689 = vmatmul.mubr.bf16.gmra.mxu0 %v1557
    %v2690 = vpop.f32.mrf.mxu0
    %v2691 = vadd.f32 0.0, %v2690
    %v2692 = vpop.f32.mrf.mxu0
    %v2693 = vadd.f32 0.0, %v2692
    %v2694 = vpop.f32.mrf.mxu0
    %v2695 = vadd.f32 0.0, %v2694
    %v2696 = vpop.f32.mrf.mxu0
    %v2697 = vadd.f32 0.0, %v2696
    %2698 = vdwg.mxu0
    %2699 = vmatprep.subr.bf16.mxu0 %v2597
    %2700 = vmatpush1.bf16.msra.mxu0 %v2596
    %2701 = vmatprep.subr.bf16.mxu0 %v2595
    %2702 = vmatpush1.bf16.msra.mxu0 %v2594
    %2703 = vmatprep.subr.bf16.mxu0 %v2593
    %2704 = vmatpush1.bf16.msra.mxu0 %v2592
    %2705 = vmatprep.subr.bf16.mxu0 %v2591
    %2706 = vmatpush1.bf16.msra.mxu0 %v2590
    %2707 = vmatprep.subr.bf16.mxu0 %v2589
    %2708 = vmatpush1.bf16.msra.mxu0 %v2588
    %2709 = vmatprep.subr.bf16.mxu0 %v2587
    %2710 = vmatpush1.bf16.msra.mxu0 %v2586
    %2711 = vmatprep.subr.bf16.mxu0 %v2585
    %2712 = vmatpush1.bf16.msra.mxu0 %v2584
    %2713 = vmatprep.subr.bf16.mxu0 %v2583
    %2714 = vmatpush1.bf16.msra.mxu0 %v2582
    %2715 = vmatprep.subr.bf16.mxu0 0
    %2716 = vmatpush2.bf16.msra.mxu0 0
    %2717 = vmatprep.subr.bf16.mxu0 0
    %2718 = vmatpush2.bf16.msra.mxu0 0
    %2719 = vmatprep.subr.bf16.mxu0 0
    %2720 = vmatpush2.bf16.msra.mxu0 0
    %2721 = vmatprep.subr.bf16.mxu0 0
    %2722 = vmatpush2.bf16.msra.mxu0 0
    %2723 = vmatprep.subr.bf16.mxu0 0
    %2724 = vmatpush2.bf16.msra.mxu0 0
    %2725 = vmatprep.subr.bf16.mxu0 0
    %2726 = vmatpush2.bf16.msra.mxu0 0
    %2727 = vmatprep.subr.bf16.mxu0 0
    %2728 = vmatpush2.bf16.msra.mxu0 0
    %2729 = vmatprep.subr.bf16.mxu0 0
    %2730 = vmatpush2.bf16.msra.mxu0 0
    %2731 = vmatprep.mubr.bf16.mxu0 0
    %2732 = vmatmul.mubr.bf16.gmra.mxu0 %v1556
    %v2733 = vpop.f32.mrf.mxu0
    %v2734 = vadd.f32 %v2681, %v2733
    %v2735 = vpop.f32.mrf.mxu0
    %v2736 = vadd.f32 %v2683, %v2735
    %v2737 = vpop.f32.mrf.mxu0
    %v2738 = vadd.f32 %v2685, %v2737
    %v2739 = vpop.f32.mrf.mxu0
    %v2740 = vadd.f32 %v2687, %v2739
    %2741 = vmatprep.mubr.bf16.mxu0 0
    %2742 = vmatmul.mubr.bf16.gmra.mxu0 %v1559
    %v2743 = vpop.f32.mrf.mxu0
    %v2744 = vadd.f32 %v2691, %v2743
    %v2745 = vpop.f32.mrf.mxu0
    %v2746 = vadd.f32 %v2693, %v2745
    %v2747 = vpop.f32.mrf.mxu0
    %v2748 = vadd.f32 %v2695, %v2747
    %v2749 = vpop.f32.mrf.mxu0
    %v2750 = vadd.f32 %v2697, %v2749
    %2751 = vdwg.mxu0
    %v2752 = vmax.f32 %v2349, %v2734
    %v2753 = vmax.f32 %v2350, %v2736
    %v2754 = vmax.f32 %v2351, %v2738
    %v2755 = vmax.f32 %v2352, %v2740
    %v2756 = vmax.f32 %v2353, %v2744
    %v2757 = vmax.f32 %v2354, %v2746
    %v2758 = vmax.f32 %v2355, %v2748
    %v2759 = vmax.f32 %v2356, %v2750
    %v2760 = vld [vmem:[%s8] sm:$0x3]
    %v2762 = vlaneseq
    %v2763 = vshrl.u32 %v2762, 7
    %v2764 = vsub.s32 0, %v2763
    %v2765 = vrot.slane %v2760, %v2764
    %v2766 = vlaneseq
    %v2767 = vshrl.u32 %v2766, 7
    %v2768 = vsub.s32 1, %v2767
    %v2769 = vrot.slane %v2760, %v2768
    %v2772 = vadd.f32 %v2752, %v2765
    %v2773 = vadd.f32 %v2753, %v2769
    %v2774 = vadd.f32 %v2754, %v2765
    %v2775 = vadd.f32 %v2755, %v2769
    %v2776 = vadd.f32 %v2756, %v2765
    %v2777 = vadd.f32 %v2757, %v2769
    %v2778 = vadd.f32 %v2758, %v2765
    %v2779 = vadd.f32 %v2759, %v2769
    %v2780 = vpack.c.bf16 %v2774, %v2772
    %v2781 = vpack.c.bf16 %v2775, %v2773
    %v2782 = vpack.c.bf16 %v2778, %v2776
    %v2783 = vpack.c.bf16 %v2779, %v2777
    %v2784 = vld [vmem:[%s9] sm:$0xf]
    %v2785 = vld [vmem:[%s9 + $0x4] sm:$0xf]
    %v2786 = vld [vmem:[%s9 + $0x8] sm:$0xf]
    %v2787 = vld [vmem:[%s9 + $0xc] sm:$0xf]
    %v2788 = vld [vmem:[%s9 + $0x10] sm:$0xf]
    %v2789 = vld [vmem:[%s9 + $0x14] sm:$0xf]
    %v2790 = vld [vmem:[%s9 + $0x18] sm:$0xf]
    %v2791 = vld [vmem:[%s9 + $0x1c] sm:$0xf]
    %v2792 = vld [vmem:[%s9 + $0x20] sm:$0xf]
    %v2793 = vld [vmem:[%s9 + $0x24] sm:$0xf]
    %v2794 = vld [vmem:[%s9 + $0x28] sm:$0xf]
    %v2795 = vld [vmem:[%s9 + $0x2c] sm:$0xf]
    %v2796 = vld [vmem:[%s9 + $0x30] sm:$0xf]
    %v2797 = vld [vmem:[%s9 + $0x34] sm:$0xf]
    %v2798 = vld [vmem:[%s9 + $0x38] sm:$0xf]
    %v2799 = vld [vmem:[%s9 + $0x3c] sm:$0xf]
    %v2800 = vld [vmem:[%s9 + $0x40] sm:$0xf]
    %v2801 = vld [vmem:[%s9 + $0x44] sm:$0xf]
    %v2802 = vld [vmem:[%s9 + $0x48] sm:$0xf]
    %v2803 = vld [vmem:[%s9 + $0x4c] sm:$0xf]
    %v2804 = vld [vmem:[%s9 + $0x50] sm:$0xf]
    %v2805 = vld [vmem:[%s9 + $0x54] sm:$0xf]
    %v2806 = vld [vmem:[%s9 + $0x58] sm:$0xf]
    %v2807 = vld [vmem:[%s9 + $0x5c] sm:$0xf]
    %v2808 = vld [vmem:[%s9 + $0x60] sm:$0xf]
    %v2809 = vld [vmem:[%s9 + $0x64] sm:$0xf]
    %v2810 = vld [vmem:[%s9 + $0x68] sm:$0xf]
    %v2811 = vld [vmem:[%s9 + $0x6c] sm:$0xf]
    %v2812 = vld [vmem:[%s9 + $0x70] sm:$0xf]
    %v2813 = vld [vmem:[%s9 + $0x74] sm:$0xf]
    %v2814 = vld [vmem:[%s9 + $0x78] sm:$0xf]
    %v2815 = vld [vmem:[%s9 + $0x7c] sm:$0xf]
    %v2848 = vunpack.c.l.b16 %v2784
    %v2849 = vunpack.c.l.b16 %v2785
    %v2850 = vunpack.c.l.b16 %v2786
    %v2851 = vunpack.c.l.b16 %v2787
    %v2852 = vunpack.c.l.b16 %v2788
    %v2853 = vunpack.c.l.b16 %v2789
    %v2854 = vunpack.c.l.b16 %v2790
    %v2855 = vunpack.c.l.b16 %v2791
    %v2856 = vunpack.c.l.b16 %v2792
    %v2857 = vunpack.c.l.b16 %v2793
    %v2858 = vunpack.c.l.b16 %v2794
    %v2859 = vunpack.c.l.b16 %v2795
    %v2860 = vunpack.c.l.b16 %v2796
    %v2861 = vunpack.c.l.b16 %v2797
    %v2862 = vunpack.c.l.b16 %v2798
    %v2863 = vunpack.c.l.b16 %v2799
    %v2864 = vunpack.c.l.b16 %v2800
    %v2865 = vunpack.c.l.b16 %v2801
    %v2866 = vunpack.c.l.b16 %v2802
    %v2867 = vunpack.c.l.b16 %v2803
    %v2868 = vunpack.c.l.b16 %v2804
    %v2869 = vunpack.c.l.b16 %v2805
    %v2870 = vunpack.c.l.b16 %v2806
    %v2871 = vunpack.c.l.b16 %v2807
    %v2872 = vunpack.c.l.b16 %v2808
    %v2873 = vunpack.c.l.b16 %v2809
    %v2874 = vunpack.c.l.b16 %v2810
    %v2875 = vunpack.c.l.b16 %v2811
    %v2876 = vunpack.c.l.b16 %v2812
    %v2877 = vunpack.c.l.b16 %v2813
    %v2878 = vunpack.c.l.b16 %v2814
    %v2879 = vunpack.c.l.b16 %v2815
    %v2880 = vpack.c.b16 %v2849, %v2848
    %v2881 = vpack.c.b16 %v2851, %v2850
    %v2882 = vpack.c.b16 %v2853, %v2852
    %v2883 = vpack.c.b16 %v2855, %v2854
    %v2884 = vpack.c.b16 %v2857, %v2856
    %v2885 = vpack.c.b16 %v2859, %v2858
    %v2886 = vpack.c.b16 %v2861, %v2860
    %v2887 = vpack.c.b16 %v2863, %v2862
    %v2888 = vpack.c.b16 %v2865, %v2864
    %v2889 = vpack.c.b16 %v2867, %v2866
    %v2890 = vpack.c.b16 %v2869, %v2868
    %v2891 = vpack.c.b16 %v2871, %v2870
    %v2892 = vpack.c.b16 %v2873, %v2872
    %v2893 = vpack.c.b16 %v2875, %v2874
    %v2894 = vpack.c.b16 %v2877, %v2876
    %v2895 = vpack.c.b16 %v2879, %v2878
    %2912 = vmatprep.subr.bf16.mxu0 0
    %2913 = vmatpush1.bf16.msra.mxu0 %v2887
    %2914 = vmatprep.subr.bf16.mxu0 0
    %2915 = vmatpush1.bf16.msra.mxu0 %v2886
    %2916 = vmatprep.subr.bf16.mxu0 0
    %2917 = vmatpush1.bf16.msra.mxu0 %v2885
    %2918 = vmatprep.subr.bf16.mxu0 0
    %2919 = vmatpush1.bf16.msra.mxu0 %v2884
    %2920 = vmatprep.subr.bf16.mxu0 0
    %2921 = vmatpush1.bf16.msra.mxu0 %v2883
    %2922 = vmatprep.subr.bf16.mxu0 0
    %2923 = vmatpush1.bf16.msra.mxu0 %v2882
    %2924 = vmatprep.subr.bf16.mxu0 0
    %2925 = vmatpush1.bf16.msra.mxu0 %v2881
    %2926 = vmatprep.subr.bf16.mxu0 0
    %2927 = vmatpush1.bf16.msra.mxu0 %v2880
    %2928 = vmatprep.subr.bf16.mxu0 0
    %2929 = vmatpush2.bf16.msra.mxu0 %v2895
    %2930 = vmatprep.subr.bf16.mxu0 0
    %2931 = vmatpush2.bf16.msra.mxu0 %v2894
    %2932 = vmatprep.subr.bf16.mxu0 0
    %2933 = vmatpush2.bf16.msra.mxu0 %v2893
    %2934 = vmatprep.subr.bf16.mxu0 0
    %2935 = vmatpush2.bf16.msra.mxu0 %v2892
    %2936 = vmatprep.subr.bf16.mxu0 0
    %2937 = vmatpush2.bf16.msra.mxu0 %v2891
    %2938 = vmatprep.subr.bf16.mxu0 0
    %2939 = vmatpush2.bf16.msra.mxu0 %v2890
    %2940 = vmatprep.subr.bf16.mxu0 0
    %2941 = vmatpush2.bf16.msra.mxu0 %v2889
    %2942 = vmatprep.subr.bf16.mxu0 0
    %2943 = vmatpush2.bf16.msra.mxu0 %v2888
    %2944 = vmatprep.mubr.bf16.mxu0 %v2781
    %2945 = vmatmul.mubr.bf16.gmra.mxu0 %v2780
    %v2946 = vpop.f32.mrf.mxu0
    %v2947 = vadd.f32 0.0, %v2946
    %v2948 = vpop.f32.mrf.mxu0
    %v2949 = vpop.f32.mrf.mxu0
    %v2950 = vadd.f32 0.0, %v2949
    %v2951 = vpop.f32.mrf.mxu0
    %2952 = vmatprep.mubr.bf16.mxu0 %v2783
    %2953 = vmatmul.mubr.bf16.gmra.mxu0 %v2782
    %v2954 = vpop.f32.mrf.mxu0
    %v2955 = vadd.f32 0.0, %v2954
    %v2956 = vpop.f32.mrf.mxu0
    %v2957 = vpop.f32.mrf.mxu0
    %v2958 = vadd.f32 0.0, %v2957
    %v2959 = vpop.f32.mrf.mxu0
    %2960 = vdwg.mxu0
    %s2961 = scalar_lea.vmem %s9, 128
    %v2962 = vld [vmem:[%s2961] sm:$0xf]
    %v2963 = vld [vmem:[%s2961 + $0x4] sm:$0xf]
    %v2964 = vld [vmem:[%s2961 + $0x8] sm:$0xf]
    %v2965 = vld [vmem:[%s2961 + $0xc] sm:$0xf]
    %v2966 = vld [vmem:[%s2961 + $0x10] sm:$0xf]
    %v2967 = vld [vmem:[%s2961 + $0x14] sm:$0xf]
    %v2968 = vld [vmem:[%s2961 + $0x18] sm:$0xf]
    %v2969 = vld [vmem:[%s2961 + $0x1c] sm:$0xf]
    %v2970 = vld [vmem:[%s2961 + $0x20] sm:$0xf]
    %v2971 = vld [vmem:[%s2961 + $0x24] sm:$0xf]
    %v2972 = vld [vmem:[%s2961 + $0x28] sm:$0xf]
    %v2973 = vld [vmem:[%s2961 + $0x2c] sm:$0xf]
    %v2974 = vld [vmem:[%s2961 + $0x30] sm:$0xf]
    %v2975 = vld [vmem:[%s2961 + $0x34] sm:$0xf]
    %v2976 = vld [vmem:[%s2961 + $0x38] sm:$0xf]
    %v2977 = vld [vmem:[%s2961 + $0x3c] sm:$0xf]
    %v2978 = vld [vmem:[%s2961 + $0x40] sm:$0xf]
    %v2979 = vld [vmem:[%s2961 + $0x44] sm:$0xf]
    %v2980 = vld [vmem:[%s2961 + $0x48] sm:$0xf]
    %v2981 = vld [vmem:[%s2961 + $0x4c] sm:$0xf]
    %v2982 = vld [vmem:[%s2961 + $0x50] sm:$0xf]
    %v2983 = vld [vmem:[%s2961 + $0x54] sm:$0xf]
    %v2984 = vld [vmem:[%s2961 + $0x58] sm:$0xf]
    %v2985 = vld [vmem:[%s2961 + $0x5c] sm:$0xf]
    %v2986 = vld [vmem:[%s2961 + $0x60] sm:$0xf]
    %v2987 = vld [vmem:[%s2961 + $0x64] sm:$0xf]
    %v2988 = vld [vmem:[%s2961 + $0x68] sm:$0xf]
    %v2989 = vld [vmem:[%s2961 + $0x6c] sm:$0xf]
    %v2990 = vld [vmem:[%s2961 + $0x70] sm:$0xf]
    %v2991 = vld [vmem:[%s2961 + $0x74] sm:$0xf]
    %v2992 = vld [vmem:[%s2961 + $0x78] sm:$0xf]
    %v2993 = vld [vmem:[%s2961 + $0x7c] sm:$0xf]
    %v3026 = vunpack.c.l.b16 %v2962
    %v3027 = vunpack.c.l.b16 %v2963
    %v3028 = vunpack.c.l.b16 %v2964
    %v3029 = vunpack.c.l.b16 %v2965
    %v3030 = vunpack.c.l.b16 %v2966
    %v3031 = vunpack.c.l.b16 %v2967
    %v3032 = vunpack.c.l.b16 %v2968
    %v3033 = vunpack.c.l.b16 %v2969
    %v3034 = vunpack.c.l.b16 %v2970
    %v3035 = vunpack.c.l.b16 %v2971
    %v3036 = vunpack.c.l.b16 %v2972
    %v3037 = vunpack.c.l.b16 %v2973
    %v3038 = vunpack.c.l.b16 %v2974
    %v3039 = vunpack.c.l.b16 %v2975
    %v3040 = vunpack.c.l.b16 %v2976
    %v3041 = vunpack.c.l.b16 %v2977
    %v3042 = vunpack.c.l.b16 %v2978
    %v3043 = vunpack.c.l.b16 %v2979
    %v3044 = vunpack.c.l.b16 %v2980
    %v3045 = vunpack.c.l.b16 %v2981
    %v3046 = vunpack.c.l.b16 %v2982
    %v3047 = vunpack.c.l.b16 %v2983
    %v3048 = vunpack.c.l.b16 %v2984
    %v3049 = vunpack.c.l.b16 %v2985
    %v3050 = vunpack.c.l.b16 %v2986
    %v3051 = vunpack.c.l.b16 %v2987
    %v3052 = vunpack.c.l.b16 %v2988
    %v3053 = vunpack.c.l.b16 %v2989
    %v3054 = vunpack.c.l.b16 %v2990
    %v3055 = vunpack.c.l.b16 %v2991
    %v3056 = vunpack.c.l.b16 %v2992
    %v3057 = vunpack.c.l.b16 %v2993
    %v3058 = vpack.c.b16 %v3027, %v3026
    %v3059 = vpack.c.b16 %v3029, %v3028
    %v3060 = vpack.c.b16 %v3031, %v3030
    %v3061 = vpack.c.b16 %v3033, %v3032
    %v3062 = vpack.c.b16 %v3035, %v3034
    %v3063 = vpack.c.b16 %v3037, %v3036
    %v3064 = vpack.c.b16 %v3039, %v3038
    %v3065 = vpack.c.b16 %v3041, %v3040
    %v3066 = vpack.c.b16 %v3043, %v3042
    %v3067 = vpack.c.b16 %v3045, %v3044
    %v3068 = vpack.c.b16 %v3047, %v3046
    %v3069 = vpack.c.b16 %v3049, %v3048
    %v3070 = vpack.c.b16 %v3051, %v3050
    %v3071 = vpack.c.b16 %v3053, %v3052
    %v3072 = vpack.c.b16 %v3055, %v3054
    %v3073 = vpack.c.b16 %v3057, %v3056
    %3090 = vmatprep.subr.bf16.mxu0 0
    %3091 = vmatpush1.bf16.msra.mxu0 %v3065
    %3092 = vmatprep.subr.bf16.mxu0 0
    %3093 = vmatpush1.bf16.msra.mxu0 %v3064
    %3094 = vmatprep.subr.bf16.mxu0 0
    %3095 = vmatpush1.bf16.msra.mxu0 %v3063
    %3096 = vmatprep.subr.bf16.mxu0 0
    %3097 = vmatpush1.bf16.msra.mxu0 %v3062
    %3098 = vmatprep.subr.bf16.mxu0 0
    %3099 = vmatpush1.bf16.msra.mxu0 %v3061
    %3100 = vmatprep.subr.bf16.mxu0 0
    %3101 = vmatpush1.bf16.msra.mxu0 %v3060
    %3102 = vmatprep.subr.bf16.mxu0 0
    %3103 = vmatpush1.bf16.msra.mxu0 %v3059
    %3104 = vmatprep.subr.bf16.mxu0 0
    %3105 = vmatpush1.bf16.msra.mxu0 %v3058
    %3106 = vmatprep.subr.bf16.mxu0 0
    %3107 = vmatpush2.bf16.msra.mxu0 %v3073
    %3108 = vmatprep.subr.bf16.mxu0 0
    %3109 = vmatpush2.bf16.msra.mxu0 %v3072
    %3110 = vmatprep.subr.bf16.mxu0 0
    %3111 = vmatpush2.bf16.msra.mxu0 %v3071
    %3112 = vmatprep.subr.bf16.mxu0 0
    %3113 = vmatpush2.bf16.msra.mxu0 %v3070
    %3114 = vmatprep.subr.bf16.mxu0 0
    %3115 = vmatpush2.bf16.msra.mxu0 %v3069
    %3116 = vmatprep.subr.bf16.mxu0 0
    %3117 = vmatpush2.bf16.msra.mxu0 %v3068
    %3118 = vmatprep.subr.bf16.mxu0 0
    %3119 = vmatpush2.bf16.msra.mxu0 %v3067
    %3120 = vmatprep.subr.bf16.mxu0 0
    %3121 = vmatpush2.bf16.msra.mxu0 %v3066
    %3122 = vmatprep.mubr.bf16.mxu0 %v2781
    %3123 = vmatmul.mubr.bf16.gmra.mxu0 %v2780
    %v3124 = vpop.f32.mrf.mxu0
    %v3125 = vadd.f32 0.0, %v3124
    %v3126 = vpop.f32.mrf.mxu0
    %v3127 = vpop.f32.mrf.mxu0
    %v3128 = vadd.f32 0.0, %v3127
    %v3129 = vpop.f32.mrf.mxu0
    %3130 = vmatprep.mubr.bf16.mxu0 %v2783
    %3131 = vmatmul.mubr.bf16.gmra.mxu0 %v2782
    %v3132 = vpop.f32.mrf.mxu0
    %v3133 = vadd.f32 0.0, %v3132
    %v3134 = vpop.f32.mrf.mxu0
    %v3135 = vpop.f32.mrf.mxu0
    %v3136 = vadd.f32 0.0, %v3135
    %v3137 = vpop.f32.mrf.mxu0
    %3138 = vdwg.mxu0
    %v3139 = vmax.f32 %v2947, %v3125
    %v3140 = vmax.f32 %v2950, %v3128
    %v3141 = vmax.f32 %v2955, %v3133
    %v3142 = vmax.f32 %v2958, %v3136
    %s3143 = scalar_lea.vmem %s9, 256
    %v3144 = vld [vmem:[%s3143] sm:$0xf]
    %v3145 = vld [vmem:[%s3143 + $0x4] sm:$0xf]
    %v3146 = vld [vmem:[%s3143 + $0x8] sm:$0xf]
    %v3147 = vld [vmem:[%s3143 + $0xc] sm:$0xf]
    %v3148 = vld [vmem:[%s3143 + $0x10] sm:$0xf]
    %v3149 = vld [vmem:[%s3143 + $0x14] sm:$0xf]
    %v3150 = vld [vmem:[%s3143 + $0x18] sm:$0xf]
    %v3151 = vld [vmem:[%s3143 + $0x1c] sm:$0xf]
    %v3152 = vld [vmem:[%s3143 + $0x20] sm:$0xf]
    %v3153 = vld [vmem:[%s3143 + $0x24] sm:$0xf]
    %v3154 = vld [vmem:[%s3143 + $0x28] sm:$0xf]
    %v3155 = vld [vmem:[%s3143 + $0x2c] sm:$0xf]
    %v3156 = vld [vmem:[%s3143 + $0x30] sm:$0xf]
    %v3157 = vld [vmem:[%s3143 + $0x34] sm:$0xf]
    %v3158 = vld [vmem:[%s3143 + $0x38] sm:$0xf]
    %v3159 = vld [vmem:[%s3143 + $0x3c] sm:$0xf]
    %v3160 = vld [vmem:[%s3143 + $0x40] sm:$0xf]
    %v3161 = vld [vmem:[%s3143 + $0x44] sm:$0xf]
    %v3162 = vld [vmem:[%s3143 + $0x48] sm:$0xf]
    %v3163 = vld [vmem:[%s3143 + $0x4c] sm:$0xf]
    %v3164 = vld [vmem:[%s3143 + $0x50] sm:$0xf]
    %v3165 = vld [vmem:[%s3143 + $0x54] sm:$0xf]
    %v3166 = vld [vmem:[%s3143 + $0x58] sm:$0xf]
    %v3167 = vld [vmem:[%s3143 + $0x5c] sm:$0xf]
    %v3168 = vld [vmem:[%s3143 + $0x60] sm:$0xf]
    %v3169 = vld [vmem:[%s3143 + $0x64] sm:$0xf]
    %v3170 = vld [vmem:[%s3143 + $0x68] sm:$0xf]
    %v3171 = vld [vmem:[%s3143 + $0x6c] sm:$0xf]
    %v3172 = vld [vmem:[%s3143 + $0x70] sm:$0xf]
    %v3173 = vld [vmem:[%s3143 + $0x74] sm:$0xf]
    %v3174 = vld [vmem:[%s3143 + $0x78] sm:$0xf]
    %v3175 = vld [vmem:[%s3143 + $0x7c] sm:$0xf]
    %v3208 = vunpack.c.l.b16 %v3144
    %v3209 = vunpack.c.l.b16 %v3145
    %v3210 = vunpack.c.l.b16 %v3146
    %v3211 = vunpack.c.l.b16 %v3147
    %v3212 = vunpack.c.l.b16 %v3148
    %v3213 = vunpack.c.l.b16 %v3149
    %v3214 = vunpack.c.l.b16 %v3150
    %v3215 = vunpack.c.l.b16 %v3151
    %v3216 = vunpack.c.l.b16 %v3152
    %v3217 = vunpack.c.l.b16 %v3153
    %v3218 = vunpack.c.l.b16 %v3154
    %v3219 = vunpack.c.l.b16 %v3155
    %v3220 = vunpack.c.l.b16 %v3156
    %v3221 = vunpack.c.l.b16 %v3157
    %v3222 = vunpack.c.l.b16 %v3158
    %v3223 = vunpack.c.l.b16 %v3159
    %v3224 = vunpack.c.l.b16 %v3160
    %v3225 = vunpack.c.l.b16 %v3161
    %v3226 = vunpack.c.l.b16 %v3162
    %v3227 = vunpack.c.l.b16 %v3163
    %v3228 = vunpack.c.l.b16 %v3164
    %v3229 = vunpack.c.l.b16 %v3165
    %v3230 = vunpack.c.l.b16 %v3166
    %v3231 = vunpack.c.l.b16 %v3167
    %v3232 = vunpack.c.l.b16 %v3168
    %v3233 = vunpack.c.l.b16 %v3169
    %v3234 = vunpack.c.l.b16 %v3170
    %v3235 = vunpack.c.l.b16 %v3171
    %v3236 = vunpack.c.l.b16 %v3172
    %v3237 = vunpack.c.l.b16 %v3173
    %v3238 = vunpack.c.l.b16 %v3174
    %v3239 = vunpack.c.l.b16 %v3175
    %v3240 = vpack.c.b16 %v3209, %v3208
    %v3241 = vpack.c.b16 %v3211, %v3210
    %v3242 = vpack.c.b16 %v3213, %v3212
    %v3243 = vpack.c.b16 %v3215, %v3214
    %v3244 = vpack.c.b16 %v3217, %v3216
    %v3245 = vpack.c.b16 %v3219, %v3218
    %v3246 = vpack.c.b16 %v3221, %v3220
    %v3247 = vpack.c.b16 %v3223, %v3222
    %v3248 = vpack.c.b16 %v3225, %v3224
    %v3249 = vpack.c.b16 %v3227, %v3226
    %v3250 = vpack.c.b16 %v3229, %v3228
    %v3251 = vpack.c.b16 %v3231, %v3230
    %v3252 = vpack.c.b16 %v3233, %v3232
    %v3253 = vpack.c.b16 %v3235, %v3234
    %v3254 = vpack.c.b16 %v3237, %v3236
    %v3255 = vpack.c.b16 %v3239, %v3238
    %3272 = vmatprep.subr.bf16.mxu0 0
    %3273 = vmatpush1.bf16.msra.mxu0 %v3247
    %3274 = vmatprep.subr.bf16.mxu0 0
    %3275 = vmatpush1.bf16.msra.mxu0 %v3246
    %3276 = vmatprep.subr.bf16.mxu0 0
    %3277 = vmatpush1.bf16.msra.mxu0 %v3245
    %3278 = vmatprep.subr.bf16.mxu0 0
    %3279 = vmatpush1.bf16.msra.mxu0 %v3244
    %3280 = vmatprep.subr.bf16.mxu0 0
    %3281 = vmatpush1.bf16.msra.mxu0 %v3243
    %3282 = vmatprep.subr.bf16.mxu0 0
    %3283 = vmatpush1.bf16.msra.mxu0 %v3242
    %3284 = vmatprep.subr.bf16.mxu0 0
    %3285 = vmatpush1.bf16.msra.mxu0 %v3241
    %3286 = vmatprep.subr.bf16.mxu0 0
    %3287 = vmatpush1.bf16.msra.mxu0 %v3240
    %3288 = vmatprep.subr.bf16.mxu0 0
    %3289 = vmatpush2.bf16.msra.mxu0 %v3255
    %3290 = vmatprep.subr.bf16.mxu0 0
    %3291 = vmatpush2.bf16.msra.mxu0 %v3254
    %3292 = vmatprep.subr.bf16.mxu0 0
    %3293 = vmatpush2.bf16.msra.mxu0 %v3253
    %3294 = vmatprep.subr.bf16.mxu0 0
    %3295 = vmatpush2.bf16.msra.mxu0 %v3252
    %3296 = vmatprep.subr.bf16.mxu0 0
    %3297 = vmatpush2.bf16.msra.mxu0 %v3251
    %3298 = vmatprep.subr.bf16.mxu0 0
    %3299 = vmatpush2.bf16.msra.mxu0 %v3250
    %3300 = vmatprep.subr.bf16.mxu0 0
    %3301 = vmatpush2.bf16.msra.mxu0 %v3249
    %3302 = vmatprep.subr.bf16.mxu0 0
    %3303 = vmatpush2.bf16.msra.mxu0 %v3248
    %3304 = vmatprep.mubr.bf16.mxu0 %v2781
    %3305 = vmatmul.mubr.bf16.gmra.mxu0 %v2780
    %v3306 = vpop.f32.mrf.mxu0
    %v3307 = vadd.f32 0.0, %v3306
    %v3308 = vpop.f32.mrf.mxu0
    %v3309 = vpop.f32.mrf.mxu0
    %v3310 = vadd.f32 0.0, %v3309
    %v3311 = vpop.f32.mrf.mxu0
    %3312 = vmatprep.mubr.bf16.mxu0 %v2783
    %3313 = vmatmul.mubr.bf16.gmra.mxu0 %v2782
    %v3314 = vpop.f32.mrf.mxu0
    %v3315 = vadd.f32 0.0, %v3314
    %v3316 = vpop.f32.mrf.mxu0
    %v3317 = vpop.f32.mrf.mxu0
    %v3318 = vadd.f32 0.0, %v3317
    %v3319 = vpop.f32.mrf.mxu0
    %3320 = vdwg.mxu0
    %v3321 = vmax.f32 %v3139, %v3307
    %v3322 = vmax.f32 %v3140, %v3310
    %v3323 = vmax.f32 %v3141, %v3315
    %v3324 = vmax.f32 %v3142, %v3318
    %v3325 = vld [vmem:[%s10] sm:$0x1]
    %v3327 = vlaneseq
    %v3328 = vshrl.u32 %v3327, 7
    %v3329 = vsub.s32 0, %v3328
    %v3330 = vrot.slane %v3325, %v3329
    %v3332 = vadd.f32 %v3321, %v3330
    %v3333 = vadd.f32 %v3322, %v3330
    %v3334 = vadd.f32 %v3323, %v3330
    %v3335 = vadd.f32 %v3324, %v3330
    %v3336 = vpack.c.bf16 %v3333, %v3332
    %v3337 = vpack.c.bf16 %v3335, %v3334
    %v3338 = vld [vmem:[%s11] sm:$0xf]
    %v3339 = vld [vmem:[%s11 + $0x4] sm:$0xf]
    %v3340 = vld [vmem:[%s11 + $0x8] sm:$0xf]
    %v3341 = vld [vmem:[%s11 + $0xc] sm:$0xf]
    %v3342 = vld [vmem:[%s11 + $0x10] sm:$0xf]
    %v3343 = vld [vmem:[%s11 + $0x14] sm:$0xf]
    %v3344 = vld [vmem:[%s11 + $0x18] sm:$0xf]
    %v3345 = vld [vmem:[%s11 + $0x1c] sm:$0xf]
    %v3346 = vld [vmem:[%s11 + $0x20] sm:$0xf]
    %v3347 = vld [vmem:[%s11 + $0x24] sm:$0xf]
    %v3348 = vld [vmem:[%s11 + $0x28] sm:$0xf]
    %v3349 = vld [vmem:[%s11 + $0x2c] sm:$0xf]
    %v3350 = vld [vmem:[%s11 + $0x30] sm:$0xf]
    %v3351 = vld [vmem:[%s11 + $0x34] sm:$0xf]
    %v3352 = vld [vmem:[%s11 + $0x38] sm:$0xf]
    %v3353 = vld [vmem:[%s11 + $0x3c] sm:$0xf]
    %v3354 = vld [vmem:[%s12] sm:$0x1]
    %3356 = vset.pattern.permute.xlu0 0
    %3357 = vperm.xlu0 %3356, %v121
    %v3358 = vpop.permute.xlu0 %3357
    %3361 = vset.pattern.permute.xlu0 0
    %3362 = vperm.xlu0 %3361, %v122
    %v3363 = vpop.permute.xlu0 %3362
    %3366 = vset.pattern.permute.xlu0 0
    %3367 = vperm.xlu0 %3366, %v123
    %v3368 = vpop.permute.xlu0 %3367
    %3371 = vset.pattern.permute.xlu0 0
    %3372 = vperm.xlu0 %3371, %v124
    %v3373 = vpop.permute.xlu0 %3372
    %v3376 = vlaneseq
    %v3377 = vshrl.u32 %v3376, 7
    %v3378 = vsub.s32 0, %v3377
    %v3379 = vrot.slane %v3354, %v3378
    %v3381 = vmul.f32 %v3358, %v3379
    %v3382 = vmul.f32 %v3363, %v3379
    %v3383 = vmul.f32 %v3368, %v3379
    %v3384 = vmul.f32 %v3373, %v3379
    %v3401 = vunpack.c.l.b16 %v3338
    %v3402 = vunpack.c.l.b16 %v3339
    %v3403 = vunpack.c.l.b16 %v3340
    %v3404 = vunpack.c.l.b16 %v3341
    %v3405 = vunpack.c.l.b16 %v3342
    %v3406 = vunpack.c.l.b16 %v3343
    %v3407 = vunpack.c.l.b16 %v3344
    %v3408 = vunpack.c.l.b16 %v3345
    %v3409 = vunpack.c.l.b16 %v3346
    %v3410 = vunpack.c.l.b16 %v3347
    %v3411 = vunpack.c.l.b16 %v3348
    %v3412 = vunpack.c.l.b16 %v3349
    %v3413 = vunpack.c.l.b16 %v3350
    %v3414 = vunpack.c.l.b16 %v3351
    %v3415 = vunpack.c.l.b16 %v3352
    %v3416 = vunpack.c.l.b16 %v3353
    %v3417 = vpack.c.b16 %v3402, %v3401
    %v3418 = vpack.c.b16 %v3404, %v3403
    %v3419 = vpack.c.b16 %v3406, %v3405
    %v3420 = vpack.c.b16 %v3408, %v3407
    %v3421 = vpack.c.b16 %v3410, %v3409
    %v3422 = vpack.c.b16 %v3412, %v3411
    %v3423 = vpack.c.b16 %v3414, %v3413
    %v3424 = vpack.c.b16 %v3416, %v3415
    %3433 = vmatprep.subr.bf16.mxu0 0
    %3434 = vmatpush1.bf16.msra.mxu0 %v3424
    %3435 = vmatprep.subr.bf16.mxu0 0
    %3436 = vmatpush1.bf16.msra.mxu0 %v3423
    %3437 = vmatprep.subr.bf16.mxu0 0
    %3438 = vmatpush1.bf16.msra.mxu0 %v3422
    %3439 = vmatprep.subr.bf16.mxu0 0
    %3440 = vmatpush1.bf16.msra.mxu0 %v3421
    %3441 = vmatprep.subr.bf16.mxu0 0
    %3442 = vmatpush1.bf16.msra.mxu0 %v3420
    %3443 = vmatprep.subr.bf16.mxu0 0
    %3444 = vmatpush1.bf16.msra.mxu0 %v3419
    %3445 = vmatprep.subr.bf16.mxu0 0
    %3446 = vmatpush1.bf16.msra.mxu0 %v3418
    %3447 = vmatprep.subr.bf16.mxu0 0
    %3448 = vmatpush1.bf16.msra.mxu0 %v3417
    %3449 = vmatprep.subr.bf16.mxu0 0
    %3450 = vmatpush2.bf16.msra.mxu0 0
    %3451 = vmatprep.subr.bf16.mxu0 0
    %3452 = vmatpush2.bf16.msra.mxu0 0
    %3453 = vmatprep.subr.bf16.mxu0 0
    %3454 = vmatpush2.bf16.msra.mxu0 0
    %3455 = vmatprep.subr.bf16.mxu0 0
    %3456 = vmatpush2.bf16.msra.mxu0 0
    %3457 = vmatprep.subr.bf16.mxu0 0
    %3458 = vmatpush2.bf16.msra.mxu0 0
    %3459 = vmatprep.subr.bf16.mxu0 0
    %3460 = vmatpush2.bf16.msra.mxu0 0
    %3461 = vmatprep.subr.bf16.mxu0 0
    %3462 = vmatpush2.bf16.msra.mxu0 0
    %3463 = vmatprep.subr.bf16.mxu0 0
    %3464 = vmatpush2.bf16.msra.mxu0 0
    %3465 = vmatprep.mubr.bf16.mxu0 0
    %3466 = vmatmul.mubr.bf16.gmra.mxu0 %v3336
    %v3467 = vpop.f32.mrf.mxu0
    %v3468 = vadd.f32 %v3381, %v3467
    %v3469 = vpop.f32.mrf.mxu0
    %v3470 = vpop.f32.mrf.mxu0
    %v3471 = vadd.f32 %v3382, %v3470
    %v3472 = vpop.f32.mrf.mxu0
    %3473 = vmatprep.mubr.bf16.mxu0 0
    %3474 = vmatmul.mubr.bf16.gmra.mxu0 %v3337
    %v3475 = vpop.f32.mrf.mxu0
    %v3476 = vadd.f32 %v3383, %v3475
    %v3477 = vpop.f32.mrf.mxu0
    %v3478 = vpop.f32.mrf.mxu0
    %v3479 = vadd.f32 %v3384, %v3478
    %v3480 = vpop.f32.mrf.mxu0
    %3481 = vdwg.mxu0
    %v3482 = vld [vmem:[%s13] sm:$0x1]
    %v3484 = vlaneseq
    %v3485 = vshrl.u32 %v3484, 7
    %v3486 = vsub.s32 0, %v3485
    %v3487 = vrot.slane %v3482, %v3486
    %v3489 = vadd.f32 %v3468, %v3487
    %v3490 = vadd.f32 %v3471, %v3487
    %v3491 = vadd.f32 %v3476, %v3487
    %v3492 = vadd.f32 %v3479, %v3487
    %vm3493 = vcmask 261120
    %3494 = vst.msk [vmem:[%s14] sm:$0xff] %vm3493, %v3489
    %3495 = vst.msk [vmem:[%s14 + $0x8] sm:$0xff] %vm3493, %v3490
    %3496 = vst.msk [vmem:[%s14 + $0x10] sm:$0xff] %vm3493, %v3491
    %3497 = vst.msk [vmem:[%s14 + $0x18] sm:$0xff] %vm3493, %v3492
    // Predicated region
    $region66: #{_forward.1} parent=1 // pred_check
      _
    $region67: #{_forward.1} parent=1 // pred_check_branch
      %3499 = sbr.rel (0) target = $region69
    $region68: #{_forward.1} parent=1 // pred_region
      _
    $region69: #{_forward.1} parent=1 // pred_fallthru
      _
    // Predicated region
    $region70: #{_forward.1} parent=1 // pred_check
      _
    $region71: #{_forward.1} parent=1 // pred_check_branch
      %3501 = sbr.rel (0) target = $region73
    $region72: #{_forward.1} parent=1 // pred_region
      _
    $region73: #{_forward.1} parent=1 // pred_fallthru
      _
    %3502 = vsyncpa [#allocation3], 1
    %3503 = vsyncpa [#allocation5], 1

</llo_original>
